<compile_context>
chip_gen: v5e
topology: v5e:2x2
jax: 0.10.0
libtpu: 0.0.40
codegen_flags: <defaults>
</compile_context>

<pallas_src>
import functools
import math

import jax
import jax.numpy as jnp
from jax.experimental import pallas as pl
from jax.experimental.pallas import tpu as pltpu


def _attention_kernel(x_ref, w_ref, b_ref, o_ref):
    """One grid step: nb samples, both 1x1 convs, T reduction, final clamp.

    x_ref : (nb, C_in, T)     activations, native NCHW order (trailing 1 dropped)
    w_ref : (2*C_out, C_in)   fused [att; cla] 1x1-conv weights, x.dtype
    b_ref : (2*C_out, 1)      fused biases, float32
    o_ref : (nb, C_out)       float32
    """
    nb = x_ref.shape[0]
    c_out = o_ref.shape[-1]

    x = x_ref[...]                                              # (nb, C_in, T)
    # Broadcast the (tiny) fused weights over the batch so the C_in contraction
    # is a single canonical batched MXU matmul — no transpose of x needed.
    w = jnp.broadcast_to(w_ref[...][None], (nb,) + w_ref.shape)  # (nb, 2C, C_in)
    z = jnp.einsum('noc,nct->not', w, x,
                   preferred_element_type=jnp.float32)           # (nb, 2C, T) f32
    z = jax.nn.sigmoid(z + b_ref[...][None])                     # f32 post-matmul math

    eps = 1e-07
    att = jnp.clip(z[:, :c_out, :], eps, 1.0 - eps)              # (nb, C_out, T)
    cla = z[:, c_out:, :]

    # sum_t((att / sum_t(att)) * cla) == sum_t(att * cla) / sum_t(att)
    num = jnp.sum(att * cla, axis=-1)                            # (nb, C_out)
    den = jnp.sum(att, axis=-1)                                  # (nb, C_out)
    # Exact EUP reciprocal; switch to approx=True for extra headroom if the
    # ~1e-4-level relative error is acceptable.
    out = jnp.clip(num * pl.reciprocal(den, approx=False), 0.0, 1.0)
    o_ref[...] = out.astype(o_ref.dtype)


_X_BUFFER_BUDGET_BYTES = 8 * 1024 * 1024   # per pipeline buffer (x is double-buffered)
_VMEM_LIMIT_BYTES = 32 * 1024 * 1024       # safe on v5e/v6e (128 MiB) and v7x (64 MiB)


def _choose_block_n(n, per_sample_bytes, target_blocks):
    """Largest nb that divides n, keeps a double-buffered x block under budget,
    keeps >= target_blocks grid steps (2-TC sharding on v7x), and keeps the
    (nb, C_out) output block sublane-legal (nb % 8 == 0 or nb == n)."""
    cap = max(1, _X_BUFFER_BUDGET_BYTES // max(1, per_sample_bytes))
    if target_blocks > 1 and n > 1:
        cap = min(cap, -(-n // target_blocks))   # ceil div
    cap = min(cap, n)
    for d in range(cap, 0, -1):
        if n % d == 0 and (d % 8 == 0 or d == n):
            return d
    # Fallback: one full-extent block (always a legal BlockSpec). For very large,
    # awkward N, pad N to a multiple of 8 upstream instead.
    return n


@functools.partial(jax.jit, static_argnames=("target_blocks",))
def attention_forward(x_nchw, w_att, b_att, w_cla, b_cla, target_blocks=2):
    """x_nchw: (N, C_in, T, 1) exactly like the PyTorch module.
    w_*: (C_out, C_in) (PyTorch Conv2d weight with the 1x1 dims dropped),
    b_*: (C_out,).  Returns (N, C_out) float32.

    Feed bf16 activations for production shapes: the matmul runs in x.dtype with
    f32 accumulation; everything after the matmul stays f32."""
    N, C_in, T, W = x_nchw.shape
    assert W == 1
    C_out = w_att.shape[0]

    # Free, layout-preserving squeeze of the trailing singleton (no HBM pass);
    # the old transpose/pad wrapper copies are removed.
    x3 = jnp.squeeze(x_nchw, axis=-1)                            # (N, C_in, T)

    # Fuse the two 1x1 convolutions into one matmul; cast tiny params to x.dtype.
    w_cat = jnp.concatenate([w_att, w_cla], axis=0).astype(x3.dtype)            # (2C, C_in)
    b_cat = jnp.concatenate([b_att, b_cla], axis=0).astype(jnp.float32)[:, None]  # (2C, 1)

    itemsize = jnp.dtype(x3.dtype).itemsize
    nb = _choose_block_n(N, C_in * T * itemsize, target_blocks)
    n_blocks = N // nb

    cost = pl.CostEstimate(
        flops=2 * N * T * C_in * (2 * C_out) + 6 * N * T * C_out,
        transcendentals=2 * N * T * C_out,
        bytes_accessed=(N * C_in * T + 2 * C_out * C_in) * itemsize
                       + 4 * (2 * C_out + N * C_out),
    )

    grid_spec = pltpu.PrefetchScalarGridSpec(
        num_scalar_prefetch=0,
        grid=(n_blocks,),
        in_specs=[
            pl.BlockSpec((nb, C_in, T), lambda g: (g, 0, 0)),
            pl.BlockSpec((2 * C_out, C_in), lambda g: (0, 0)),
            pl.BlockSpec((2 * C_out, 1), lambda g: (0, 0)),
        ],
        out_specs=pl.BlockSpec((nb, C_out), lambda g: (g, 0)),
    )

    return pl.pallas_call(
        _attention_kernel,
        out_shape=jax.ShapeDtypeStruct((N, C_out), jnp.float32),
        grid_spec=grid_spec,
        compiler_params=pltpu.CompilerParams(
            dimension_semantics=("parallel",),
            vmem_limit_bytes=_VMEM_LIMIT_BYTES,
        ),
        cost_estimate=cost,
    )(x3, w_cat, b_cat)


def init_conv1x1_params(key, n_in, n_out):
    """Mimics init_layer for a 1x1 Conv2d: uniform(-scale, scale), bias = 0.
    Weight returned in PyTorch's (n_out, n_in) layout (1x1 spatial dims dropped)."""
    n = n_in * 1 * 1
    std = math.sqrt(2.0 / n)
    scale = std * math.sqrt(3.0)
    w = jax.random.uniform(key, (n_out, n_in), jnp.float32, -scale, scale)
    b = jnp.zeros((n_out,), jnp.float32)
    return w, b


def reference_forward(x_nchw, w_att, b_att, w_cla, b_cla):
    """Pure-JAX reference matching the PyTorch forward (all math in f32)."""
    x = x_nchw[..., 0].astype(jnp.float32)                      # (N, C_in, T)
    att = jax.nn.sigmoid(jnp.einsum('nct,oc->not', x, w_att.astype(jnp.float32))
                         + b_att[None, :, None])
    cla = jax.nn.sigmoid(jnp.einsum('nct,oc->not', x, w_cla.astype(jnp.float32))
                         + b_cla[None, :, None])
    eps = 1e-07
    att = jnp.clip(att, eps, 1.0 - eps)
    norm_att = att / jnp.sum(att, axis=2, keepdims=True)
    out = jnp.sum(norm_att * cla, axis=2)
    return jnp.clip(out, 0.0, 1.0)


if __name__ == "__main__":
    key = jax.random.PRNGKey(0)
    k_x, k_att, k_cla = jax.random.split(key, 3)

    # (samples, freq_bins/n_in, time_steps, 1).  With target_blocks=2 this gives
    # nb=32 -> a 2-step parallel grid (one block per TensorCore on v7x), each
    # step doing a batched (32 x (32,32)@(32,64)) MXU matmul.
    N, C_in, T, C_out = 64, 32, 64, 16
    x = jax.random.normal(k_x, (N, C_in, T, 1), jnp.float32)

    w_att, b_att = init_conv1x1_params(k_att, C_in, C_out)
    w_cla, b_cla = init_conv1x1_params(k_cla, C_in, C_out)

    # float32 activation path.
    out = attention_forward(x, w_att, b_att, w_cla, b_cla)
    out = jax.block_until_ready(out)
    ref = reference_forward(x, w_att, b_att, w_cla, b_cla)
    assert out.shape == (N, C_out)
    assert float(jnp.max(jnp.abs(out - ref))) < 1e-5

    # bf16 activation path (halves x HBM bytes, bf16-native MXU); compare against
    # an f32 reference fed the same bf16-rounded inputs.
    x_bf16 = x.astype(jnp.bfloat16)
    out_bf16 = attention_forward(x_bf16, w_att, b_att, w_cla, b_cla)
    out_bf16 = jax.block_until_ready(out_bf16)
    ref_bf16 = reference_forward(
        x_bf16.astype(jnp.float32),
        w_att.astype(jnp.bfloat16).astype(jnp.float32), b_att,
        w_cla.astype(jnp.bfloat16).astype(jnp.float32), b_cla)
    assert out_bf16.shape == (N, C_out)
    assert float(jnp.max(jnp.abs(out_bf16 - ref_bf16))) < 2e-3

    print("KERNEL_OK")
</pallas_src>

<mosaic_0001>
module attributes {stable_mosaic.version = 11 : i64} {
  func.func @_attention_kernel(%arg0: i32, %arg1: memref<32x32x64xf32, #tpu.memory_space<vmem>>, %arg2: memref<32x32xf32, #tpu.memory_space<vmem>>, %arg3: memref<32x1xf32, #tpu.memory_space<vmem>>, %arg4: memref<32x16xf32, #tpu.memory_space<vmem>>) attributes {dimension_semantics = [#tpu.dimension_semantics<parallel>], iteration_bounds = array<i64: 2>, scalar_prefetch = 0 : i64, scratch_operands = 0 : i64, tpu.core_type = #tpu.core_type<tc>, window_params = [{transform_indices = @transform_0, window_bounds = array<i64: 32, 32, 64>}, {pipeline_mode = #tpu.pipeline_mode<synchronous>, transform_indices = @transform_1, window_bounds = array<i64: 32, 32>}, {pipeline_mode = #tpu.pipeline_mode<synchronous>, transform_indices = @transform_2, window_bounds = array<i64: 32, 1>}, {transform_indices = @transform_3, window_bounds = array<i64: 32, 16>}]} {
    %c0 = arith.constant 0 : index
    %c0_0 = arith.constant 0 : index
    %c0_1 = arith.constant 0 : index
    %0 = vector.load %arg1[%c0, %c0_0, %c0_1] : memref<32x32x64xf32, #tpu.memory_space<vmem>>, vector<32x32x64xf32>
    %c0_2 = arith.constant 0 : index
    %c0_3 = arith.constant 0 : index
    %1 = vector.load %arg2[%c0_2, %c0_3] : memref<32x32xf32, #tpu.memory_space<vmem>>, vector<32x32xf32>
    %2 = vector.shape_cast %1 : vector<32x32xf32> to vector<1x32x32xf32>
    %3 = vector.shape_cast %2 : vector<1x32x32xf32> to vector<1x32x32xf32>
    %4 = vector.broadcast %3 : vector<1x32x32xf32> to vector<32x32x32xf32>
    "tpu.trace_start"() <{level = 10 : i32, message = "noc,nct->not"}> : () -> ()
    %cst = arith.constant dense<0.000000e+00> : vector<32x32x64xf32>
    %5 = tpu.matmul %4, %0, %cst {dimension_numbers = #tpu.dot_dimension_numbers<[2], [1], [1], [2], [0, 0, 0, 1, 1, 2], [0], [0]>} : vector<32x32x32xf32>, vector<32x32x64xf32>, vector<32x32x64xf32> -> vector<32x32x64xf32>
    "tpu.trace_stop"() : () -> ()
    %c0_4 = arith.constant 0 : index
    %c0_5 = arith.constant 0 : index
    %6 = vector.load %arg3[%c0_4, %c0_5] : memref<32x1xf32, #tpu.memory_space<vmem>>, vector<32x1xf32>
    %7 = vector.shape_cast %6 : vector<32x1xf32> to vector<1x32x1xf32>
    %8 = vector.broadcast %7 : vector<1x32x1xf32> to vector<32x32x64xf32>
    %9 = arith.addf %5, %8 : vector<32x32x64xf32>
    %10 = arith.negf %9 : vector<32x32x64xf32>
    %11 = math.exp %10 : vector<32x32x64xf32>
    %cst_6 = arith.constant 1.000000e+00 : f32
    %12 = vector.broadcast %cst_6 : f32 to vector<32x32x64xf32>
    %13 = arith.addf %12, %11 : vector<32x32x64xf32>
    %14 = arith.divf %12, %13 : vector<32x32x64xf32>
    %15 = vector.extract_strided_slice %14 {offsets = [0, 0, 0], sizes = [32, 16, 64], strides = [1, 1, 1]} : vector<32x32x64xf32> to vector<32x16x64xf32>
    %cst_7 = arith.constant 1.000000e-07 : f32
    %cst_8 = arith.constant 0.99999988 : f32
    %16 = vector.broadcast %cst_7 : f32 to vector<32x16x64xf32>
    %17 = arith.maximumf %16, %15 : vector<32x16x64xf32>
    %18 = vector.broadcast %cst_8 : f32 to vector<32x16x64xf32>
    %19 = arith.minimumf %18, %17 : vector<32x16x64xf32>
    %20 = vector.extract_strided_slice %14 {offsets = [0, 16, 0], sizes = [32, 16, 64], strides = [1, 1, 1]} : vector<32x32x64xf32> to vector<32x16x64xf32>
    %21 = arith.mulf %19, %20 : vector<32x16x64xf32>
    %cst_9 = arith.constant dense<0.000000e+00> : vector<32x16xf32>
    %22 = vector.multi_reduction <add>, %21, %cst_9 [2] : vector<32x16x64xf32> to vector<32x16xf32>
    %cst_10 = arith.constant dense<0.000000e+00> : vector<32x16xf32>
    %23 = vector.multi_reduction <add>, %19, %cst_10 [2] : vector<32x16x64xf32> to vector<32x16xf32>
    %24 = tpu.reciprocal %23 : vector<32x16xf32> -> vector<32x16xf32>
    %25 = arith.mulf %22, %24 : vector<32x16xf32>
    %cst_11 = arith.constant 0.000000e+00 : f32
    %cst_12 = arith.constant 1.000000e+00 : f32
    %26 = vector.broadcast %cst_11 : f32 to vector<32x16xf32>
    %27 = arith.maximumf %26, %25 : vector<32x16xf32>
    %28 = vector.broadcast %cst_12 : f32 to vector<32x16xf32>
    %29 = arith.minimumf %28, %27 : vector<32x16xf32>
    %c0_13 = arith.constant 0 : index
    %c0_14 = arith.constant 0 : index
    %30 = vector.load %arg4[%c0_13, %c0_14] : memref<32x16xf32, #tpu.memory_space<vmem>>, vector<32x16xf32>
    tpu.vector_store %arg4[%c0_13, %c0_14], %29 {strides = array<i32>} : memref<32x16xf32, #tpu.memory_space<vmem>>, vector<32x16xf32>,
    return
  }
  func.func @transform_0(%arg0: i32) -> (i32, i32, i32) {
    %c0_i32 = arith.constant 0 : i32
    %c0_i32_0 = arith.constant 0 : i32
    %c0_i32_1 = arith.constant 0 : i32
    return %arg0, %c0_i32, %c0_i32_0 : i32, i32, i32
  }
  func.func @transform_1(%arg0: i32) -> (i32, i32) {
    %c0_i32 = arith.constant 0 : i32
    %c0_i32_0 = arith.constant 0 : i32
    %c0_i32_1 = arith.constant 0 : i32
    return %c0_i32, %c0_i32_0 : i32, i32
  }
  func.func @transform_2(%arg0: i32) -> (i32, i32) {
    %c0_i32 = arith.constant 0 : i32
    %c0_i32_0 = arith.constant 0 : i32
    %c0_i32_1 = arith.constant 0 : i32
    return %c0_i32, %c0_i32_0 : i32, i32
  }
  func.func @transform_3(%arg0: i32) -> (i32, i32) {
    %c0_i32 = arith.constant 0 : i32
    %c0_i32_0 = arith.constant 0 : i32
    return %arg0, %c0_i32 : i32, i32
  }
}

</mosaic_0001>

<llo_original>
// kernel: attention_forward.1
$region0: #{attention_forward.1}
  #allocation0 [shape = 'u32[]', space=smem, size = 0x4, offset = 0x4, fixed_abs, tag = 'smem constant byte address 0x4 - core index']
  #allocation1 [shape = 'u32[72,128]{1,0:T(1,128)}', space=vmem, size = 0x9000, scoped, tag = 'internal scratch']
  %s0 = inlined_call_operand.hbm [shape: f32[64,32,64], index: 0, kind: input, shape index: {}]
  %s1 = inlined_call_operand.vmem [shape: f32[32,32], index: 1, kind: input, shape index: {}]
  %s2 = inlined_call_operand.vmem [shape: f32[32,1], index: 2, kind: input, shape index: {}]
  %s3 = inlined_call_operand.vmem [shape: f32[64,16], index: 3, kind: output, shape index: {}]
  %s4 = sld [smem:[#allocation0]]
  $region49: #{attention_forward.1} parent=0
    _
  %s6 = ssub.s32 1, %s4
  %s7 = scalar_select 0, %s6, %s4
  $region1: #{attention_forward.1} parent=0
    #allocation2 [shape = 'u8[1048576]{0}', space=vmem, size = 0x100000, scoped, tag = 'input window, operand 0']
    #allocation3 [shape = 's32[2]{0}', space=sflag, size = 0x8, scoped, tag = 'scoped memory for attention_forward.1']
    %8 = vsyncpa [#allocation3], 0
    %s9 = scalar_lea.sflag [#allocation3], 1
    %10 = vsyncpa %s9, 0
    loop: start=0, step=1, limit=4
    $region2: #{attention_forward.1} parent=1 // loop_pre_header
      _
    $region3: #{attention_forward.1} parent=1 // loop_header
      %s12 = sphi 0, %s16
      %p13 = scmp.ge.s32.totalorder %s12, 4
      %s22 = sphi 0, %s24
      %s25 = sphi 0, %s22
      %s26 = sphi 0, %s25
      %s42 = sphi 0, %s26
      %s46 = sphi 0, %s46
      %s48 = sphi 0, %s46
      %s49 = sphi 0, %s48
      %s63 = sphi 0, %s49
      %s67 = sphi 0, %s67
      %s69 = sphi 0, %s67
      %s70 = sphi 0, %s69
      %s84 = sphi 0, %s70
      %s90 = sphi 0, %s92
      %s93 = sphi 0, %s90
      %s94 = sphi 0, %s93
      %s110 = sphi 0, %s94
    $region4: #{attention_forward.1} parent=1 // loop_header_branch
      %15 = sbr.rel (%p13) target = $region8
    $region5: #{attention_forward.1} parent=1 // loop_body
      %s17 = ssub.s32 %s12, 1
      %s18 = ssub.s32 %s12, 2
      %s19 = sadd.s32 %s12, 1
      %s20 = ssub.s32 %s12, %s19
      %p21 = scmp.eq.s32.totalorder %s20, 0
      %s23 = sadd.s32 %s22, 1
      %s24 = scalar_select %p21, %s22, %s23
      %p27 = pneg %p21
      %p28 = scmp.eq.s32.totalorder %s12, 1
      %p29 = por %p27, %p28
      %p30 = scmp.ne.s32.totalorder %s22, %s25
      %p31 = scmp.eq.s32.totalorder %s12, 0
      %p32 = por %p30, %p31
      %p33 = scmp.ne.s32.totalorder %s22, %s25
      %p34 = scmp.eq.s32.totalorder %s17, 1
      %p35 = por %p33, %p34
      %p36 = scmp.ne.s32.totalorder %s25, %s26
      %p37 = scmp.eq.s32.totalorder %s17, 0
      %p38 = por %p36, %p37
      %p39 = scmp.ne.s32.totalorder %s25, %s26
      %p40 = scmp.eq.s32.totalorder %s18, 1
      %p41 = por %p39, %p40
      %p43 = scmp.ne.s32.totalorder %s26, %s42
      %p44 = scmp.eq.s32.totalorder %s18, 0
      %p45 = por %p43, %p44
      %s47 = sadd.s32 %s46, 1
      %p50 = scmp.eq.s32.totalorder %s12, 1
      %p51 = scmp.ne.s32.totalorder %s46, %s48
      %p52 = scmp.eq.s32.totalorder %s12, 0
      %p53 = por %p51, %p52
      %p54 = scmp.ne.s32.totalorder %s46, %s48
      %p55 = scmp.eq.s32.totalorder %s17, 1
      %p56 = por %p54, %p55
      %p57 = scmp.ne.s32.totalorder %s48, %s49
      %p58 = scmp.eq.s32.totalorder %s17, 0
      %p59 = por %p57, %p58
      %p60 = scmp.ne.s32.totalorder %s48, %s49
      %p61 = scmp.eq.s32.totalorder %s18, 1
      %p62 = por %p60, %p61
      %p64 = scmp.ne.s32.totalorder %s49, %s63
      %p65 = scmp.eq.s32.totalorder %s18, 0
      %p66 = por %p64, %p65
      %s68 = sadd.s32 %s67, 1
      %p71 = scmp.eq.s32.totalorder %s12, 1
      %p72 = scmp.ne.s32.totalorder %s67, %s69
      %p73 = scmp.eq.s32.totalorder %s12, 0
      %p74 = por %p72, %p73
      %p75 = scmp.ne.s32.totalorder %s67, %s69
      %p76 = scmp.eq.s32.totalorder %s17, 1
      %p77 = por %p75, %p76
      %p78 = scmp.ne.s32.totalorder %s69, %s70
      %p79 = scmp.eq.s32.totalorder %s17, 0
      %p80 = por %p78, %p79
      %p81 = scmp.ne.s32.totalorder %s69, %s70
      %p82 = scmp.eq.s32.totalorder %s18, 1
      %p83 = por %p81, %p82
      %p85 = scmp.ne.s32.totalorder %s70, %s84
      %p86 = scmp.eq.s32.totalorder %s18, 0
      %p87 = por %p85, %p86
      %s88 = ssub.s32 %s12, %s19
      %p89 = scmp.eq.s32.totalorder %s88, 0
      %s91 = sadd.s32 %s90, 1
      %s92 = scalar_select %p89, %s90, %s91
      %p95 = pneg %p89
      %p96 = scmp.eq.s32.totalorder %s12, 1
      %p97 = por %p95, %p96
      %p98 = scmp.ne.s32.totalorder %s90, %s93
      %p99 = scmp.eq.s32.totalorder %s12, 0
      %p100 = por %p98, %p99
      %p101 = scmp.ne.s32.totalorder %s90, %s93
      %p102 = scmp.eq.s32.totalorder %s17, 1
      %p103 = por %p101, %p102
      %p104 = scmp.ne.s32.totalorder %s93, %s94
      %p105 = scmp.eq.s32.totalorder %s17, 0
      %p106 = por %p104, %p105
      %p107 = scmp.ne.s32.totalorder %s93, %s94
      %p108 = scmp.eq.s32.totalorder %s18, 1
      %p109 = por %p107, %p108
      %p111 = scmp.ne.s32.totalorder %s94, %s110
      %p112 = scmp.eq.s32.totalorder %s18, 0
      %p113 = por %p111, %p112
      %p114 = scmp.le.s32.totalorder 1, %s12
      %p115 = scmp.lt.s32.totalorder %s12, 3
      %p116 = pnand %p114, %p115
      %p117 = pneg %p116
      // Predicated region
      $region9: #{attention_forward.1} parent=5 // pred_check
        _
      $region10: #{attention_forward.1} parent=5 // pred_check_branch
        %119 = sbr.rel (%p116) target = $region12
      $region11: #{attention_forward.1} parent=5 // pred_region
        %s120 = ssub.s32 %s12, 1
        // Predicated region
        $region13: #{attention_forward.1} parent=11 // pred_check
          %p121 = pneg %p59
        $region14: #{attention_forward.1} parent=11 // pred_check_branch
          %123 = sbr.rel (%p121) target = $region16
        $region15: #{attention_forward.1} parent=11 // pred_region
          _
        $region16: #{attention_forward.1} parent=11 // pred_fallthru
          _
        // Predicated region
        $region17: #{attention_forward.1} parent=11 // pred_check
          %p124 = pneg %p80
        $region18: #{attention_forward.1} parent=11 // pred_check_branch
          %126 = sbr.rel (%p124) target = $region20
        $region19: #{attention_forward.1} parent=11 // pred_region
          _
        $region20: #{attention_forward.1} parent=11 // pred_fallthru
          _
      $region12: #{attention_forward.1} parent=5 // pred_fallthru
        _
      %p127 = scmp.lt.s32.totalorder %s12, 2
      // Predicated region
      $region21: #{attention_forward.1} parent=5 // pred_check
        %p128 = pneg %p127
      $region22: #{attention_forward.1} parent=5 // pred_check_branch
        %130 = sbr.rel (%p128) target = $region24
      $region23: #{attention_forward.1} parent=5 // pred_region
        // Predicated region
        $region25: #{attention_forward.1} parent=23 // pred_check
          %p131 = pneg %p32
        $region26: #{attention_forward.1} parent=23 // pred_check_branch
          %133 = sbr.rel (%p131) target = $region28
        $region27: #{attention_forward.1} parent=23 // pred_region
          %s134 = sand.u32 %s22, 1
          %s135 = scalar_lea.sflag [#allocation3], %s134
          %s136 = sand.u32 %s22, 1
          %s137 = smul.addr %s136, 1024
          %s138 = scalar_lea.vmem [#allocation2], %s137
          %s139 = smul.u32 32, %s12
          %141 = vsyncadd %s135, 0
          %s142 = smul.addr %s139, 4
          %s143 = smul.addr %s142, 8
          %s144 = scalar_lea.hbm %s0, %s143
          %s145 = sshll.u32 %s144, 4
          %s146 = int_to_ptr.hbm [resolvable:$true] %s145
          %s147 = sshll.u32 %s138, 4
          %s148 = int_to_ptr.vmem [resolvable:$true] %s147
          %153 = dma.hbm_to_vmem [thread:$0]  %s146, 16384, %s148, %s135, 128, 128, 8
        $region28: #{attention_forward.1} parent=23 // pred_fallthru
          _
      $region24: #{attention_forward.1} parent=5 // pred_fallthru
        _
      %p154 = scmp.le.s32.totalorder 1, %s12
      %p155 = scmp.lt.s32.totalorder %s12, 3
      %p156 = pnand %p154, %p155
      %p157 = pneg %p156
      // Predicated region
      $region29: #{attention_forward.1} parent=5 // pred_check
        _
      $region30: #{attention_forward.1} parent=5 // pred_check_branch
        %159 = sbr.rel (%p156) target = $region32
      $region31: #{attention_forward.1} parent=5 // pred_region
        %s160 = ssub.s32 %s12, 1
        %s161 = sand.u32 %s25, 1
        %s162 = scalar_lea.sflag [#allocation3], %s161
        %s163 = sand.u32 %s25, 1
        %s164 = smul.addr %s163, 1024
        %s165 = scalar_lea.vmem [#allocation2], %s164
        // Predicated region
        $region33: #{attention_forward.1} parent=31 // pred_check
          %p166 = pneg %p38
        $region34: #{attention_forward.1} parent=31 // pred_check_branch
          %168 = sbr.rel (%p166) target = $region36
        $region35: #{attention_forward.1} parent=31 // pred_region
          %170 = dma.done %s162, 16384
        $region36: #{attention_forward.1} parent=31 // pred_fallthru
          _
        %s171 = sand.u32 %s25, 1
        %s172 = scalar_lea.sflag [#allocation3], %s171
        %s173 = sand.u32 %s25, 1
        %s174 = smul.addr %s173, 1024
        %s175 = scalar_lea.vmem [#allocation2], %s174
        %p176 = pneg %p38
        %p177 = pneg %p35
        %p178 = pneg %p59
        %p179 = pneg %p56
        %p180 = pneg %p80
        %p181 = pneg %p77
        %p182 = pneg %p106
        %p183 = pneg %p103
        %s184 = smul.u32 4, %s17
        %p185 = scmp.lt.s32.totalorder %s184, 7
        %s186 = scalar_select %p185, %s184, 7
        %s187 = smul.addr %s186, 8
        %s188 = scalar_lea.vmem %s3, %s187
        %s189 = smul.u32 32, %s17
        %s190 = smul.u32 4, %s17
        %p191 = scmp.lt.s32.totalorder %s190, 7
        %s192 = scalar_select %p191, %s190, 7
        %s193 = smul.addr %s192, 8
        %s194 = scalar_lea.vmem %s3, %s193
        %s195 = smul.u32 4, %s17
        %v196 = vld [vmem:[%s165] sm:$0xff]
        %v197 = vld [vmem:[%s165 + $0x8] sm:$0xff]
        %v198 = vld [vmem:[%s165 + $0x10] sm:$0xff]
        %v199 = vld [vmem:[%s165 + $0x18] sm:$0xff]
        %v200 = vld [vmem:[%s165 + $0x20] sm:$0xff]
        %v201 = vld [vmem:[%s165 + $0x28] sm:$0xff]
        %v202 = vld [vmem:[%s165 + $0x30] sm:$0xff]
        %v203 = vld [vmem:[%s165 + $0x38] sm:$0xff]
        %v204 = vld [vmem:[%s165 + $0x40] sm:$0xff]
        %v205 = vld [vmem:[%s165 + $0x48] sm:$0xff]
        %v206 = vld [vmem:[%s165 + $0x50] sm:$0xff]
        %v207 = vld [vmem:[%s165 + $0x58] sm:$0xff]
        %v208 = vld [vmem:[%s165 + $0x60] sm:$0xff]
        %v209 = vld [vmem:[%s165 + $0x68] sm:$0xff]
        %v210 = vld [vmem:[%s165 + $0x70] sm:$0xff]
        %v211 = vld [vmem:[%s165 + $0x78] sm:$0xff]
        %v212 = vld [vmem:[%s165 + $0x80] sm:$0xff]
        %v213 = vld [vmem:[%s165 + $0x88] sm:$0xff]
        %v214 = vld [vmem:[%s165 + $0x90] sm:$0xff]
        %v215 = vld [vmem:[%s165 + $0x98] sm:$0xff]
        %v216 = vld [vmem:[%s165 + $0xa0] sm:$0xff]
        %v217 = vld [vmem:[%s165 + $0xa8] sm:$0xff]
        %v218 = vld [vmem:[%s165 + $0xb0] sm:$0xff]
        %v219 = vld [vmem:[%s165 + $0xb8] sm:$0xff]
        %v220 = vld [vmem:[%s165 + $0xc0] sm:$0xff]
        %v221 = vld [vmem:[%s165 + $0xc8] sm:$0xff]
        %v222 = vld [vmem:[%s165 + $0xd0] sm:$0xff]
        %v223 = vld [vmem:[%s165 + $0xd8] sm:$0xff]
        %v224 = vld [vmem:[%s165 + $0xe0] sm:$0xff]
        %v225 = vld [vmem:[%s165 + $0xe8] sm:$0xff]
        %v226 = vld [vmem:[%s165 + $0xf0] sm:$0xff]
        %v227 = vld [vmem:[%s165 + $0xf8] sm:$0xff]
        %v228 = vld [vmem:[%s165 + $0x100] sm:$0xff]
        %v229 = vld [vmem:[%s165 + $0x108] sm:$0xff]
        %v230 = vld [vmem:[%s165 + $0x110] sm:$0xff]
        %v231 = vld [vmem:[%s165 + $0x118] sm:$0xff]
        %v232 = vld [vmem:[%s165 + $0x120] sm:$0xff]
        %v233 = vld [vmem:[%s165 + $0x128] sm:$0xff]
        %v234 = vld [vmem:[%s165 + $0x130] sm:$0xff]
        %v235 = vld [vmem:[%s165 + $0x138] sm:$0xff]
        %v236 = vld [vmem:[%s165 + $0x140] sm:$0xff]
        %v237 = vld [vmem:[%s165 + $0x148] sm:$0xff]
        %v238 = vld [vmem:[%s165 + $0x150] sm:$0xff]
        %v239 = vld [vmem:[%s165 + $0x158] sm:$0xff]
        %v240 = vld [vmem:[%s165 + $0x160] sm:$0xff]
        %v241 = vld [vmem:[%s165 + $0x168] sm:$0xff]
        %v242 = vld [vmem:[%s165 + $0x170] sm:$0xff]
        %v243 = vld [vmem:[%s165 + $0x178] sm:$0xff]
        %v244 = vld [vmem:[%s165 + $0x180] sm:$0xff]
        %v245 = vld [vmem:[%s165 + $0x188] sm:$0xff]
        %v246 = vld [vmem:[%s165 + $0x190] sm:$0xff]
        %v247 = vld [vmem:[%s165 + $0x198] sm:$0xff]
        %v248 = vld [vmem:[%s165 + $0x1a0] sm:$0xff]
        %v249 = vld [vmem:[%s165 + $0x1a8] sm:$0xff]
        %v250 = vld [vmem:[%s165 + $0x1b0] sm:$0xff]
        %v251 = vld [vmem:[%s165 + $0x1b8] sm:$0xff]
        %v252 = vld [vmem:[%s165 + $0x1c0] sm:$0xff]
        %v253 = vld [vmem:[%s165 + $0x1c8] sm:$0xff]
        %v254 = vld [vmem:[%s165 + $0x1d0] sm:$0xff]
        %v255 = vld [vmem:[%s165 + $0x1d8] sm:$0xff]
        %v256 = vld [vmem:[%s165 + $0x1e0] sm:$0xff]
        %v257 = vld [vmem:[%s165 + $0x1e8] sm:$0xff]
        %v258 = vld [vmem:[%s165 + $0x1f0] sm:$0xff]
        %v259 = vld [vmem:[%s165 + $0x1f8] sm:$0xff]
        %v260 = vld [vmem:[%s165 + $0x200] sm:$0xff]
        %v261 = vld [vmem:[%s165 + $0x208] sm:$0xff]
        %v262 = vld [vmem:[%s165 + $0x210] sm:$0xff]
        %v263 = vld [vmem:[%s165 + $0x218] sm:$0xff]
        %v264 = vld [vmem:[%s165 + $0x220] sm:$0xff]
        %v265 = vld [vmem:[%s165 + $0x228] sm:$0xff]
        %v266 = vld [vmem:[%s165 + $0x230] sm:$0xff]
        %v267 = vld [vmem:[%s165 + $0x238] sm:$0xff]
        %v268 = vld [vmem:[%s165 + $0x240] sm:$0xff]
        %v269 = vld [vmem:[%s165 + $0x248] sm:$0xff]
        %v270 = vld [vmem:[%s165 + $0x250] sm:$0xff]
        %v271 = vld [vmem:[%s165 + $0x258] sm:$0xff]
        %v272 = vld [vmem:[%s165 + $0x260] sm:$0xff]
        %v273 = vld [vmem:[%s165 + $0x268] sm:$0xff]
        %v274 = vld [vmem:[%s165 + $0x270] sm:$0xff]
        %v275 = vld [vmem:[%s165 + $0x278] sm:$0xff]
        %v276 = vld [vmem:[%s165 + $0x280] sm:$0xff]
        %v277 = vld [vmem:[%s165 + $0x288] sm:$0xff]
        %v278 = vld [vmem:[%s165 + $0x290] sm:$0xff]
        %v279 = vld [vmem:[%s165 + $0x298] sm:$0xff]
        %v280 = vld [vmem:[%s165 + $0x2a0] sm:$0xff]
        %v281 = vld [vmem:[%s165 + $0x2a8] sm:$0xff]
        %v282 = vld [vmem:[%s165 + $0x2b0] sm:$0xff]
        %v283 = vld [vmem:[%s165 + $0x2b8] sm:$0xff]
        %v284 = vld [vmem:[%s165 + $0x2c0] sm:$0xff]
        %v285 = vld [vmem:[%s165 + $0x2c8] sm:$0xff]
        %v286 = vld [vmem:[%s165 + $0x2d0] sm:$0xff]
        %v287 = vld [vmem:[%s165 + $0x2d8] sm:$0xff]
        %v288 = vld [vmem:[%s165 + $0x2e0] sm:$0xff]
        %v289 = vld [vmem:[%s165 + $0x2e8] sm:$0xff]
        %v290 = vld [vmem:[%s165 + $0x2f0] sm:$0xff]
        %v291 = vld [vmem:[%s165 + $0x2f8] sm:$0xff]
        %v292 = vld [vmem:[%s165 + $0x300] sm:$0xff]
        %v293 = vld [vmem:[%s165 + $0x308] sm:$0xff]
        %v294 = vld [vmem:[%s165 + $0x310] sm:$0xff]
        %v295 = vld [vmem:[%s165 + $0x318] sm:$0xff]
        %v296 = vld [vmem:[%s165 + $0x320] sm:$0xff]
        %v297 = vld [vmem:[%s165 + $0x328] sm:$0xff]
        %v298 = vld [vmem:[%s165 + $0x330] sm:$0xff]
        %v299 = vld [vmem:[%s165 + $0x338] sm:$0xff]
        %v300 = vld [vmem:[%s165 + $0x340] sm:$0xff]
        %v301 = vld [vmem:[%s165 + $0x348] sm:$0xff]
        %v302 = vld [vmem:[%s165 + $0x350] sm:$0xff]
        %v303 = vld [vmem:[%s165 + $0x358] sm:$0xff]
        %v304 = vld [vmem:[%s165 + $0x360] sm:$0xff]
        %v305 = vld [vmem:[%s165 + $0x368] sm:$0xff]
        %v306 = vld [vmem:[%s165 + $0x370] sm:$0xff]
        %v307 = vld [vmem:[%s165 + $0x378] sm:$0xff]
        %v308 = vld [vmem:[%s165 + $0x380] sm:$0xff]
        %v309 = vld [vmem:[%s165 + $0x388] sm:$0xff]
        %v310 = vld [vmem:[%s165 + $0x390] sm:$0xff]
        %v311 = vld [vmem:[%s165 + $0x398] sm:$0xff]
        %v312 = vld [vmem:[%s165 + $0x3a0] sm:$0xff]
        %v313 = vld [vmem:[%s165 + $0x3a8] sm:$0xff]
        %v314 = vld [vmem:[%s165 + $0x3b0] sm:$0xff]
        %v315 = vld [vmem:[%s165 + $0x3b8] sm:$0xff]
        %v316 = vld [vmem:[%s165 + $0x3c0] sm:$0xff]
        %v317 = vld [vmem:[%s165 + $0x3c8] sm:$0xff]
        %v318 = vld [vmem:[%s165 + $0x3d0] sm:$0xff]
        %v319 = vld [vmem:[%s165 + $0x3d8] sm:$0xff]
        %v320 = vld [vmem:[%s165 + $0x3e0] sm:$0xff]
        %v321 = vld [vmem:[%s165 + $0x3e8] sm:$0xff]
        %v322 = vld [vmem:[%s165 + $0x3f0] sm:$0xff]
        %v323 = vld [vmem:[%s165 + $0x3f8] sm:$0xff]
        %v324 = vld [vmem:[%s1] sm:$0xff]
        %v325 = vld [vmem:[%s1 + $0x8] sm:$0xff]
        %v326 = vld [vmem:[%s1 + $0x10] sm:$0xff]
        %v327 = vld [vmem:[%s1 + $0x18] sm:$0xff]
        %v328 = vld [vmem:[%s2] sm:$0xff]
        %v329 = vld [vmem:[%s2 + $0x8] sm:$0xff]
        %v330 = vld [vmem:[%s2 + $0x10] sm:$0xff]
        %v331 = vld [vmem:[%s2 + $0x18] sm:$0xff]
        %333 = vset.pattern.permute.xlu0 0
        %334 = vperm.xlu0 %333, %v328
        %v335 = vpop.permute.xlu0 %334
        %338 = vset.pattern.permute.xlu0 0
        %339 = vperm.xlu0 %338, %v329
        %v340 = vpop.permute.xlu0 %339
        %343 = vset.pattern.permute.xlu0 0
        %344 = vperm.xlu0 %343, %v330
        %v345 = vpop.permute.xlu0 %344
        %348 = vset.pattern.permute.xlu0 0
        %349 = vperm.xlu0 %348, %v331
        %v350 = vpop.permute.xlu0 %349
        %vm352 = vcmask 261120
        %v354 = vsel %vm352, %v324, 0
        %v357 = vsel %vm352, %v325, 0
        %v360 = vsel %vm352, %v326, 0
        %v363 = vsel %vm352, %v327, 0
        %365 = vmatpush.msra.mxu0 0.0
        %366 = vmatpush.msra.mxu0 0.0
        %367 = vmatpush.msra.mxu0 0.0
        %368 = vmatpush.msra.mxu0 0.0
        %369 = vmatpush.msra.mxu0 0.0
        %370 = vmatpush.msra.mxu0 0.0
        %371 = vmatpush.msra.mxu0 0.0
        %372 = vmatpush.msra.mxu0 0.0
        %373 = vmatpush.msra.mxu0 0.0
        %374 = vmatpush.msra.mxu0 0.0
        %375 = vmatpush.msra.mxu0 0.0
        %376 = vmatpush.msra.mxu0 0.0
        %377 = vmatpush.msra.mxu0 %v199
        %378 = vmatpush.msra.mxu0 %v198
        %379 = vmatpush.msra.mxu0 %v197
        %380 = vmatpush.msra.mxu0 %v196
        %381 = vmatmul.f32.gmra.mxu0 %v354
        %v382 = vpop.f32.mrf.mxu0
        %v383 = vadd.f32 %v335, %v382
        %384 = vmatmul.f32.gmra.mxu0 %v357
        %v385 = vpop.f32.mrf.mxu0
        %v386 = vadd.f32 %v340, %v385
        %387 = vmatmul.f32.gmra.mxu0 %v360
        %v388 = vpop.f32.mrf.mxu0
        %v389 = vadd.f32 %v345, %v388
        %390 = vmatmul.f32.gmra.mxu0 %v363
        %v391 = vpop.f32.mrf.mxu0
        %v392 = vadd.f32 %v350, %v391
        %393 = vdwg.mxu0
        %394 = vmatpush.msra.mxu0 0.0
        %395 = vmatpush.msra.mxu0 0.0
        %396 = vmatpush.msra.mxu0 0.0
        %397 = vmatpush.msra.mxu0 0.0
        %398 = vmatpush.msra.mxu0 0.0
        %399 = vmatpush.msra.mxu0 0.0
        %400 = vmatpush.msra.mxu0 0.0
        %401 = vmatpush.msra.mxu0 0.0
        %402 = vmatpush.msra.mxu0 0.0
        %403 = vmatpush.msra.mxu0 0.0
        %404 = vmatpush.msra.mxu0 0.0
        %405 = vmatpush.msra.mxu0 0.0
        %406 = vmatpush.msra.mxu0 %v203
        %407 = vmatpush.msra.mxu0 %v202
        %408 = vmatpush.msra.mxu0 %v201
        %409 = vmatpush.msra.mxu0 %v200
        %410 = vmatmul.f32.gmra.mxu0 %v354
        %v411 = vpop.f32.mrf.mxu0
        %v412 = vadd.f32 %v335, %v411
        %413 = vmatmul.f32.gmra.mxu0 %v357
        %v414 = vpop.f32.mrf.mxu0
        %v415 = vadd.f32 %v340, %v414
        %416 = vmatmul.f32.gmra.mxu0 %v360
        %v417 = vpop.f32.mrf.mxu0
        %v418 = vadd.f32 %v345, %v417
        %419 = vmatmul.f32.gmra.mxu0 %v363
        %v420 = vpop.f32.mrf.mxu0
        %v421 = vadd.f32 %v350, %v420
        %422 = vdwg.mxu0
        %423 = vmatpush.msra.mxu0 0.0
        %424 = vmatpush.msra.mxu0 0.0
        %425 = vmatpush.msra.mxu0 0.0
        %426 = vmatpush.msra.mxu0 0.0
        %427 = vmatpush.msra.mxu0 0.0
        %428 = vmatpush.msra.mxu0 0.0
        %429 = vmatpush.msra.mxu0 0.0
        %430 = vmatpush.msra.mxu0 0.0
        %431 = vmatpush.msra.mxu0 0.0
        %432 = vmatpush.msra.mxu0 0.0
        %433 = vmatpush.msra.mxu0 0.0
        %434 = vmatpush.msra.mxu0 0.0
        %435 = vmatpush.msra.mxu0 %v207
        %436 = vmatpush.msra.mxu0 %v206
        %437 = vmatpush.msra.mxu0 %v205
        %438 = vmatpush.msra.mxu0 %v204
        %439 = vmatmul.f32.gmra.mxu0 %v354
        %v440 = vpop.f32.mrf.mxu0
        %v441 = vadd.f32 %v335, %v440
        %442 = vmatmul.f32.gmra.mxu0 %v357
        %v443 = vpop.f32.mrf.mxu0
        %v444 = vadd.f32 %v340, %v443
        %445 = vmatmul.f32.gmra.mxu0 %v360
        %v446 = vpop.f32.mrf.mxu0
        %v447 = vadd.f32 %v345, %v446
        %448 = vmatmul.f32.gmra.mxu0 %v363
        %v449 = vpop.f32.mrf.mxu0
        %v450 = vadd.f32 %v350, %v449
        %451 = vdwg.mxu0
        %452 = vmatpush.msra.mxu0 0.0
        %453 = vmatpush.msra.mxu0 0.0
        %454 = vmatpush.msra.mxu0 0.0
        %455 = vmatpush.msra.mxu0 0.0
        %456 = vmatpush.msra.mxu0 0.0
        %457 = vmatpush.msra.mxu0 0.0
        %458 = vmatpush.msra.mxu0 0.0
        %459 = vmatpush.msra.mxu0 0.0
        %460 = vmatpush.msra.mxu0 0.0
        %461 = vmatpush.msra.mxu0 0.0
        %462 = vmatpush.msra.mxu0 0.0
        %463 = vmatpush.msra.mxu0 0.0
        %464 = vmatpush.msra.mxu0 %v211
        %465 = vmatpush.msra.mxu0 %v210
        %466 = vmatpush.msra.mxu0 %v209
        %467 = vmatpush.msra.mxu0 %v208
        %468 = vmatmul.f32.gmra.mxu0 %v354
        %v469 = vpop.f32.mrf.mxu0
        %v470 = vadd.f32 %v335, %v469
        %471 = vmatmul.f32.gmra.mxu0 %v357
        %v472 = vpop.f32.mrf.mxu0
        %v473 = vadd.f32 %v340, %v472
        %474 = vmatmul.f32.gmra.mxu0 %v360
        %v475 = vpop.f32.mrf.mxu0
        %v476 = vadd.f32 %v345, %v475
        %477 = vmatmul.f32.gmra.mxu0 %v363
        %v478 = vpop.f32.mrf.mxu0
        %v479 = vadd.f32 %v350, %v478
        %480 = vdwg.mxu0
        %481 = vmatpush.msra.mxu0 0.0
        %482 = vmatpush.msra.mxu0 0.0
        %483 = vmatpush.msra.mxu0 0.0
        %484 = vmatpush.msra.mxu0 0.0
        %485 = vmatpush.msra.mxu0 0.0
        %486 = vmatpush.msra.mxu0 0.0
        %487 = vmatpush.msra.mxu0 0.0
        %488 = vmatpush.msra.mxu0 0.0
        %489 = vmatpush.msra.mxu0 0.0
        %490 = vmatpush.msra.mxu0 0.0
        %491 = vmatpush.msra.mxu0 0.0
        %492 = vmatpush.msra.mxu0 0.0
        %493 = vmatpush.msra.mxu0 %v215
        %494 = vmatpush.msra.mxu0 %v214
        %495 = vmatpush.msra.mxu0 %v213
        %496 = vmatpush.msra.mxu0 %v212
        %497 = vmatmul.f32.gmra.mxu0 %v354
        %v498 = vpop.f32.mrf.mxu0
        %v499 = vadd.f32 %v335, %v498
        %500 = vmatmul.f32.gmra.mxu0 %v357
        %v501 = vpop.f32.mrf.mxu0
        %v502 = vadd.f32 %v340, %v501
        %503 = vmatmul.f32.gmra.mxu0 %v360
        %v504 = vpop.f32.mrf.mxu0
        %v505 = vadd.f32 %v345, %v504
        %506 = vmatmul.f32.gmra.mxu0 %v363
        %v507 = vpop.f32.mrf.mxu0
        %v508 = vadd.f32 %v350, %v507
        %509 = vdwg.mxu0
        %510 = vmatpush.msra.mxu0 0.0
        %511 = vmatpush.msra.mxu0 0.0
        %512 = vmatpush.msra.mxu0 0.0
        %513 = vmatpush.msra.mxu0 0.0
        %514 = vmatpush.msra.mxu0 0.0
        %515 = vmatpush.msra.mxu0 0.0
        %516 = vmatpush.msra.mxu0 0.0
        %517 = vmatpush.msra.mxu0 0.0
        %518 = vmatpush.msra.mxu0 0.0
        %519 = vmatpush.msra.mxu0 0.0
        %520 = vmatpush.msra.mxu0 0.0
        %521 = vmatpush.msra.mxu0 0.0
        %522 = vmatpush.msra.mxu0 %v219
        %523 = vmatpush.msra.mxu0 %v218
        %524 = vmatpush.msra.mxu0 %v217
        %525 = vmatpush.msra.mxu0 %v216
        %526 = vmatmul.f32.gmra.mxu0 %v354
        %v527 = vpop.f32.mrf.mxu0
        %v528 = vadd.f32 %v335, %v527
        %529 = vmatmul.f32.gmra.mxu0 %v357
        %v530 = vpop.f32.mrf.mxu0
        %v531 = vadd.f32 %v340, %v530
        %532 = vmatmul.f32.gmra.mxu0 %v360
        %v533 = vpop.f32.mrf.mxu0
        %v534 = vadd.f32 %v345, %v533
        %535 = vmatmul.f32.gmra.mxu0 %v363
        %v536 = vpop.f32.mrf.mxu0
        %v537 = vadd.f32 %v350, %v536
        %538 = vdwg.mxu0
        %539 = vmatpush.msra.mxu0 0.0
        %540 = vmatpush.msra.mxu0 0.0
        %541 = vmatpush.msra.mxu0 0.0
        %542 = vmatpush.msra.mxu0 0.0
        %543 = vmatpush.msra.mxu0 0.0
        %544 = vmatpush.msra.mxu0 0.0
        %545 = vmatpush.msra.mxu0 0.0
        %546 = vmatpush.msra.mxu0 0.0
        %547 = vmatpush.msra.mxu0 0.0
        %548 = vmatpush.msra.mxu0 0.0
        %549 = vmatpush.msra.mxu0 0.0
        %550 = vmatpush.msra.mxu0 0.0
        %551 = vmatpush.msra.mxu0 %v223
        %552 = vmatpush.msra.mxu0 %v222
        %553 = vmatpush.msra.mxu0 %v221
        %554 = vmatpush.msra.mxu0 %v220
        %555 = vmatmul.f32.gmra.mxu0 %v354
        %v556 = vpop.f32.mrf.mxu0
        %v557 = vadd.f32 %v335, %v556
        %558 = vmatmul.f32.gmra.mxu0 %v357
        %v559 = vpop.f32.mrf.mxu0
        %v560 = vadd.f32 %v340, %v559
        %561 = vmatmul.f32.gmra.mxu0 %v360
        %v562 = vpop.f32.mrf.mxu0
        %v563 = vadd.f32 %v345, %v562
        %564 = vmatmul.f32.gmra.mxu0 %v363
        %v565 = vpop.f32.mrf.mxu0
        %v566 = vadd.f32 %v350, %v565
        %567 = vdwg.mxu0
        %568 = vmatpush.msra.mxu0 0.0
        %569 = vmatpush.msra.mxu0 0.0
        %570 = vmatpush.msra.mxu0 0.0
        %571 = vmatpush.msra.mxu0 0.0
        %572 = vmatpush.msra.mxu0 0.0
        %573 = vmatpush.msra.mxu0 0.0
        %574 = vmatpush.msra.mxu0 0.0
        %575 = vmatpush.msra.mxu0 0.0
        %576 = vmatpush.msra.mxu0 0.0
        %577 = vmatpush.msra.mxu0 0.0
        %578 = vmatpush.msra.mxu0 0.0
        %579 = vmatpush.msra.mxu0 0.0
        %580 = vmatpush.msra.mxu0 %v227
        %581 = vmatpush.msra.mxu0 %v226
        %582 = vmatpush.msra.mxu0 %v225
        %583 = vmatpush.msra.mxu0 %v224
        %584 = vmatmul.f32.gmra.mxu0 %v354
        %v585 = vpop.f32.mrf.mxu0
        %v586 = vadd.f32 %v335, %v585
        %587 = vmatmul.f32.gmra.mxu0 %v357
        %v588 = vpop.f32.mrf.mxu0
        %v589 = vadd.f32 %v340, %v588
        %590 = vmatmul.f32.gmra.mxu0 %v360
        %v591 = vpop.f32.mrf.mxu0
        %v592 = vadd.f32 %v345, %v591
        %593 = vmatmul.f32.gmra.mxu0 %v363
        %v594 = vpop.f32.mrf.mxu0
        %v595 = vadd.f32 %v350, %v594
        %596 = vdwg.mxu0
        %597 = vmatpush.msra.mxu0 0.0
        %598 = vmatpush.msra.mxu0 0.0
        %599 = vmatpush.msra.mxu0 0.0
        %600 = vmatpush.msra.mxu0 0.0
        %601 = vmatpush.msra.mxu0 0.0
        %602 = vmatpush.msra.mxu0 0.0
        %603 = vmatpush.msra.mxu0 0.0
        %604 = vmatpush.msra.mxu0 0.0
        %605 = vmatpush.msra.mxu0 0.0
        %606 = vmatpush.msra.mxu0 0.0
        %607 = vmatpush.msra.mxu0 0.0
        %608 = vmatpush.msra.mxu0 0.0
        %609 = vmatpush.msra.mxu0 %v231
        %610 = vmatpush.msra.mxu0 %v230
        %611 = vmatpush.msra.mxu0 %v229
        %612 = vmatpush.msra.mxu0 %v228
        %613 = vmatmul.f32.gmra.mxu0 %v354
        %v614 = vpop.f32.mrf.mxu0
        %v615 = vadd.f32 %v335, %v614
        %616 = vmatmul.f32.gmra.mxu0 %v357
        %v617 = vpop.f32.mrf.mxu0
        %v618 = vadd.f32 %v340, %v617
        %619 = vmatmul.f32.gmra.mxu0 %v360
        %v620 = vpop.f32.mrf.mxu0
        %v621 = vadd.f32 %v345, %v620
        %622 = vmatmul.f32.gmra.mxu0 %v363
        %v623 = vpop.f32.mrf.mxu0
        %v624 = vadd.f32 %v350, %v623
        %625 = vdwg.mxu0
        %626 = vmatpush.msra.mxu0 0.0
        %627 = vmatpush.msra.mxu0 0.0
        %628 = vmatpush.msra.mxu0 0.0
        %629 = vmatpush.msra.mxu0 0.0
        %630 = vmatpush.msra.mxu0 0.0
        %631 = vmatpush.msra.mxu0 0.0
        %632 = vmatpush.msra.mxu0 0.0
        %633 = vmatpush.msra.mxu0 0.0
        %634 = vmatpush.msra.mxu0 0.0
        %635 = vmatpush.msra.mxu0 0.0
        %636 = vmatpush.msra.mxu0 0.0
        %637 = vmatpush.msra.mxu0 0.0
        %638 = vmatpush.msra.mxu0 %v235
        %639 = vmatpush.msra.mxu0 %v234
        %640 = vmatpush.msra.mxu0 %v233
        %641 = vmatpush.msra.mxu0 %v232
        %642 = vmatmul.f32.gmra.mxu0 %v354
        %v643 = vpop.f32.mrf.mxu0
        %v644 = vadd.f32 %v335, %v643
        %645 = vmatmul.f32.gmra.mxu0 %v357
        %v646 = vpop.f32.mrf.mxu0
        %v647 = vadd.f32 %v340, %v646
        %648 = vmatmul.f32.gmra.mxu0 %v360
        %v649 = vpop.f32.mrf.mxu0
        %v650 = vadd.f32 %v345, %v649
        %651 = vmatmul.f32.gmra.mxu0 %v363
        %v652 = vpop.f32.mrf.mxu0
        %v653 = vadd.f32 %v350, %v652
        %654 = vdwg.mxu0
        %655 = vmatpush.msra.mxu0 0.0
        %656 = vmatpush.msra.mxu0 0.0
        %657 = vmatpush.msra.mxu0 0.0
        %658 = vmatpush.msra.mxu0 0.0
        %659 = vmatpush.msra.mxu0 0.0
        %660 = vmatpush.msra.mxu0 0.0
        %661 = vmatpush.msra.mxu0 0.0
        %662 = vmatpush.msra.mxu0 0.0
        %663 = vmatpush.msra.mxu0 0.0
        %664 = vmatpush.msra.mxu0 0.0
        %665 = vmatpush.msra.mxu0 0.0
        %666 = vmatpush.msra.mxu0 0.0
        %667 = vmatpush.msra.mxu0 %v239
        %668 = vmatpush.msra.mxu0 %v238
        %669 = vmatpush.msra.mxu0 %v237
        %670 = vmatpush.msra.mxu0 %v236
        %671 = vmatmul.f32.gmra.mxu0 %v354
        %v672 = vpop.f32.mrf.mxu0
        %v673 = vadd.f32 %v335, %v672
        %674 = vmatmul.f32.gmra.mxu0 %v357
        %v675 = vpop.f32.mrf.mxu0
        %v676 = vadd.f32 %v340, %v675
        %677 = vmatmul.f32.gmra.mxu0 %v360
        %v678 = vpop.f32.mrf.mxu0
        %v679 = vadd.f32 %v345, %v678
        %680 = vmatmul.f32.gmra.mxu0 %v363
        %v681 = vpop.f32.mrf.mxu0
        %v682 = vadd.f32 %v350, %v681
        %683 = vdwg.mxu0
        %684 = vmatpush.msra.mxu0 0.0
        %685 = vmatpush.msra.mxu0 0.0
        %686 = vmatpush.msra.mxu0 0.0
        %687 = vmatpush.msra.mxu0 0.0
        %688 = vmatpush.msra.mxu0 0.0
        %689 = vmatpush.msra.mxu0 0.0
        %690 = vmatpush.msra.mxu0 0.0
        %691 = vmatpush.msra.mxu0 0.0
        %692 = vmatpush.msra.mxu0 0.0
        %693 = vmatpush.msra.mxu0 0.0
        %694 = vmatpush.msra.mxu0 0.0
        %695 = vmatpush.msra.mxu0 0.0
        %696 = vmatpush.msra.mxu0 %v243
        %697 = vmatpush.msra.mxu0 %v242
        %698 = vmatpush.msra.mxu0 %v241
        %699 = vmatpush.msra.mxu0 %v240
        %700 = vmatmul.f32.gmra.mxu0 %v354
        %v701 = vpop.f32.mrf.mxu0
        %v702 = vadd.f32 %v335, %v701
        %703 = vmatmul.f32.gmra.mxu0 %v357
        %v704 = vpop.f32.mrf.mxu0
        %v705 = vadd.f32 %v340, %v704
        %706 = vmatmul.f32.gmra.mxu0 %v360
        %v707 = vpop.f32.mrf.mxu0
        %v708 = vadd.f32 %v345, %v707
        %709 = vmatmul.f32.gmra.mxu0 %v363
        %v710 = vpop.f32.mrf.mxu0
        %v711 = vadd.f32 %v350, %v710
        %712 = vdwg.mxu0
        %713 = vmatpush.msra.mxu0 0.0
        %714 = vmatpush.msra.mxu0 0.0
        %715 = vmatpush.msra.mxu0 0.0
        %716 = vmatpush.msra.mxu0 0.0
        %717 = vmatpush.msra.mxu0 0.0
        %718 = vmatpush.msra.mxu0 0.0
        %719 = vmatpush.msra.mxu0 0.0
        %720 = vmatpush.msra.mxu0 0.0
        %721 = vmatpush.msra.mxu0 0.0
        %722 = vmatpush.msra.mxu0 0.0
        %723 = vmatpush.msra.mxu0 0.0
        %724 = vmatpush.msra.mxu0 0.0
        %725 = vmatpush.msra.mxu0 %v247
        %726 = vmatpush.msra.mxu0 %v246
        %727 = vmatpush.msra.mxu0 %v245
        %728 = vmatpush.msra.mxu0 %v244
        %729 = vmatmul.f32.gmra.mxu0 %v354
        %v730 = vpop.f32.mrf.mxu0
        %v731 = vadd.f32 %v335, %v730
        %732 = vmatmul.f32.gmra.mxu0 %v357
        %v733 = vpop.f32.mrf.mxu0
        %v734 = vadd.f32 %v340, %v733
        %735 = vmatmul.f32.gmra.mxu0 %v360
        %v736 = vpop.f32.mrf.mxu0
        %v737 = vadd.f32 %v345, %v736
        %738 = vmatmul.f32.gmra.mxu0 %v363
        %v739 = vpop.f32.mrf.mxu0
        %v740 = vadd.f32 %v350, %v739
        %741 = vdwg.mxu0
        %742 = vmatpush.msra.mxu0 0.0
        %743 = vmatpush.msra.mxu0 0.0
        %744 = vmatpush.msra.mxu0 0.0
        %745 = vmatpush.msra.mxu0 0.0
        %746 = vmatpush.msra.mxu0 0.0
        %747 = vmatpush.msra.mxu0 0.0
        %748 = vmatpush.msra.mxu0 0.0
        %749 = vmatpush.msra.mxu0 0.0
        %750 = vmatpush.msra.mxu0 0.0
        %751 = vmatpush.msra.mxu0 0.0
        %752 = vmatpush.msra.mxu0 0.0
        %753 = vmatpush.msra.mxu0 0.0
        %754 = vmatpush.msra.mxu0 %v251
        %755 = vmatpush.msra.mxu0 %v250
        %756 = vmatpush.msra.mxu0 %v249
        %757 = vmatpush.msra.mxu0 %v248
        %758 = vmatmul.f32.gmra.mxu0 %v354
        %v759 = vpop.f32.mrf.mxu0
        %v760 = vadd.f32 %v335, %v759
        %761 = vmatmul.f32.gmra.mxu0 %v357
        %v762 = vpop.f32.mrf.mxu0
        %v763 = vadd.f32 %v340, %v762
        %764 = vmatmul.f32.gmra.mxu0 %v360
        %v765 = vpop.f32.mrf.mxu0
        %v766 = vadd.f32 %v345, %v765
        %767 = vmatmul.f32.gmra.mxu0 %v363
        %v768 = vpop.f32.mrf.mxu0
        %v769 = vadd.f32 %v350, %v768
        %770 = vdwg.mxu0
        %771 = vmatpush.msra.mxu0 0.0
        %772 = vmatpush.msra.mxu0 0.0
        %773 = vmatpush.msra.mxu0 0.0
        %774 = vmatpush.msra.mxu0 0.0
        %775 = vmatpush.msra.mxu0 0.0
        %776 = vmatpush.msra.mxu0 0.0
        %777 = vmatpush.msra.mxu0 0.0
        %778 = vmatpush.msra.mxu0 0.0
        %779 = vmatpush.msra.mxu0 0.0
        %780 = vmatpush.msra.mxu0 0.0
        %781 = vmatpush.msra.mxu0 0.0
        %782 = vmatpush.msra.mxu0 0.0
        %783 = vmatpush.msra.mxu0 %v255
        %784 = vmatpush.msra.mxu0 %v254
        %785 = vmatpush.msra.mxu0 %v253
        %786 = vmatpush.msra.mxu0 %v252
        %787 = vmatmul.f32.gmra.mxu0 %v354
        %v788 = vpop.f32.mrf.mxu0
        %v789 = vadd.f32 %v335, %v788
        %790 = vmatmul.f32.gmra.mxu0 %v357
        %v791 = vpop.f32.mrf.mxu0
        %v792 = vadd.f32 %v340, %v791
        %793 = vmatmul.f32.gmra.mxu0 %v360
        %v794 = vpop.f32.mrf.mxu0
        %v795 = vadd.f32 %v345, %v794
        %796 = vmatmul.f32.gmra.mxu0 %v363
        %v797 = vpop.f32.mrf.mxu0
        %v798 = vadd.f32 %v350, %v797
        %799 = vdwg.mxu0
        %800 = vmatpush.msra.mxu0 0.0
        %801 = vmatpush.msra.mxu0 0.0
        %802 = vmatpush.msra.mxu0 0.0
        %803 = vmatpush.msra.mxu0 0.0
        %804 = vmatpush.msra.mxu0 0.0
        %805 = vmatpush.msra.mxu0 0.0
        %806 = vmatpush.msra.mxu0 0.0
        %807 = vmatpush.msra.mxu0 0.0
        %808 = vmatpush.msra.mxu0 0.0
        %809 = vmatpush.msra.mxu0 0.0
        %810 = vmatpush.msra.mxu0 0.0
        %811 = vmatpush.msra.mxu0 0.0
        %812 = vmatpush.msra.mxu0 %v259
        %813 = vmatpush.msra.mxu0 %v258
        %814 = vmatpush.msra.mxu0 %v257
        %815 = vmatpush.msra.mxu0 %v256
        %816 = vmatmul.f32.gmra.mxu0 %v354
        %v817 = vpop.f32.mrf.mxu0
        %v818 = vadd.f32 %v335, %v817
        %819 = vmatmul.f32.gmra.mxu0 %v357
        %v820 = vpop.f32.mrf.mxu0
        %v821 = vadd.f32 %v340, %v820
        %822 = vmatmul.f32.gmra.mxu0 %v360
        %v823 = vpop.f32.mrf.mxu0
        %v824 = vadd.f32 %v345, %v823
        %825 = vmatmul.f32.gmra.mxu0 %v363
        %v826 = vpop.f32.mrf.mxu0
        %v827 = vadd.f32 %v350, %v826
        %828 = vdwg.mxu0
        %829 = vmatpush.msra.mxu0 0.0
        %830 = vmatpush.msra.mxu0 0.0
        %831 = vmatpush.msra.mxu0 0.0
        %832 = vmatpush.msra.mxu0 0.0
        %833 = vmatpush.msra.mxu0 0.0
        %834 = vmatpush.msra.mxu0 0.0
        %835 = vmatpush.msra.mxu0 0.0
        %836 = vmatpush.msra.mxu0 0.0
        %837 = vmatpush.msra.mxu0 0.0
        %838 = vmatpush.msra.mxu0 0.0
        %839 = vmatpush.msra.mxu0 0.0
        %840 = vmatpush.msra.mxu0 0.0
        %841 = vmatpush.msra.mxu0 %v263
        %842 = vmatpush.msra.mxu0 %v262
        %843 = vmatpush.msra.mxu0 %v261
        %844 = vmatpush.msra.mxu0 %v260
        %845 = vmatmul.f32.gmra.mxu0 %v354
        %v846 = vpop.f32.mrf.mxu0
        %v847 = vadd.f32 %v335, %v846
        %848 = vmatmul.f32.gmra.mxu0 %v357
        %v849 = vpop.f32.mrf.mxu0
        %v850 = vadd.f32 %v340, %v849
        %851 = vmatmul.f32.gmra.mxu0 %v360
        %v852 = vpop.f32.mrf.mxu0
        %v853 = vadd.f32 %v345, %v852
        %854 = vmatmul.f32.gmra.mxu0 %v363
        %v855 = vpop.f32.mrf.mxu0
        %v856 = vadd.f32 %v350, %v855
        %857 = vdwg.mxu0
        %858 = vmatpush.msra.mxu0 0.0
        %859 = vmatpush.msra.mxu0 0.0
        %860 = vmatpush.msra.mxu0 0.0
        %861 = vmatpush.msra.mxu0 0.0
        %862 = vmatpush.msra.mxu0 0.0
        %863 = vmatpush.msra.mxu0 0.0
        %864 = vmatpush.msra.mxu0 0.0
        %865 = vmatpush.msra.mxu0 0.0
        %866 = vmatpush.msra.mxu0 0.0
        %867 = vmatpush.msra.mxu0 0.0
        %868 = vmatpush.msra.mxu0 0.0
        %869 = vmatpush.msra.mxu0 0.0
        %870 = vmatpush.msra.mxu0 %v267
        %871 = vmatpush.msra.mxu0 %v266
        %872 = vmatpush.msra.mxu0 %v265
        %873 = vmatpush.msra.mxu0 %v264
        %874 = vmatmul.f32.gmra.mxu0 %v354
        %v875 = vpop.f32.mrf.mxu0
        %v876 = vadd.f32 %v335, %v875
        %877 = vmatmul.f32.gmra.mxu0 %v357
        %v878 = vpop.f32.mrf.mxu0
        %v879 = vadd.f32 %v340, %v878
        %880 = vmatmul.f32.gmra.mxu0 %v360
        %v881 = vpop.f32.mrf.mxu0
        %v882 = vadd.f32 %v345, %v881
        %883 = vmatmul.f32.gmra.mxu0 %v363
        %v884 = vpop.f32.mrf.mxu0
        %v885 = vadd.f32 %v350, %v884
        %886 = vdwg.mxu0
        %887 = vmatpush.msra.mxu0 0.0
        %888 = vmatpush.msra.mxu0 0.0
        %889 = vmatpush.msra.mxu0 0.0
        %890 = vmatpush.msra.mxu0 0.0
        %891 = vmatpush.msra.mxu0 0.0
        %892 = vmatpush.msra.mxu0 0.0
        %893 = vmatpush.msra.mxu0 0.0
        %894 = vmatpush.msra.mxu0 0.0
        %895 = vmatpush.msra.mxu0 0.0
        %896 = vmatpush.msra.mxu0 0.0
        %897 = vmatpush.msra.mxu0 0.0
        %898 = vmatpush.msra.mxu0 0.0
        %899 = vmatpush.msra.mxu0 %v271
        %900 = vmatpush.msra.mxu0 %v270
        %901 = vmatpush.msra.mxu0 %v269
        %902 = vmatpush.msra.mxu0 %v268
        %903 = vmatmul.f32.gmra.mxu0 %v354
        %v904 = vpop.f32.mrf.mxu0
        %v905 = vadd.f32 %v335, %v904
        %906 = vmatmul.f32.gmra.mxu0 %v357
        %v907 = vpop.f32.mrf.mxu0
        %v908 = vadd.f32 %v340, %v907
        %909 = vmatmul.f32.gmra.mxu0 %v360
        %v910 = vpop.f32.mrf.mxu0
        %v911 = vadd.f32 %v345, %v910
        %912 = vmatmul.f32.gmra.mxu0 %v363
        %v913 = vpop.f32.mrf.mxu0
        %v914 = vadd.f32 %v350, %v913
        %915 = vdwg.mxu0
        %916 = vmatpush.msra.mxu0 0.0
        %917 = vmatpush.msra.mxu0 0.0
        %918 = vmatpush.msra.mxu0 0.0
        %919 = vmatpush.msra.mxu0 0.0
        %920 = vmatpush.msra.mxu0 0.0
        %921 = vmatpush.msra.mxu0 0.0
        %922 = vmatpush.msra.mxu0 0.0
        %923 = vmatpush.msra.mxu0 0.0
        %924 = vmatpush.msra.mxu0 0.0
        %925 = vmatpush.msra.mxu0 0.0
        %926 = vmatpush.msra.mxu0 0.0
        %927 = vmatpush.msra.mxu0 0.0
        %928 = vmatpush.msra.mxu0 %v275
        %929 = vmatpush.msra.mxu0 %v274
        %930 = vmatpush.msra.mxu0 %v273
        %931 = vmatpush.msra.mxu0 %v272
        %932 = vmatmul.f32.gmra.mxu0 %v354
        %v933 = vpop.f32.mrf.mxu0
        %v934 = vadd.f32 %v335, %v933
        %935 = vmatmul.f32.gmra.mxu0 %v357
        %v936 = vpop.f32.mrf.mxu0
        %v937 = vadd.f32 %v340, %v936
        %938 = vmatmul.f32.gmra.mxu0 %v360
        %v939 = vpop.f32.mrf.mxu0
        %v940 = vadd.f32 %v345, %v939
        %941 = vmatmul.f32.gmra.mxu0 %v363
        %v942 = vpop.f32.mrf.mxu0
        %v943 = vadd.f32 %v350, %v942
        %944 = vdwg.mxu0
        %945 = vmatpush.msra.mxu0 0.0
        %946 = vmatpush.msra.mxu0 0.0
        %947 = vmatpush.msra.mxu0 0.0
        %948 = vmatpush.msra.mxu0 0.0
        %949 = vmatpush.msra.mxu0 0.0
        %950 = vmatpush.msra.mxu0 0.0
        %951 = vmatpush.msra.mxu0 0.0
        %952 = vmatpush.msra.mxu0 0.0
        %953 = vmatpush.msra.mxu0 0.0
        %954 = vmatpush.msra.mxu0 0.0
        %955 = vmatpush.msra.mxu0 0.0
        %956 = vmatpush.msra.mxu0 0.0
        %957 = vmatpush.msra.mxu0 %v279
        %958 = vmatpush.msra.mxu0 %v278
        %959 = vmatpush.msra.mxu0 %v277
        %960 = vmatpush.msra.mxu0 %v276
        %961 = vmatmul.f32.gmra.mxu0 %v354
        %v962 = vpop.f32.mrf.mxu0
        %v963 = vadd.f32 %v335, %v962
        %964 = vmatmul.f32.gmra.mxu0 %v357
        %v965 = vpop.f32.mrf.mxu0
        %v966 = vadd.f32 %v340, %v965
        %967 = vmatmul.f32.gmra.mxu0 %v360
        %v968 = vpop.f32.mrf.mxu0
        %v969 = vadd.f32 %v345, %v968
        %970 = vmatmul.f32.gmra.mxu0 %v363
        %v971 = vpop.f32.mrf.mxu0
        %v972 = vadd.f32 %v350, %v971
        %973 = vdwg.mxu0
        %974 = vmatpush.msra.mxu0 0.0
        %975 = vmatpush.msra.mxu0 0.0
        %976 = vmatpush.msra.mxu0 0.0
        %977 = vmatpush.msra.mxu0 0.0
        %978 = vmatpush.msra.mxu0 0.0
        %979 = vmatpush.msra.mxu0 0.0
        %980 = vmatpush.msra.mxu0 0.0
        %981 = vmatpush.msra.mxu0 0.0
        %982 = vmatpush.msra.mxu0 0.0
        %983 = vmatpush.msra.mxu0 0.0
        %984 = vmatpush.msra.mxu0 0.0
        %985 = vmatpush.msra.mxu0 0.0
        %986 = vmatpush.msra.mxu0 %v283
        %987 = vmatpush.msra.mxu0 %v282
        %988 = vmatpush.msra.mxu0 %v281
        %989 = vmatpush.msra.mxu0 %v280
        %990 = vmatmul.f32.gmra.mxu0 %v354
        %v991 = vpop.f32.mrf.mxu0
        %v992 = vadd.f32 %v335, %v991
        %993 = vmatmul.f32.gmra.mxu0 %v357
        %v994 = vpop.f32.mrf.mxu0
        %v995 = vadd.f32 %v340, %v994
        %996 = vmatmul.f32.gmra.mxu0 %v360
        %v997 = vpop.f32.mrf.mxu0
        %v998 = vadd.f32 %v345, %v997
        %999 = vmatmul.f32.gmra.mxu0 %v363
        %v1000 = vpop.f32.mrf.mxu0
        %v1001 = vadd.f32 %v350, %v1000
        %1002 = vdwg.mxu0
        %1003 = vmatpush.msra.mxu0 0.0
        %1004 = vmatpush.msra.mxu0 0.0
        %1005 = vmatpush.msra.mxu0 0.0
        %1006 = vmatpush.msra.mxu0 0.0
        %1007 = vmatpush.msra.mxu0 0.0
        %1008 = vmatpush.msra.mxu0 0.0
        %1009 = vmatpush.msra.mxu0 0.0
        %1010 = vmatpush.msra.mxu0 0.0
        %1011 = vmatpush.msra.mxu0 0.0
        %1012 = vmatpush.msra.mxu0 0.0
        %1013 = vmatpush.msra.mxu0 0.0
        %1014 = vmatpush.msra.mxu0 0.0
        %1015 = vmatpush.msra.mxu0 %v287
        %1016 = vmatpush.msra.mxu0 %v286
        %1017 = vmatpush.msra.mxu0 %v285
        %1018 = vmatpush.msra.mxu0 %v284
        %1019 = vmatmul.f32.gmra.mxu0 %v354
        %v1020 = vpop.f32.mrf.mxu0
        %v1021 = vadd.f32 %v335, %v1020
        %1022 = vmatmul.f32.gmra.mxu0 %v357
        %v1023 = vpop.f32.mrf.mxu0
        %v1024 = vadd.f32 %v340, %v1023
        %1025 = vmatmul.f32.gmra.mxu0 %v360
        %v1026 = vpop.f32.mrf.mxu0
        %v1027 = vadd.f32 %v345, %v1026
        %1028 = vmatmul.f32.gmra.mxu0 %v363
        %v1029 = vpop.f32.mrf.mxu0
        %v1030 = vadd.f32 %v350, %v1029
        %1031 = vdwg.mxu0
        %1032 = vmatpush.msra.mxu0 0.0
        %1033 = vmatpush.msra.mxu0 0.0
        %1034 = vmatpush.msra.mxu0 0.0
        %1035 = vmatpush.msra.mxu0 0.0
        %1036 = vmatpush.msra.mxu0 0.0
        %1037 = vmatpush.msra.mxu0 0.0
        %1038 = vmatpush.msra.mxu0 0.0
        %1039 = vmatpush.msra.mxu0 0.0
        %1040 = vmatpush.msra.mxu0 0.0
        %1041 = vmatpush.msra.mxu0 0.0
        %1042 = vmatpush.msra.mxu0 0.0
        %1043 = vmatpush.msra.mxu0 0.0
        %1044 = vmatpush.msra.mxu0 %v291
        %1045 = vmatpush.msra.mxu0 %v290
        %1046 = vmatpush.msra.mxu0 %v289
        %1047 = vmatpush.msra.mxu0 %v288
        %1048 = vmatmul.f32.gmra.mxu0 %v354
        %v1049 = vpop.f32.mrf.mxu0
        %v1050 = vadd.f32 %v335, %v1049
        %1051 = vmatmul.f32.gmra.mxu0 %v357
        %v1052 = vpop.f32.mrf.mxu0
        %v1053 = vadd.f32 %v340, %v1052
        %1054 = vmatmul.f32.gmra.mxu0 %v360
        %v1055 = vpop.f32.mrf.mxu0
        %v1056 = vadd.f32 %v345, %v1055
        %1057 = vmatmul.f32.gmra.mxu0 %v363
        %v1058 = vpop.f32.mrf.mxu0
        %v1059 = vadd.f32 %v350, %v1058
        %1060 = vdwg.mxu0
        %1061 = vmatpush.msra.mxu0 0.0
        %1062 = vmatpush.msra.mxu0 0.0
        %1063 = vmatpush.msra.mxu0 0.0
        %1064 = vmatpush.msra.mxu0 0.0
        %1065 = vmatpush.msra.mxu0 0.0
        %1066 = vmatpush.msra.mxu0 0.0
        %1067 = vmatpush.msra.mxu0 0.0
        %1068 = vmatpush.msra.mxu0 0.0
        %1069 = vmatpush.msra.mxu0 0.0
        %1070 = vmatpush.msra.mxu0 0.0
        %1071 = vmatpush.msra.mxu0 0.0
        %1072 = vmatpush.msra.mxu0 0.0
        %1073 = vmatpush.msra.mxu0 %v295
        %1074 = vmatpush.msra.mxu0 %v294
        %1075 = vmatpush.msra.mxu0 %v293
        %1076 = vmatpush.msra.mxu0 %v292
        %1077 = vmatmul.f32.gmra.mxu0 %v354
        %v1078 = vpop.f32.mrf.mxu0
        %v1079 = vadd.f32 %v335, %v1078
        %1080 = vmatmul.f32.gmra.mxu0 %v357
        %v1081 = vpop.f32.mrf.mxu0
        %v1082 = vadd.f32 %v340, %v1081
        %1083 = vmatmul.f32.gmra.mxu0 %v360
        %v1084 = vpop.f32.mrf.mxu0
        %v1085 = vadd.f32 %v345, %v1084
        %1086 = vmatmul.f32.gmra.mxu0 %v363
        %v1087 = vpop.f32.mrf.mxu0
        %v1088 = vadd.f32 %v350, %v1087
        %1089 = vdwg.mxu0
        %1090 = vmatpush.msra.mxu0 0.0
        %1091 = vmatpush.msra.mxu0 0.0
        %1092 = vmatpush.msra.mxu0 0.0
        %1093 = vmatpush.msra.mxu0 0.0
        %1094 = vmatpush.msra.mxu0 0.0
        %1095 = vmatpush.msra.mxu0 0.0
        %1096 = vmatpush.msra.mxu0 0.0
        %1097 = vmatpush.msra.mxu0 0.0
        %1098 = vmatpush.msra.mxu0 0.0
        %1099 = vmatpush.msra.mxu0 0.0
        %1100 = vmatpush.msra.mxu0 0.0
        %1101 = vmatpush.msra.mxu0 0.0
        %1102 = vmatpush.msra.mxu0 %v299
        %1103 = vmatpush.msra.mxu0 %v298
        %1104 = vmatpush.msra.mxu0 %v297
        %1105 = vmatpush.msra.mxu0 %v296
        %1106 = vmatmul.f32.gmra.mxu0 %v354
        %v1107 = vpop.f32.mrf.mxu0
        %v1108 = vadd.f32 %v335, %v1107
        %1109 = vmatmul.f32.gmra.mxu0 %v357
        %v1110 = vpop.f32.mrf.mxu0
        %v1111 = vadd.f32 %v340, %v1110
        %1112 = vmatmul.f32.gmra.mxu0 %v360
        %v1113 = vpop.f32.mrf.mxu0
        %v1114 = vadd.f32 %v345, %v1113
        %1115 = vmatmul.f32.gmra.mxu0 %v363
        %v1116 = vpop.f32.mrf.mxu0
        %v1117 = vadd.f32 %v350, %v1116
        %1118 = vdwg.mxu0
        %1119 = vmatpush.msra.mxu0 0.0
        %1120 = vmatpush.msra.mxu0 0.0
        %1121 = vmatpush.msra.mxu0 0.0
        %1122 = vmatpush.msra.mxu0 0.0
        %1123 = vmatpush.msra.mxu0 0.0
        %1124 = vmatpush.msra.mxu0 0.0
        %1125 = vmatpush.msra.mxu0 0.0
        %1126 = vmatpush.msra.mxu0 0.0
        %1127 = vmatpush.msra.mxu0 0.0
        %1128 = vmatpush.msra.mxu0 0.0
        %1129 = vmatpush.msra.mxu0 0.0
        %1130 = vmatpush.msra.mxu0 0.0
        %1131 = vmatpush.msra.mxu0 %v303
        %1132 = vmatpush.msra.mxu0 %v302
        %1133 = vmatpush.msra.mxu0 %v301
        %1134 = vmatpush.msra.mxu0 %v300
        %1135 = vmatmul.f32.gmra.mxu0 %v354
        %v1136 = vpop.f32.mrf.mxu0
        %v1137 = vadd.f32 %v335, %v1136
        %1138 = vmatmul.f32.gmra.mxu0 %v357
        %v1139 = vpop.f32.mrf.mxu0
        %v1140 = vadd.f32 %v340, %v1139
        %1141 = vmatmul.f32.gmra.mxu0 %v360
        %v1142 = vpop.f32.mrf.mxu0
        %v1143 = vadd.f32 %v345, %v1142
        %1144 = vmatmul.f32.gmra.mxu0 %v363
        %v1145 = vpop.f32.mrf.mxu0
        %v1146 = vadd.f32 %v350, %v1145
        %1147 = vdwg.mxu0
        %1148 = vmatpush.msra.mxu0 0.0
        %1149 = vmatpush.msra.mxu0 0.0
        %1150 = vmatpush.msra.mxu0 0.0
        %1151 = vmatpush.msra.mxu0 0.0
        %1152 = vmatpush.msra.mxu0 0.0
        %1153 = vmatpush.msra.mxu0 0.0
        %1154 = vmatpush.msra.mxu0 0.0
        %1155 = vmatpush.msra.mxu0 0.0
        %1156 = vmatpush.msra.mxu0 0.0
        %1157 = vmatpush.msra.mxu0 0.0
        %1158 = vmatpush.msra.mxu0 0.0
        %1159 = vmatpush.msra.mxu0 0.0
        %1160 = vmatpush.msra.mxu0 %v307
        %1161 = vmatpush.msra.mxu0 %v306
        %1162 = vmatpush.msra.mxu0 %v305
        %1163 = vmatpush.msra.mxu0 %v304
        %1164 = vmatmul.f32.gmra.mxu0 %v354
        %v1165 = vpop.f32.mrf.mxu0
        %v1166 = vadd.f32 %v335, %v1165
        %1167 = vmatmul.f32.gmra.mxu0 %v357
        %v1168 = vpop.f32.mrf.mxu0
        %v1169 = vadd.f32 %v340, %v1168
        %1170 = vmatmul.f32.gmra.mxu0 %v360
        %v1171 = vpop.f32.mrf.mxu0
        %v1172 = vadd.f32 %v345, %v1171
        %1173 = vmatmul.f32.gmra.mxu0 %v363
        %v1174 = vpop.f32.mrf.mxu0
        %v1175 = vadd.f32 %v350, %v1174
        %1176 = vdwg.mxu0
        %1177 = vmatpush.msra.mxu0 0.0
        %1178 = vmatpush.msra.mxu0 0.0
        %1179 = vmatpush.msra.mxu0 0.0
        %1180 = vmatpush.msra.mxu0 0.0
        %1181 = vmatpush.msra.mxu0 0.0
        %1182 = vmatpush.msra.mxu0 0.0
        %1183 = vmatpush.msra.mxu0 0.0
        %1184 = vmatpush.msra.mxu0 0.0
        %1185 = vmatpush.msra.mxu0 0.0
        %1186 = vmatpush.msra.mxu0 0.0
        %1187 = vmatpush.msra.mxu0 0.0
        %1188 = vmatpush.msra.mxu0 0.0
        %1189 = vmatpush.msra.mxu0 %v311
        %1190 = vmatpush.msra.mxu0 %v310
        %1191 = vmatpush.msra.mxu0 %v309
        %1192 = vmatpush.msra.mxu0 %v308
        %1193 = vmatmul.f32.gmra.mxu0 %v354
        %v1194 = vpop.f32.mrf.mxu0
        %v1195 = vadd.f32 %v335, %v1194
        %1196 = vmatmul.f32.gmra.mxu0 %v357
        %v1197 = vpop.f32.mrf.mxu0
        %v1198 = vadd.f32 %v340, %v1197
        %1199 = vmatmul.f32.gmra.mxu0 %v360
        %v1200 = vpop.f32.mrf.mxu0
        %v1201 = vadd.f32 %v345, %v1200
        %1202 = vmatmul.f32.gmra.mxu0 %v363
        %v1203 = vpop.f32.mrf.mxu0
        %v1204 = vadd.f32 %v350, %v1203
        %1205 = vdwg.mxu0
        %1206 = vmatpush.msra.mxu0 0.0
        %1207 = vmatpush.msra.mxu0 0.0
        %1208 = vmatpush.msra.mxu0 0.0
        %1209 = vmatpush.msra.mxu0 0.0
        %1210 = vmatpush.msra.mxu0 0.0
        %1211 = vmatpush.msra.mxu0 0.0
        %1212 = vmatpush.msra.mxu0 0.0
        %1213 = vmatpush.msra.mxu0 0.0
        %1214 = vmatpush.msra.mxu0 0.0
        %1215 = vmatpush.msra.mxu0 0.0
        %1216 = vmatpush.msra.mxu0 0.0
        %1217 = vmatpush.msra.mxu0 0.0
        %1218 = vmatpush.msra.mxu0 %v315
        %1219 = vmatpush.msra.mxu0 %v314
        %1220 = vmatpush.msra.mxu0 %v313
        %1221 = vmatpush.msra.mxu0 %v312
        %1222 = vmatmul.f32.gmra.mxu0 %v354
        %v1223 = vpop.f32.mrf.mxu0
        %v1224 = vadd.f32 %v335, %v1223
        %1225 = vmatmul.f32.gmra.mxu0 %v357
        %v1226 = vpop.f32.mrf.mxu0
        %v1227 = vadd.f32 %v340, %v1226
        %1228 = vmatmul.f32.gmra.mxu0 %v360
        %v1229 = vpop.f32.mrf.mxu0
        %v1230 = vadd.f32 %v345, %v1229
        %1231 = vmatmul.f32.gmra.mxu0 %v363
        %v1232 = vpop.f32.mrf.mxu0
        %v1233 = vadd.f32 %v350, %v1232
        %1234 = vdwg.mxu0
        %1235 = vmatpush.msra.mxu0 0.0
        %1236 = vmatpush.msra.mxu0 0.0
        %1237 = vmatpush.msra.mxu0 0.0
        %1238 = vmatpush.msra.mxu0 0.0
        %1239 = vmatpush.msra.mxu0 0.0
        %1240 = vmatpush.msra.mxu0 0.0
        %1241 = vmatpush.msra.mxu0 0.0
        %1242 = vmatpush.msra.mxu0 0.0
        %1243 = vmatpush.msra.mxu0 0.0
        %1244 = vmatpush.msra.mxu0 0.0
        %1245 = vmatpush.msra.mxu0 0.0
        %1246 = vmatpush.msra.mxu0 0.0
        %1247 = vmatpush.msra.mxu0 %v319
        %1248 = vmatpush.msra.mxu0 %v318
        %1249 = vmatpush.msra.mxu0 %v317
        %1250 = vmatpush.msra.mxu0 %v316
        %1251 = vmatmul.f32.gmra.mxu0 %v354
        %v1252 = vpop.f32.mrf.mxu0
        %v1253 = vadd.f32 %v335, %v1252
        %1254 = vmatmul.f32.gmra.mxu0 %v357
        %v1255 = vpop.f32.mrf.mxu0
        %v1256 = vadd.f32 %v340, %v1255
        %1257 = vmatmul.f32.gmra.mxu0 %v360
        %v1258 = vpop.f32.mrf.mxu0
        %v1259 = vadd.f32 %v345, %v1258
        %1260 = vmatmul.f32.gmra.mxu0 %v363
        %v1261 = vpop.f32.mrf.mxu0
        %v1262 = vadd.f32 %v350, %v1261
        %1263 = vdwg.mxu0
        %1264 = vmatpush.msra.mxu0 0.0
        %1265 = vmatpush.msra.mxu0 0.0
        %1266 = vmatpush.msra.mxu0 0.0
        %1267 = vmatpush.msra.mxu0 0.0
        %1268 = vmatpush.msra.mxu0 0.0
        %1269 = vmatpush.msra.mxu0 0.0
        %1270 = vmatpush.msra.mxu0 0.0
        %1271 = vmatpush.msra.mxu0 0.0
        %1272 = vmatpush.msra.mxu0 0.0
        %1273 = vmatpush.msra.mxu0 0.0
        %1274 = vmatpush.msra.mxu0 0.0
        %1275 = vmatpush.msra.mxu0 0.0
        %1276 = vmatpush.msra.mxu0 %v323
        %1277 = vmatpush.msra.mxu0 %v322
        %1278 = vmatpush.msra.mxu0 %v321
        %1279 = vmatpush.msra.mxu0 %v320
        %1280 = vmatmul.f32.gmra.mxu0 %v354
        %v1281 = vpop.f32.mrf.mxu0
        %v1282 = vadd.f32 %v335, %v1281
        %1283 = vmatmul.f32.gmra.mxu0 %v357
        %v1284 = vpop.f32.mrf.mxu0
        %v1285 = vadd.f32 %v340, %v1284
        %1286 = vmatmul.f32.gmra.mxu0 %v360
        %v1287 = vpop.f32.mrf.mxu0
        %v1288 = vadd.f32 %v345, %v1287
        %1289 = vmatmul.f32.gmra.mxu0 %v363
        %v1290 = vpop.f32.mrf.mxu0
        %v1291 = vadd.f32 %v350, %v1290
        %1292 = vdwg.mxu0
        %v1293 = vxor.u32 %v383, 2147483648
        %v1294 = vxor.u32 %v386, 2147483648
        %v1295 = vxor.u32 %v389, 2147483648
        %v1296 = vxor.u32 %v392, 2147483648
        %v1297 = vxor.u32 %v412, 2147483648
        %v1298 = vxor.u32 %v415, 2147483648
        %v1299 = vxor.u32 %v418, 2147483648
        %v1300 = vxor.u32 %v421, 2147483648
        %v1301 = vxor.u32 %v441, 2147483648
        %v1302 = vxor.u32 %v444, 2147483648
        %v1303 = vxor.u32 %v447, 2147483648
        %v1304 = vxor.u32 %v450, 2147483648
        %v1305 = vxor.u32 %v470, 2147483648
        %v1306 = vxor.u32 %v473, 2147483648
        %v1307 = vxor.u32 %v476, 2147483648
        %v1308 = vxor.u32 %v479, 2147483648
        %v1309 = vxor.u32 %v499, 2147483648
        %v1310 = vxor.u32 %v502, 2147483648
        %v1311 = vxor.u32 %v505, 2147483648
        %v1312 = vxor.u32 %v508, 2147483648
        %v1313 = vxor.u32 %v528, 2147483648
        %v1314 = vxor.u32 %v531, 2147483648
        %v1315 = vxor.u32 %v534, 2147483648
        %v1316 = vxor.u32 %v537, 2147483648
        %v1317 = vxor.u32 %v557, 2147483648
        %v1318 = vxor.u32 %v560, 2147483648
        %v1319 = vxor.u32 %v563, 2147483648
        %v1320 = vxor.u32 %v566, 2147483648
        %v1321 = vxor.u32 %v586, 2147483648
        %v1322 = vxor.u32 %v589, 2147483648
        %v1323 = vxor.u32 %v592, 2147483648
        %v1324 = vxor.u32 %v595, 2147483648
        %v1325 = vxor.u32 %v615, 2147483648
        %v1326 = vxor.u32 %v618, 2147483648
        %v1327 = vxor.u32 %v621, 2147483648
        %v1328 = vxor.u32 %v624, 2147483648
        %v1329 = vxor.u32 %v644, 2147483648
        %v1330 = vxor.u32 %v647, 2147483648
        %v1331 = vxor.u32 %v650, 2147483648
        %v1332 = vxor.u32 %v653, 2147483648
        %v1333 = vxor.u32 %v673, 2147483648
        %v1334 = vxor.u32 %v676, 2147483648
        %v1335 = vxor.u32 %v679, 2147483648
        %v1336 = vxor.u32 %v682, 2147483648
        %v1337 = vxor.u32 %v702, 2147483648
        %v1338 = vxor.u32 %v705, 2147483648
        %v1339 = vxor.u32 %v708, 2147483648
        %v1340 = vxor.u32 %v711, 2147483648
        %v1341 = vxor.u32 %v731, 2147483648
        %v1342 = vxor.u32 %v734, 2147483648
        %v1343 = vxor.u32 %v737, 2147483648
        %v1344 = vxor.u32 %v740, 2147483648
        %v1345 = vxor.u32 %v760, 2147483648
        %v1346 = vxor.u32 %v763, 2147483648
        %v1347 = vxor.u32 %v766, 2147483648
        %v1348 = vxor.u32 %v769, 2147483648
        %v1349 = vxor.u32 %v789, 2147483648
        %v1350 = vxor.u32 %v792, 2147483648
        %v1351 = vxor.u32 %v795, 2147483648
        %v1352 = vxor.u32 %v798, 2147483648
        %v1353 = vxor.u32 %v818, 2147483648
        %v1354 = vxor.u32 %v821, 2147483648
        %v1355 = vxor.u32 %v824, 2147483648
        %v1356 = vxor.u32 %v827, 2147483648
        %v1357 = vxor.u32 %v847, 2147483648
        %v1358 = vxor.u32 %v850, 2147483648
        %v1359 = vxor.u32 %v853, 2147483648
        %v1360 = vxor.u32 %v856, 2147483648
        %v1361 = vxor.u32 %v876, 2147483648
        %v1362 = vxor.u32 %v879, 2147483648
        %v1363 = vxor.u32 %v882, 2147483648
        %v1364 = vxor.u32 %v885, 2147483648
        %v1365 = vxor.u32 %v905, 2147483648
        %v1366 = vxor.u32 %v908, 2147483648
        %v1367 = vxor.u32 %v911, 2147483648
        %v1368 = vxor.u32 %v914, 2147483648
        %v1369 = vxor.u32 %v934, 2147483648
        %v1370 = vxor.u32 %v937, 2147483648
        %v1371 = vxor.u32 %v940, 2147483648
        %v1372 = vxor.u32 %v943, 2147483648
        %v1373 = vxor.u32 %v963, 2147483648
        %v1374 = vxor.u32 %v966, 2147483648
        %v1375 = vxor.u32 %v969, 2147483648
        %v1376 = vxor.u32 %v972, 2147483648
        %v1377 = vxor.u32 %v992, 2147483648
        %v1378 = vxor.u32 %v995, 2147483648
        %v1379 = vxor.u32 %v998, 2147483648
        %v1380 = vxor.u32 %v1001, 2147483648
        %v1381 = vxor.u32 %v1021, 2147483648
        %v1382 = vxor.u32 %v1024, 2147483648
        %v1383 = vxor.u32 %v1027, 2147483648
        %v1384 = vxor.u32 %v1030, 2147483648
        %v1385 = vxor.u32 %v1050, 2147483648
        %v1386 = vxor.u32 %v1053, 2147483648
        %v1387 = vxor.u32 %v1056, 2147483648
        %v1388 = vxor.u32 %v1059, 2147483648
        %v1389 = vxor.u32 %v1079, 2147483648
        %v1390 = vxor.u32 %v1082, 2147483648
        %v1391 = vxor.u32 %v1085, 2147483648
        %v1392 = vxor.u32 %v1088, 2147483648
        %v1393 = vxor.u32 %v1108, 2147483648
        %v1394 = vxor.u32 %v1111, 2147483648
        %v1395 = vxor.u32 %v1114, 2147483648
        %v1396 = vxor.u32 %v1117, 2147483648
        %v1397 = vxor.u32 %v1137, 2147483648
        %v1398 = vxor.u32 %v1140, 2147483648
        %v1399 = vxor.u32 %v1143, 2147483648
        %v1400 = vxor.u32 %v1146, 2147483648
        %v1401 = vxor.u32 %v1166, 2147483648
        %v1402 = vxor.u32 %v1169, 2147483648
        %v1403 = vxor.u32 %v1172, 2147483648
        %v1404 = vxor.u32 %v1175, 2147483648
        %v1405 = vxor.u32 %v1195, 2147483648
        %v1406 = vxor.u32 %v1198, 2147483648
        %v1407 = vxor.u32 %v1201, 2147483648
        %v1408 = vxor.u32 %v1204, 2147483648
        %v1409 = vxor.u32 %v1224, 2147483648
        %v1410 = vxor.u32 %v1227, 2147483648
        %v1411 = vxor.u32 %v1230, 2147483648
        %v1412 = vxor.u32 %v1233, 2147483648
        %v1413 = vxor.u32 %v1253, 2147483648
        %v1414 = vxor.u32 %v1256, 2147483648
        %v1415 = vxor.u32 %v1259, 2147483648
        %v1416 = vxor.u32 %v1262, 2147483648
        %v1417 = vxor.u32 %v1282, 2147483648
        %v1418 = vxor.u32 %v1285, 2147483648
        %v1419 = vxor.u32 %v1288, 2147483648
        %v1420 = vxor.u32 %v1291, 2147483648
        %v1421 = vmul.f32 %v1293, 1.442695
        %v1422 = vpow.pop %v1421
        %v1423 = vmul.f32 %v1294, 1.442695
        %v1424 = vpow.pop %v1423
        %v1425 = vmul.f32 %v1295, 1.442695
        %v1426 = vpow.pop %v1425
        %v1427 = vmul.f32 %v1296, 1.442695
        %v1428 = vpow.pop %v1427
        %v1429 = vmul.f32 %v1297, 1.442695
        %v1430 = vpow.pop %v1429
        %v1431 = vmul.f32 %v1298, 1.442695
        %v1432 = vpow.pop %v1431
        %v1433 = vmul.f32 %v1299, 1.442695
        %v1434 = vpow.pop %v1433
        %v1435 = vmul.f32 %v1300, 1.442695
        %v1436 = vpow.pop %v1435
        %v1437 = vmul.f32 %v1301, 1.442695
        %v1438 = vpow.pop %v1437
        %v1439 = vmul.f32 %v1302, 1.442695
        %v1440 = vpow.pop %v1439
        %v1441 = vmul.f32 %v1303, 1.442695
        %v1442 = vpow.pop %v1441
        %v1443 = vmul.f32 %v1304, 1.442695
        %v1444 = vpow.pop %v1443
        %v1445 = vmul.f32 %v1305, 1.442695
        %v1446 = vpow.pop %v1445
        %v1447 = vmul.f32 %v1306, 1.442695
        %v1448 = vpow.pop %v1447
        %v1449 = vmul.f32 %v1307, 1.442695
        %v1450 = vpow.pop %v1449
        %v1451 = vmul.f32 %v1308, 1.442695
        %v1452 = vpow.pop %v1451
        %v1453 = vmul.f32 %v1309, 1.442695
        %v1454 = vpow.pop %v1453
        %v1455 = vmul.f32 %v1310, 1.442695
        %v1456 = vpow.pop %v1455
        %v1457 = vmul.f32 %v1311, 1.442695
        %v1458 = vpow.pop %v1457
        %v1459 = vmul.f32 %v1312, 1.442695
        %v1460 = vpow.pop %v1459
        %v1461 = vmul.f32 %v1313, 1.442695
        %v1462 = vpow.pop %v1461
        %v1463 = vmul.f32 %v1314, 1.442695
        %v1464 = vpow.pop %v1463
        %v1465 = vmul.f32 %v1315, 1.442695
        %v1466 = vpow.pop %v1465
        %v1467 = vmul.f32 %v1316, 1.442695
        %v1468 = vpow.pop %v1467
        %v1469 = vmul.f32 %v1317, 1.442695
        %v1470 = vpow.pop %v1469
        %v1471 = vmul.f32 %v1318, 1.442695
        %v1472 = vpow.pop %v1471
        %v1473 = vmul.f32 %v1319, 1.442695
        %v1474 = vpow.pop %v1473
        %v1475 = vmul.f32 %v1320, 1.442695
        %v1476 = vpow.pop %v1475
        %v1477 = vmul.f32 %v1321, 1.442695
        %v1478 = vpow.pop %v1477
        %v1479 = vmul.f32 %v1322, 1.442695
        %v1480 = vpow.pop %v1479
        %v1481 = vmul.f32 %v1323, 1.442695
        %v1482 = vpow.pop %v1481
        %v1483 = vmul.f32 %v1324, 1.442695
        %v1484 = vpow.pop %v1483
        %v1485 = vmul.f32 %v1325, 1.442695
        %v1486 = vpow.pop %v1485
        %v1487 = vmul.f32 %v1326, 1.442695
        %v1488 = vpow.pop %v1487
        %v1489 = vmul.f32 %v1327, 1.442695
        %v1490 = vpow.pop %v1489
        %v1491 = vmul.f32 %v1328, 1.442695
        %v1492 = vpow.pop %v1491
        %v1493 = vmul.f32 %v1329, 1.442695
        %v1494 = vpow.pop %v1493
        %v1495 = vmul.f32 %v1330, 1.442695
        %v1496 = vpow.pop %v1495
        %v1497 = vmul.f32 %v1331, 1.442695
        %v1498 = vpow.pop %v1497
        %v1499 = vmul.f32 %v1332, 1.442695
        %v1500 = vpow.pop %v1499
        %v1501 = vmul.f32 %v1333, 1.442695
        %v1502 = vpow.pop %v1501
        %v1503 = vmul.f32 %v1334, 1.442695
        %v1504 = vpow.pop %v1503
        %v1505 = vmul.f32 %v1335, 1.442695
        %v1506 = vpow.pop %v1505
        %v1507 = vmul.f32 %v1336, 1.442695
        %v1508 = vpow.pop %v1507
        %v1509 = vmul.f32 %v1337, 1.442695
        %v1510 = vpow.pop %v1509
        %v1511 = vmul.f32 %v1338, 1.442695
        %v1512 = vpow.pop %v1511
        %v1513 = vmul.f32 %v1339, 1.442695
        %v1514 = vpow.pop %v1513
        %v1515 = vmul.f32 %v1340, 1.442695
        %v1516 = vpow.pop %v1515
        %v1517 = vmul.f32 %v1341, 1.442695
        %v1518 = vpow.pop %v1517
        %v1519 = vmul.f32 %v1342, 1.442695
        %v1520 = vpow.pop %v1519
        %v1521 = vmul.f32 %v1343, 1.442695
        %v1522 = vpow.pop %v1521
        %v1523 = vmul.f32 %v1344, 1.442695
        %v1524 = vpow.pop %v1523
        %v1525 = vmul.f32 %v1345, 1.442695
        %v1526 = vpow.pop %v1525
        %v1527 = vmul.f32 %v1346, 1.442695
        %v1528 = vpow.pop %v1527
        %v1529 = vmul.f32 %v1347, 1.442695
        %v1530 = vpow.pop %v1529
        %v1531 = vmul.f32 %v1348, 1.442695
        %v1532 = vpow.pop %v1531
        %v1533 = vmul.f32 %v1349, 1.442695
        %v1534 = vpow.pop %v1533
        %v1535 = vmul.f32 %v1350, 1.442695
        %v1536 = vpow.pop %v1535
        %v1537 = vmul.f32 %v1351, 1.442695
        %v1538 = vpow.pop %v1537
        %v1539 = vmul.f32 %v1352, 1.442695
        %v1540 = vpow.pop %v1539
        %v1541 = vmul.f32 %v1353, 1.442695
        %v1542 = vpow.pop %v1541
        %v1543 = vmul.f32 %v1354, 1.442695
        %v1544 = vpow.pop %v1543
        %v1545 = vmul.f32 %v1355, 1.442695
        %v1546 = vpow.pop %v1545
        %v1547 = vmul.f32 %v1356, 1.442695
        %v1548 = vpow.pop %v1547
        %v1549 = vmul.f32 %v1357, 1.442695
        %v1550 = vpow.pop %v1549
        %v1551 = vmul.f32 %v1358, 1.442695
        %v1552 = vpow.pop %v1551
        %v1553 = vmul.f32 %v1359, 1.442695
        %v1554 = vpow.pop %v1553
        %v1555 = vmul.f32 %v1360, 1.442695
        %v1556 = vpow.pop %v1555
        %v1557 = vmul.f32 %v1361, 1.442695
        %v1558 = vpow.pop %v1557
        %v1559 = vmul.f32 %v1362, 1.442695
        %v1560 = vpow.pop %v1559
        %v1561 = vmul.f32 %v1363, 1.442695
        %v1562 = vpow.pop %v1561
        %v1563 = vmul.f32 %v1364, 1.442695
        %v1564 = vpow.pop %v1563
        %v1565 = vmul.f32 %v1365, 1.442695
        %v1566 = vpow.pop %v1565
        %v1567 = vmul.f32 %v1366, 1.442695
        %v1568 = vpow.pop %v1567
        %v1569 = vmul.f32 %v1367, 1.442695
        %v1570 = vpow.pop %v1569
        %v1571 = vmul.f32 %v1368, 1.442695
        %v1572 = vpow.pop %v1571
        %v1573 = vmul.f32 %v1369, 1.442695
        %v1574 = vpow.pop %v1573
        %v1575 = vmul.f32 %v1370, 1.442695
        %v1576 = vpow.pop %v1575
        %v1577 = vmul.f32 %v1371, 1.442695
        %v1578 = vpow.pop %v1577
        %v1579 = vmul.f32 %v1372, 1.442695
        %v1580 = vpow.pop %v1579
        %v1581 = vmul.f32 %v1373, 1.442695
        %v1582 = vpow.pop %v1581
        %v1583 = vmul.f32 %v1374, 1.442695
        %v1584 = vpow.pop %v1583
        %v1585 = vmul.f32 %v1375, 1.442695
        %v1586 = vpow.pop %v1585
        %v1587 = vmul.f32 %v1376, 1.442695
        %v1588 = vpow.pop %v1587
        %v1589 = vmul.f32 %v1377, 1.442695
        %v1590 = vpow.pop %v1589
        %v1591 = vmul.f32 %v1378, 1.442695
        %v1592 = vpow.pop %v1591
        %v1593 = vmul.f32 %v1379, 1.442695
        %v1594 = vpow.pop %v1593
        %v1595 = vmul.f32 %v1380, 1.442695
        %v1596 = vpow.pop %v1595
        %v1597 = vmul.f32 %v1381, 1.442695
        %v1598 = vpow.pop %v1597
        %v1599 = vmul.f32 %v1382, 1.442695
        %v1600 = vpow.pop %v1599
        %v1601 = vmul.f32 %v1383, 1.442695
        %v1602 = vpow.pop %v1601
        %v1603 = vmul.f32 %v1384, 1.442695
        %v1604 = vpow.pop %v1603
        %v1605 = vmul.f32 %v1385, 1.442695
        %v1606 = vpow.pop %v1605
        %v1607 = vmul.f32 %v1386, 1.442695
        %v1608 = vpow.pop %v1607
        %v1609 = vmul.f32 %v1387, 1.442695
        %v1610 = vpow.pop %v1609
        %v1611 = vmul.f32 %v1388, 1.442695
        %v1612 = vpow.pop %v1611
        %v1613 = vmul.f32 %v1389, 1.442695
        %v1614 = vpow.pop %v1613
        %v1615 = vmul.f32 %v1390, 1.442695
        %v1616 = vpow.pop %v1615
        %v1617 = vmul.f32 %v1391, 1.442695
        %v1618 = vpow.pop %v1617
        %v1619 = vmul.f32 %v1392, 1.442695
        %v1620 = vpow.pop %v1619
        %v1621 = vmul.f32 %v1393, 1.442695
        %v1622 = vpow.pop %v1621
        %v1623 = vmul.f32 %v1394, 1.442695
        %v1624 = vpow.pop %v1623
        %v1625 = vmul.f32 %v1395, 1.442695
        %v1626 = vpow.pop %v1625
        %v1627 = vmul.f32 %v1396, 1.442695
        %v1628 = vpow.pop %v1627
        %v1629 = vmul.f32 %v1397, 1.442695
        %v1630 = vpow.pop %v1629
        %v1631 = vmul.f32 %v1398, 1.442695
        %v1632 = vpow.pop %v1631
        %v1633 = vmul.f32 %v1399, 1.442695
        %v1634 = vpow.pop %v1633
        %v1635 = vmul.f32 %v1400, 1.442695
        %v1636 = vpow.pop %v1635
        %v1637 = vmul.f32 %v1401, 1.442695
        %v1638 = vpow.pop %v1637
        %v1639 = vmul.f32 %v1402, 1.442695
        %v1640 = vpow.pop %v1639
        %v1641 = vmul.f32 %v1403, 1.442695
        %v1642 = vpow.pop %v1641
        %v1643 = vmul.f32 %v1404, 1.442695
        %v1644 = vpow.pop %v1643
        %v1645 = vmul.f32 %v1405, 1.442695
        %v1646 = vpow.pop %v1645
        %v1647 = vmul.f32 %v1406, 1.442695
        %v1648 = vpow.pop %v1647
        %v1649 = vmul.f32 %v1407, 1.442695
        %v1650 = vpow.pop %v1649
        %v1651 = vmul.f32 %v1408, 1.442695
        %v1652 = vpow.pop %v1651
        %v1653 = vmul.f32 %v1409, 1.442695
        %v1654 = vpow.pop %v1653
        %v1655 = vmul.f32 %v1410, 1.442695
        %v1656 = vpow.pop %v1655
        %v1657 = vmul.f32 %v1411, 1.442695
        %v1658 = vpow.pop %v1657
        %v1659 = vmul.f32 %v1412, 1.442695
        %v1660 = vpow.pop %v1659
        %v1661 = vmul.f32 %v1413, 1.442695
        %v1662 = vpow.pop %v1661
        %v1663 = vmul.f32 %v1414, 1.442695
        %v1664 = vpow.pop %v1663
        %v1665 = vmul.f32 %v1415, 1.442695
        %v1666 = vpow.pop %v1665
        %v1667 = vmul.f32 %v1416, 1.442695
        %v1668 = vpow.pop %v1667
        %v1669 = vmul.f32 %v1417, 1.442695
        %v1670 = vpow.pop %v1669
        %v1671 = vmul.f32 %v1418, 1.442695
        %v1672 = vpow.pop %v1671
        %v1673 = vmul.f32 %v1419, 1.442695
        %v1674 = vpow.pop %v1673
        %v1675 = vmul.f32 %v1420, 1.442695
        %v1676 = vpow.pop %v1675
        %v1677 = vadd.f32 %v1422, 1.0
        %v1678 = vadd.f32 %v1424, 1.0
        %v1679 = vadd.f32 %v1426, 1.0
        %v1680 = vadd.f32 %v1428, 1.0
        %v1681 = vadd.f32 %v1430, 1.0
        %v1682 = vadd.f32 %v1432, 1.0
        %v1683 = vadd.f32 %v1434, 1.0
        %v1684 = vadd.f32 %v1436, 1.0
        %v1685 = vadd.f32 %v1438, 1.0
        %v1686 = vadd.f32 %v1440, 1.0
        %v1687 = vadd.f32 %v1442, 1.0
        %v1688 = vadd.f32 %v1444, 1.0
        %v1689 = vadd.f32 %v1446, 1.0
        %v1690 = vadd.f32 %v1448, 1.0
        %v1691 = vadd.f32 %v1450, 1.0
        %v1692 = vadd.f32 %v1452, 1.0
        %v1693 = vadd.f32 %v1454, 1.0
        %v1694 = vadd.f32 %v1456, 1.0
        %v1695 = vadd.f32 %v1458, 1.0
        %v1696 = vadd.f32 %v1460, 1.0
        %v1697 = vadd.f32 %v1462, 1.0
        %v1698 = vadd.f32 %v1464, 1.0
        %v1699 = vadd.f32 %v1466, 1.0
        %v1700 = vadd.f32 %v1468, 1.0
        %v1701 = vadd.f32 %v1470, 1.0
        %v1702 = vadd.f32 %v1472, 1.0
        %v1703 = vadd.f32 %v1474, 1.0
        %v1704 = vadd.f32 %v1476, 1.0
        %v1705 = vadd.f32 %v1478, 1.0
        %v1706 = vadd.f32 %v1480, 1.0
        %v1707 = vadd.f32 %v1482, 1.0
        %v1708 = vadd.f32 %v1484, 1.0
        %v1709 = vadd.f32 %v1486, 1.0
        %v1710 = vadd.f32 %v1488, 1.0
        %v1711 = vadd.f32 %v1490, 1.0
        %v1712 = vadd.f32 %v1492, 1.0
        %v1713 = vadd.f32 %v1494, 1.0
        %v1714 = vadd.f32 %v1496, 1.0
        %v1715 = vadd.f32 %v1498, 1.0
        %v1716 = vadd.f32 %v1500, 1.0
        %v1717 = vadd.f32 %v1502, 1.0
        %v1718 = vadd.f32 %v1504, 1.0
        %v1719 = vadd.f32 %v1506, 1.0
        %v1720 = vadd.f32 %v1508, 1.0
        %v1721 = vadd.f32 %v1510, 1.0
        %v1722 = vadd.f32 %v1512, 1.0
        %v1723 = vadd.f32 %v1514, 1.0
        %v1724 = vadd.f32 %v1516, 1.0
        %v1725 = vadd.f32 %v1518, 1.0
        %v1726 = vadd.f32 %v1520, 1.0
        %v1727 = vadd.f32 %v1522, 1.0
        %v1728 = vadd.f32 %v1524, 1.0
        %v1729 = vadd.f32 %v1526, 1.0
        %v1730 = vadd.f32 %v1528, 1.0
        %v1731 = vadd.f32 %v1530, 1.0
        %v1732 = vadd.f32 %v1532, 1.0
        %v1733 = vadd.f32 %v1534, 1.0
        %v1734 = vadd.f32 %v1536, 1.0
        %v1735 = vadd.f32 %v1538, 1.0
        %v1736 = vadd.f32 %v1540, 1.0
        %v1737 = vadd.f32 %v1542, 1.0
        %v1738 = vadd.f32 %v1544, 1.0
        %v1739 = vadd.f32 %v1546, 1.0
        %v1740 = vadd.f32 %v1548, 1.0
        %v1741 = vadd.f32 %v1550, 1.0
        %v1742 = vadd.f32 %v1552, 1.0
        %v1743 = vadd.f32 %v1554, 1.0
        %v1744 = vadd.f32 %v1556, 1.0
        %v1745 = vadd.f32 %v1558, 1.0
        %v1746 = vadd.f32 %v1560, 1.0
        %v1747 = vadd.f32 %v1562, 1.0
        %v1748 = vadd.f32 %v1564, 1.0
        %v1749 = vadd.f32 %v1566, 1.0
        %v1750 = vadd.f32 %v1568, 1.0
        %v1751 = vadd.f32 %v1570, 1.0
        %v1752 = vadd.f32 %v1572, 1.0
        %v1753 = vadd.f32 %v1574, 1.0
        %v1754 = vadd.f32 %v1576, 1.0
        %v1755 = vadd.f32 %v1578, 1.0
        %v1756 = vadd.f32 %v1580, 1.0
        %v1757 = vadd.f32 %v1582, 1.0
        %v1758 = vadd.f32 %v1584, 1.0
        %v1759 = vadd.f32 %v1586, 1.0
        %v1760 = vadd.f32 %v1588, 1.0
        %v1761 = vadd.f32 %v1590, 1.0
        %v1762 = vadd.f32 %v1592, 1.0
        %v1763 = vadd.f32 %v1594, 1.0
        %v1764 = vadd.f32 %v1596, 1.0
        %v1765 = vadd.f32 %v1598, 1.0
        %v1766 = vadd.f32 %v1600, 1.0
        %v1767 = vadd.f32 %v1602, 1.0
        %v1768 = vadd.f32 %v1604, 1.0
        %v1769 = vadd.f32 %v1606, 1.0
        %v1770 = vadd.f32 %v1608, 1.0
        %v1771 = vadd.f32 %v1610, 1.0
        %v1772 = vadd.f32 %v1612, 1.0
        %v1773 = vadd.f32 %v1614, 1.0
        %v1774 = vadd.f32 %v1616, 1.0
        %v1775 = vadd.f32 %v1618, 1.0
        %v1776 = vadd.f32 %v1620, 1.0
        %v1777 = vadd.f32 %v1622, 1.0
        %v1778 = vadd.f32 %v1624, 1.0
        %v1779 = vadd.f32 %v1626, 1.0
        %v1780 = vadd.f32 %v1628, 1.0
        %v1781 = vadd.f32 %v1630, 1.0
        %v1782 = vadd.f32 %v1632, 1.0
        %v1783 = vadd.f32 %v1634, 1.0
        %v1784 = vadd.f32 %v1636, 1.0
        %v1785 = vadd.f32 %v1638, 1.0
        %v1786 = vadd.f32 %v1640, 1.0
        %v1787 = vadd.f32 %v1642, 1.0
        %v1788 = vadd.f32 %v1644, 1.0
        %v1789 = vadd.f32 %v1646, 1.0
        %v1790 = vadd.f32 %v1648, 1.0
        %v1791 = vadd.f32 %v1650, 1.0
        %v1792 = vadd.f32 %v1652, 1.0
        %v1793 = vadd.f32 %v1654, 1.0
        %v1794 = vadd.f32 %v1656, 1.0
        %v1795 = vadd.f32 %v1658, 1.0
        %v1796 = vadd.f32 %v1660, 1.0
        %v1797 = vadd.f32 %v1662, 1.0
        %v1798 = vadd.f32 %v1664, 1.0
        %v1799 = vadd.f32 %v1666, 1.0
        %v1800 = vadd.f32 %v1668, 1.0
        %v1801 = vadd.f32 %v1670, 1.0
        %v1802 = vadd.f32 %v1672, 1.0
        %v1803 = vadd.f32 %v1674, 1.0
        %v1804 = vadd.f32 %v1676, 1.0
        %v1805 = vrcp.pop %v1677
        %v1806 = vmul.f32 %v1677, %v1805
        %v1807 = vsub.f32 1.0, %v1806
        %v1808 = vmul.f32 %v1805, %v1807
        %v1809 = vadd.f32 %v1805, %v1808
        %vm1810 = vweird.f32 %v1677
        %vm1811 = vweird.f32 %v1805
        %vm1812 = vmor %vm1810, %vm1811
        %v1813 = vsel %vm1812, %v1805, %v1809
        %v1814 = vand.u32 2147483647, %v1677
        %vm1815 = vcmp.eq.f32.partialorder %v1814, 8.507059e+37
        %v1816 = vand.u32 %v1677, 2147483648
        %v1817 = vor.u32 1.1754944e-38, %v1816
        %v1818 = vsel %vm1815, %v1817, %v1813
        %v1819 = vmul.f32 1.0, %v1818
        %v1820 = vrcp.pop %v1678
        %v1821 = vmul.f32 %v1678, %v1820
        %v1822 = vsub.f32 1.0, %v1821
        %v1823 = vmul.f32 %v1820, %v1822
        %v1824 = vadd.f32 %v1820, %v1823
        %vm1825 = vweird.f32 %v1678
        %vm1826 = vweird.f32 %v1820
        %vm1827 = vmor %vm1825, %vm1826
        %v1828 = vsel %vm1827, %v1820, %v1824
        %v1829 = vand.u32 2147483647, %v1678
        %vm1830 = vcmp.eq.f32.partialorder %v1829, 8.507059e+37
        %v1831 = vand.u32 %v1678, 2147483648
        %v1832 = vor.u32 1.1754944e-38, %v1831
        %v1833 = vsel %vm1830, %v1832, %v1828
        %v1834 = vmul.f32 1.0, %v1833
        %v1835 = vrcp.pop %v1679
        %v1836 = vmul.f32 %v1679, %v1835
        %v1837 = vsub.f32 1.0, %v1836
        %v1838 = vmul.f32 %v1835, %v1837
        %v1839 = vadd.f32 %v1835, %v1838
        %vm1840 = vweird.f32 %v1679
        %vm1841 = vweird.f32 %v1835
        %vm1842 = vmor %vm1840, %vm1841
        %v1843 = vsel %vm1842, %v1835, %v1839
        %v1844 = vand.u32 2147483647, %v1679
        %vm1845 = vcmp.eq.f32.partialorder %v1844, 8.507059e+37
        %v1846 = vand.u32 %v1679, 2147483648
        %v1847 = vor.u32 1.1754944e-38, %v1846
        %v1848 = vsel %vm1845, %v1847, %v1843
        %v1849 = vmul.f32 1.0, %v1848
        %v1850 = vrcp.pop %v1680
        %v1851 = vmul.f32 %v1680, %v1850
        %v1852 = vsub.f32 1.0, %v1851
        %v1853 = vmul.f32 %v1850, %v1852
        %v1854 = vadd.f32 %v1850, %v1853
        %vm1855 = vweird.f32 %v1680
        %vm1856 = vweird.f32 %v1850
        %vm1857 = vmor %vm1855, %vm1856
        %v1858 = vsel %vm1857, %v1850, %v1854
        %v1859 = vand.u32 2147483647, %v1680
        %vm1860 = vcmp.eq.f32.partialorder %v1859, 8.507059e+37
        %v1861 = vand.u32 %v1680, 2147483648
        %v1862 = vor.u32 1.1754944e-38, %v1861
        %v1863 = vsel %vm1860, %v1862, %v1858
        %v1864 = vmul.f32 1.0, %v1863
        %v1865 = vrcp.pop %v1681
        %v1866 = vmul.f32 %v1681, %v1865
        %v1867 = vsub.f32 1.0, %v1866
        %v1868 = vmul.f32 %v1865, %v1867
        %v1869 = vadd.f32 %v1865, %v1868
        %vm1870 = vweird.f32 %v1681
        %vm1871 = vweird.f32 %v1865
        %vm1872 = vmor %vm1870, %vm1871
        %v1873 = vsel %vm1872, %v1865, %v1869
        %v1874 = vand.u32 2147483647, %v1681
        %vm1875 = vcmp.eq.f32.partialorder %v1874, 8.507059e+37
        %v1876 = vand.u32 %v1681, 2147483648
        %v1877 = vor.u32 1.1754944e-38, %v1876
        %v1878 = vsel %vm1875, %v1877, %v1873
        %v1879 = vmul.f32 1.0, %v1878
        %v1880 = vrcp.pop %v1682
        %v1881 = vmul.f32 %v1682, %v1880
        %v1882 = vsub.f32 1.0, %v1881
        %v1883 = vmul.f32 %v1880, %v1882
        %v1884 = vadd.f32 %v1880, %v1883
        %vm1885 = vweird.f32 %v1682
        %vm1886 = vweird.f32 %v1880
        %vm1887 = vmor %vm1885, %vm1886
        %v1888 = vsel %vm1887, %v1880, %v1884
        %v1889 = vand.u32 2147483647, %v1682
        %vm1890 = vcmp.eq.f32.partialorder %v1889, 8.507059e+37
        %v1891 = vand.u32 %v1682, 2147483648
        %v1892 = vor.u32 1.1754944e-38, %v1891
        %v1893 = vsel %vm1890, %v1892, %v1888
        %v1894 = vmul.f32 1.0, %v1893
        %v1895 = vrcp.pop %v1683
        %v1896 = vmul.f32 %v1683, %v1895
        %v1897 = vsub.f32 1.0, %v1896
        %v1898 = vmul.f32 %v1895, %v1897
        %v1899 = vadd.f32 %v1895, %v1898
        %vm1900 = vweird.f32 %v1683
        %vm1901 = vweird.f32 %v1895
        %vm1902 = vmor %vm1900, %vm1901
        %v1903 = vsel %vm1902, %v1895, %v1899
        %v1904 = vand.u32 2147483647, %v1683
        %vm1905 = vcmp.eq.f32.partialorder %v1904, 8.507059e+37
        %v1906 = vand.u32 %v1683, 2147483648
        %v1907 = vor.u32 1.1754944e-38, %v1906
        %v1908 = vsel %vm1905, %v1907, %v1903
        %v1909 = vmul.f32 1.0, %v1908
        %v1910 = vrcp.pop %v1684
        %v1911 = vmul.f32 %v1684, %v1910
        %v1912 = vsub.f32 1.0, %v1911
        %v1913 = vmul.f32 %v1910, %v1912
        %v1914 = vadd.f32 %v1910, %v1913
        %vm1915 = vweird.f32 %v1684
        %vm1916 = vweird.f32 %v1910
        %vm1917 = vmor %vm1915, %vm1916
        %v1918 = vsel %vm1917, %v1910, %v1914
        %v1919 = vand.u32 2147483647, %v1684
        %vm1920 = vcmp.eq.f32.partialorder %v1919, 8.507059e+37
        %v1921 = vand.u32 %v1684, 2147483648
        %v1922 = vor.u32 1.1754944e-38, %v1921
        %v1923 = vsel %vm1920, %v1922, %v1918
        %v1924 = vmul.f32 1.0, %v1923
        %v1925 = vrcp.pop %v1685
        %v1926 = vmul.f32 %v1685, %v1925
        %v1927 = vsub.f32 1.0, %v1926
        %v1928 = vmul.f32 %v1925, %v1927
        %v1929 = vadd.f32 %v1925, %v1928
        %vm1930 = vweird.f32 %v1685
        %vm1931 = vweird.f32 %v1925
        %vm1932 = vmor %vm1930, %vm1931
        %v1933 = vsel %vm1932, %v1925, %v1929
        %v1934 = vand.u32 2147483647, %v1685
        %vm1935 = vcmp.eq.f32.partialorder %v1934, 8.507059e+37
        %v1936 = vand.u32 %v1685, 2147483648
        %v1937 = vor.u32 1.1754944e-38, %v1936
        %v1938 = vsel %vm1935, %v1937, %v1933
        %v1939 = vmul.f32 1.0, %v1938
        %v1940 = vrcp.pop %v1686
        %v1941 = vmul.f32 %v1686, %v1940
        %v1942 = vsub.f32 1.0, %v1941
        %v1943 = vmul.f32 %v1940, %v1942
        %v1944 = vadd.f32 %v1940, %v1943
        %vm1945 = vweird.f32 %v1686
        %vm1946 = vweird.f32 %v1940
        %vm1947 = vmor %vm1945, %vm1946
        %v1948 = vsel %vm1947, %v1940, %v1944
        %v1949 = vand.u32 2147483647, %v1686
        %vm1950 = vcmp.eq.f32.partialorder %v1949, 8.507059e+37
        %v1951 = vand.u32 %v1686, 2147483648
        %v1952 = vor.u32 1.1754944e-38, %v1951
        %v1953 = vsel %vm1950, %v1952, %v1948
        %v1954 = vmul.f32 1.0, %v1953
        %v1955 = vrcp.pop %v1687
        %v1956 = vmul.f32 %v1687, %v1955
        %v1957 = vsub.f32 1.0, %v1956
        %v1958 = vmul.f32 %v1955, %v1957
        %v1959 = vadd.f32 %v1955, %v1958
        %vm1960 = vweird.f32 %v1687
        %vm1961 = vweird.f32 %v1955
        %vm1962 = vmor %vm1960, %vm1961
        %v1963 = vsel %vm1962, %v1955, %v1959
        %v1964 = vand.u32 2147483647, %v1687
        %vm1965 = vcmp.eq.f32.partialorder %v1964, 8.507059e+37
        %v1966 = vand.u32 %v1687, 2147483648
        %v1967 = vor.u32 1.1754944e-38, %v1966
        %v1968 = vsel %vm1965, %v1967, %v1963
        %v1969 = vmul.f32 1.0, %v1968
        %v1970 = vrcp.pop %v1688
        %v1971 = vmul.f32 %v1688, %v1970
        %v1972 = vsub.f32 1.0, %v1971
        %v1973 = vmul.f32 %v1970, %v1972
        %v1974 = vadd.f32 %v1970, %v1973
        %vm1975 = vweird.f32 %v1688
        %vm1976 = vweird.f32 %v1970
        %vm1977 = vmor %vm1975, %vm1976
        %v1978 = vsel %vm1977, %v1970, %v1974
        %v1979 = vand.u32 2147483647, %v1688
        %vm1980 = vcmp.eq.f32.partialorder %v1979, 8.507059e+37
        %v1981 = vand.u32 %v1688, 2147483648
        %v1982 = vor.u32 1.1754944e-38, %v1981
        %v1983 = vsel %vm1980, %v1982, %v1978
        %v1984 = vmul.f32 1.0, %v1983
        %v1985 = vrcp.pop %v1689
        %v1986 = vmul.f32 %v1689, %v1985
        %v1987 = vsub.f32 1.0, %v1986
        %v1988 = vmul.f32 %v1985, %v1987
        %v1989 = vadd.f32 %v1985, %v1988
        %vm1990 = vweird.f32 %v1689
        %vm1991 = vweird.f32 %v1985
        %vm1992 = vmor %vm1990, %vm1991
        %v1993 = vsel %vm1992, %v1985, %v1989
        %v1994 = vand.u32 2147483647, %v1689
        %vm1995 = vcmp.eq.f32.partialorder %v1994, 8.507059e+37
        %v1996 = vand.u32 %v1689, 2147483648
        %v1997 = vor.u32 1.1754944e-38, %v1996
        %v1998 = vsel %vm1995, %v1997, %v1993
        %v1999 = vmul.f32 1.0, %v1998
        %v2000 = vrcp.pop %v1690
        %v2001 = vmul.f32 %v1690, %v2000
        %v2002 = vsub.f32 1.0, %v2001
        %v2003 = vmul.f32 %v2000, %v2002
        %v2004 = vadd.f32 %v2000, %v2003
        %vm2005 = vweird.f32 %v1690
        %vm2006 = vweird.f32 %v2000
        %vm2007 = vmor %vm2005, %vm2006
        %v2008 = vsel %vm2007, %v2000, %v2004
        %v2009 = vand.u32 2147483647, %v1690
        %vm2010 = vcmp.eq.f32.partialorder %v2009, 8.507059e+37
        %v2011 = vand.u32 %v1690, 2147483648
        %v2012 = vor.u32 1.1754944e-38, %v2011
        %v2013 = vsel %vm2010, %v2012, %v2008
        %v2014 = vmul.f32 1.0, %v2013
        %v2015 = vrcp.pop %v1691
        %v2016 = vmul.f32 %v1691, %v2015
        %v2017 = vsub.f32 1.0, %v2016
        %v2018 = vmul.f32 %v2015, %v2017
        %v2019 = vadd.f32 %v2015, %v2018
        %vm2020 = vweird.f32 %v1691
        %vm2021 = vweird.f32 %v2015
        %vm2022 = vmor %vm2020, %vm2021
        %v2023 = vsel %vm2022, %v2015, %v2019
        %v2024 = vand.u32 2147483647, %v1691
        %vm2025 = vcmp.eq.f32.partialorder %v2024, 8.507059e+37
        %v2026 = vand.u32 %v1691, 2147483648
        %v2027 = vor.u32 1.1754944e-38, %v2026
        %v2028 = vsel %vm2025, %v2027, %v2023
        %v2029 = vmul.f32 1.0, %v2028
        %v2030 = vrcp.pop %v1692
        %v2031 = vmul.f32 %v1692, %v2030
        %v2032 = vsub.f32 1.0, %v2031
        %v2033 = vmul.f32 %v2030, %v2032
        %v2034 = vadd.f32 %v2030, %v2033
        %vm2035 = vweird.f32 %v1692
        %vm2036 = vweird.f32 %v2030
        %vm2037 = vmor %vm2035, %vm2036
        %v2038 = vsel %vm2037, %v2030, %v2034
        %v2039 = vand.u32 2147483647, %v1692
        %vm2040 = vcmp.eq.f32.partialorder %v2039, 8.507059e+37
        %v2041 = vand.u32 %v1692, 2147483648
        %v2042 = vor.u32 1.1754944e-38, %v2041
        %v2043 = vsel %vm2040, %v2042, %v2038
        %v2044 = vmul.f32 1.0, %v2043
        %v2045 = vrcp.pop %v1693
        %v2046 = vmul.f32 %v1693, %v2045
        %v2047 = vsub.f32 1.0, %v2046
        %v2048 = vmul.f32 %v2045, %v2047
        %v2049 = vadd.f32 %v2045, %v2048
        %vm2050 = vweird.f32 %v1693
        %vm2051 = vweird.f32 %v2045
        %vm2052 = vmor %vm2050, %vm2051
        %v2053 = vsel %vm2052, %v2045, %v2049
        %v2054 = vand.u32 2147483647, %v1693
        %vm2055 = vcmp.eq.f32.partialorder %v2054, 8.507059e+37
        %v2056 = vand.u32 %v1693, 2147483648
        %v2057 = vor.u32 1.1754944e-38, %v2056
        %v2058 = vsel %vm2055, %v2057, %v2053
        %v2059 = vmul.f32 1.0, %v2058
        %v2060 = vrcp.pop %v1694
        %v2061 = vmul.f32 %v1694, %v2060
        %v2062 = vsub.f32 1.0, %v2061
        %v2063 = vmul.f32 %v2060, %v2062
        %v2064 = vadd.f32 %v2060, %v2063
        %vm2065 = vweird.f32 %v1694
        %vm2066 = vweird.f32 %v2060
        %vm2067 = vmor %vm2065, %vm2066
        %v2068 = vsel %vm2067, %v2060, %v2064
        %v2069 = vand.u32 2147483647, %v1694
        %vm2070 = vcmp.eq.f32.partialorder %v2069, 8.507059e+37
        %v2071 = vand.u32 %v1694, 2147483648
        %v2072 = vor.u32 1.1754944e-38, %v2071
        %v2073 = vsel %vm2070, %v2072, %v2068
        %v2074 = vmul.f32 1.0, %v2073
        %v2075 = vrcp.pop %v1695
        %v2076 = vmul.f32 %v1695, %v2075
        %v2077 = vsub.f32 1.0, %v2076
        %v2078 = vmul.f32 %v2075, %v2077
        %v2079 = vadd.f32 %v2075, %v2078
        %vm2080 = vweird.f32 %v1695
        %vm2081 = vweird.f32 %v2075
        %vm2082 = vmor %vm2080, %vm2081
        %v2083 = vsel %vm2082, %v2075, %v2079
        %v2084 = vand.u32 2147483647, %v1695
        %vm2085 = vcmp.eq.f32.partialorder %v2084, 8.507059e+37
        %v2086 = vand.u32 %v1695, 2147483648
        %v2087 = vor.u32 1.1754944e-38, %v2086
        %v2088 = vsel %vm2085, %v2087, %v2083
        %v2089 = vmul.f32 1.0, %v2088
        %v2090 = vrcp.pop %v1696
        %v2091 = vmul.f32 %v1696, %v2090
        %v2092 = vsub.f32 1.0, %v2091
        %v2093 = vmul.f32 %v2090, %v2092
        %v2094 = vadd.f32 %v2090, %v2093
        %vm2095 = vweird.f32 %v1696
        %vm2096 = vweird.f32 %v2090
        %vm2097 = vmor %vm2095, %vm2096
        %v2098 = vsel %vm2097, %v2090, %v2094
        %v2099 = vand.u32 2147483647, %v1696
        %vm2100 = vcmp.eq.f32.partialorder %v2099, 8.507059e+37
        %v2101 = vand.u32 %v1696, 2147483648
        %v2102 = vor.u32 1.1754944e-38, %v2101
        %v2103 = vsel %vm2100, %v2102, %v2098
        %v2104 = vmul.f32 1.0, %v2103
        %v2105 = vrcp.pop %v1697
        %v2106 = vmul.f32 %v1697, %v2105
        %v2107 = vsub.f32 1.0, %v2106
        %v2108 = vmul.f32 %v2105, %v2107
        %v2109 = vadd.f32 %v2105, %v2108
        %vm2110 = vweird.f32 %v1697
        %vm2111 = vweird.f32 %v2105
        %vm2112 = vmor %vm2110, %vm2111
        %v2113 = vsel %vm2112, %v2105, %v2109
        %v2114 = vand.u32 2147483647, %v1697
        %vm2115 = vcmp.eq.f32.partialorder %v2114, 8.507059e+37
        %v2116 = vand.u32 %v1697, 2147483648
        %v2117 = vor.u32 1.1754944e-38, %v2116
        %v2118 = vsel %vm2115, %v2117, %v2113
        %v2119 = vmul.f32 1.0, %v2118
        %v2120 = vrcp.pop %v1698
        %v2121 = vmul.f32 %v1698, %v2120
        %v2122 = vsub.f32 1.0, %v2121
        %v2123 = vmul.f32 %v2120, %v2122
        %v2124 = vadd.f32 %v2120, %v2123
        %vm2125 = vweird.f32 %v1698
        %vm2126 = vweird.f32 %v2120
        %vm2127 = vmor %vm2125, %vm2126
        %v2128 = vsel %vm2127, %v2120, %v2124
        %v2129 = vand.u32 2147483647, %v1698
        %vm2130 = vcmp.eq.f32.partialorder %v2129, 8.507059e+37
        %v2131 = vand.u32 %v1698, 2147483648
        %v2132 = vor.u32 1.1754944e-38, %v2131
        %v2133 = vsel %vm2130, %v2132, %v2128
        %v2134 = vmul.f32 1.0, %v2133
        %v2135 = vrcp.pop %v1699
        %v2136 = vmul.f32 %v1699, %v2135
        %v2137 = vsub.f32 1.0, %v2136
        %v2138 = vmul.f32 %v2135, %v2137
        %v2139 = vadd.f32 %v2135, %v2138
        %vm2140 = vweird.f32 %v1699
        %vm2141 = vweird.f32 %v2135
        %vm2142 = vmor %vm2140, %vm2141
        %v2143 = vsel %vm2142, %v2135, %v2139
        %v2144 = vand.u32 2147483647, %v1699
        %vm2145 = vcmp.eq.f32.partialorder %v2144, 8.507059e+37
        %v2146 = vand.u32 %v1699, 2147483648
        %v2147 = vor.u32 1.1754944e-38, %v2146
        %v2148 = vsel %vm2145, %v2147, %v2143
        %v2149 = vmul.f32 1.0, %v2148
        %v2150 = vrcp.pop %v1700
        %v2151 = vmul.f32 %v1700, %v2150
        %v2152 = vsub.f32 1.0, %v2151
        %v2153 = vmul.f32 %v2150, %v2152
        %v2154 = vadd.f32 %v2150, %v2153
        %vm2155 = vweird.f32 %v1700
        %vm2156 = vweird.f32 %v2150
        %vm2157 = vmor %vm2155, %vm2156
        %v2158 = vsel %vm2157, %v2150, %v2154
        %v2159 = vand.u32 2147483647, %v1700
        %vm2160 = vcmp.eq.f32.partialorder %v2159, 8.507059e+37
        %v2161 = vand.u32 %v1700, 2147483648
        %v2162 = vor.u32 1.1754944e-38, %v2161
        %v2163 = vsel %vm2160, %v2162, %v2158
        %v2164 = vmul.f32 1.0, %v2163
        %v2165 = vrcp.pop %v1701
        %v2166 = vmul.f32 %v1701, %v2165
        %v2167 = vsub.f32 1.0, %v2166
        %v2168 = vmul.f32 %v2165, %v2167
        %v2169 = vadd.f32 %v2165, %v2168
        %vm2170 = vweird.f32 %v1701
        %vm2171 = vweird.f32 %v2165
        %vm2172 = vmor %vm2170, %vm2171
        %v2173 = vsel %vm2172, %v2165, %v2169
        %v2174 = vand.u32 2147483647, %v1701
        %vm2175 = vcmp.eq.f32.partialorder %v2174, 8.507059e+37
        %v2176 = vand.u32 %v1701, 2147483648
        %v2177 = vor.u32 1.1754944e-38, %v2176
        %v2178 = vsel %vm2175, %v2177, %v2173
        %v2179 = vmul.f32 1.0, %v2178
        %v2180 = vrcp.pop %v1702
        %v2181 = vmul.f32 %v1702, %v2180
        %v2182 = vsub.f32 1.0, %v2181
        %v2183 = vmul.f32 %v2180, %v2182
        %v2184 = vadd.f32 %v2180, %v2183
        %vm2185 = vweird.f32 %v1702
        %vm2186 = vweird.f32 %v2180
        %vm2187 = vmor %vm2185, %vm2186
        %v2188 = vsel %vm2187, %v2180, %v2184
        %v2189 = vand.u32 2147483647, %v1702
        %vm2190 = vcmp.eq.f32.partialorder %v2189, 8.507059e+37
        %v2191 = vand.u32 %v1702, 2147483648
        %v2192 = vor.u32 1.1754944e-38, %v2191
        %v2193 = vsel %vm2190, %v2192, %v2188
        %v2194 = vmul.f32 1.0, %v2193
        %v2195 = vrcp.pop %v1703
        %v2196 = vmul.f32 %v1703, %v2195
        %v2197 = vsub.f32 1.0, %v2196
        %v2198 = vmul.f32 %v2195, %v2197
        %v2199 = vadd.f32 %v2195, %v2198
        %vm2200 = vweird.f32 %v1703
        %vm2201 = vweird.f32 %v2195
        %vm2202 = vmor %vm2200, %vm2201
        %v2203 = vsel %vm2202, %v2195, %v2199
        %v2204 = vand.u32 2147483647, %v1703
        %vm2205 = vcmp.eq.f32.partialorder %v2204, 8.507059e+37
        %v2206 = vand.u32 %v1703, 2147483648
        %v2207 = vor.u32 1.1754944e-38, %v2206
        %v2208 = vsel %vm2205, %v2207, %v2203
        %v2209 = vmul.f32 1.0, %v2208
        %v2210 = vrcp.pop %v1704
        %v2211 = vmul.f32 %v1704, %v2210
        %v2212 = vsub.f32 1.0, %v2211
        %v2213 = vmul.f32 %v2210, %v2212
        %v2214 = vadd.f32 %v2210, %v2213
        %vm2215 = vweird.f32 %v1704
        %vm2216 = vweird.f32 %v2210
        %vm2217 = vmor %vm2215, %vm2216
        %v2218 = vsel %vm2217, %v2210, %v2214
        %v2219 = vand.u32 2147483647, %v1704
        %vm2220 = vcmp.eq.f32.partialorder %v2219, 8.507059e+37
        %v2221 = vand.u32 %v1704, 2147483648
        %v2222 = vor.u32 1.1754944e-38, %v2221
        %v2223 = vsel %vm2220, %v2222, %v2218
        %v2224 = vmul.f32 1.0, %v2223
        %v2225 = vrcp.pop %v1705
        %v2226 = vmul.f32 %v1705, %v2225
        %v2227 = vsub.f32 1.0, %v2226
        %v2228 = vmul.f32 %v2225, %v2227
        %v2229 = vadd.f32 %v2225, %v2228
        %vm2230 = vweird.f32 %v1705
        %vm2231 = vweird.f32 %v2225
        %vm2232 = vmor %vm2230, %vm2231
        %v2233 = vsel %vm2232, %v2225, %v2229
        %v2234 = vand.u32 2147483647, %v1705
        %vm2235 = vcmp.eq.f32.partialorder %v2234, 8.507059e+37
        %v2236 = vand.u32 %v1705, 2147483648
        %v2237 = vor.u32 1.1754944e-38, %v2236
        %v2238 = vsel %vm2235, %v2237, %v2233
        %v2239 = vmul.f32 1.0, %v2238
        %v2240 = vrcp.pop %v1706
        %v2241 = vmul.f32 %v1706, %v2240
        %v2242 = vsub.f32 1.0, %v2241
        %v2243 = vmul.f32 %v2240, %v2242
        %v2244 = vadd.f32 %v2240, %v2243
        %vm2245 = vweird.f32 %v1706
        %vm2246 = vweird.f32 %v2240
        %vm2247 = vmor %vm2245, %vm2246
        %v2248 = vsel %vm2247, %v2240, %v2244
        %v2249 = vand.u32 2147483647, %v1706
        %vm2250 = vcmp.eq.f32.partialorder %v2249, 8.507059e+37
        %v2251 = vand.u32 %v1706, 2147483648
        %v2252 = vor.u32 1.1754944e-38, %v2251
        %v2253 = vsel %vm2250, %v2252, %v2248
        %v2254 = vmul.f32 1.0, %v2253
        %v2255 = vrcp.pop %v1707
        %v2256 = vmul.f32 %v1707, %v2255
        %v2257 = vsub.f32 1.0, %v2256
        %v2258 = vmul.f32 %v2255, %v2257
        %v2259 = vadd.f32 %v2255, %v2258
        %vm2260 = vweird.f32 %v1707
        %vm2261 = vweird.f32 %v2255
        %vm2262 = vmor %vm2260, %vm2261
        %v2263 = vsel %vm2262, %v2255, %v2259
        %v2264 = vand.u32 2147483647, %v1707
        %vm2265 = vcmp.eq.f32.partialorder %v2264, 8.507059e+37
        %v2266 = vand.u32 %v1707, 2147483648
        %v2267 = vor.u32 1.1754944e-38, %v2266
        %v2268 = vsel %vm2265, %v2267, %v2263
        %v2269 = vmul.f32 1.0, %v2268
        %v2270 = vrcp.pop %v1708
        %v2271 = vmul.f32 %v1708, %v2270
        %v2272 = vsub.f32 1.0, %v2271
        %v2273 = vmul.f32 %v2270, %v2272
        %v2274 = vadd.f32 %v2270, %v2273
        %vm2275 = vweird.f32 %v1708
        %vm2276 = vweird.f32 %v2270
        %vm2277 = vmor %vm2275, %vm2276
        %v2278 = vsel %vm2277, %v2270, %v2274
        %v2279 = vand.u32 2147483647, %v1708
        %vm2280 = vcmp.eq.f32.partialorder %v2279, 8.507059e+37
        %v2281 = vand.u32 %v1708, 2147483648
        %v2282 = vor.u32 1.1754944e-38, %v2281
        %v2283 = vsel %vm2280, %v2282, %v2278
        %v2284 = vmul.f32 1.0, %v2283
        %v2285 = vrcp.pop %v1709
        %v2286 = vmul.f32 %v1709, %v2285
        %v2287 = vsub.f32 1.0, %v2286
        %v2288 = vmul.f32 %v2285, %v2287
        %v2289 = vadd.f32 %v2285, %v2288
        %vm2290 = vweird.f32 %v1709
        %vm2291 = vweird.f32 %v2285
        %vm2292 = vmor %vm2290, %vm2291
        %v2293 = vsel %vm2292, %v2285, %v2289
        %v2294 = vand.u32 2147483647, %v1709
        %vm2295 = vcmp.eq.f32.partialorder %v2294, 8.507059e+37
        %v2296 = vand.u32 %v1709, 2147483648
        %v2297 = vor.u32 1.1754944e-38, %v2296
        %v2298 = vsel %vm2295, %v2297, %v2293
        %v2299 = vmul.f32 1.0, %v2298
        %v2300 = vrcp.pop %v1710
        %v2301 = vmul.f32 %v1710, %v2300
        %v2302 = vsub.f32 1.0, %v2301
        %v2303 = vmul.f32 %v2300, %v2302
        %v2304 = vadd.f32 %v2300, %v2303
        %vm2305 = vweird.f32 %v1710
        %vm2306 = vweird.f32 %v2300
        %vm2307 = vmor %vm2305, %vm2306
        %v2308 = vsel %vm2307, %v2300, %v2304
        %v2309 = vand.u32 2147483647, %v1710
        %vm2310 = vcmp.eq.f32.partialorder %v2309, 8.507059e+37
        %v2311 = vand.u32 %v1710, 2147483648
        %v2312 = vor.u32 1.1754944e-38, %v2311
        %v2313 = vsel %vm2310, %v2312, %v2308
        %v2314 = vmul.f32 1.0, %v2313
        %v2315 = vrcp.pop %v1711
        %v2316 = vmul.f32 %v1711, %v2315
        %v2317 = vsub.f32 1.0, %v2316
        %v2318 = vmul.f32 %v2315, %v2317
        %v2319 = vadd.f32 %v2315, %v2318
        %vm2320 = vweird.f32 %v1711
        %vm2321 = vweird.f32 %v2315
        %vm2322 = vmor %vm2320, %vm2321
        %v2323 = vsel %vm2322, %v2315, %v2319
        %v2324 = vand.u32 2147483647, %v1711
        %vm2325 = vcmp.eq.f32.partialorder %v2324, 8.507059e+37
        %v2326 = vand.u32 %v1711, 2147483648
        %v2327 = vor.u32 1.1754944e-38, %v2326
        %v2328 = vsel %vm2325, %v2327, %v2323
        %v2329 = vmul.f32 1.0, %v2328
        %v2330 = vrcp.pop %v1712
        %v2331 = vmul.f32 %v1712, %v2330
        %v2332 = vsub.f32 1.0, %v2331
        %v2333 = vmul.f32 %v2330, %v2332
        %v2334 = vadd.f32 %v2330, %v2333
        %vm2335 = vweird.f32 %v1712
        %vm2336 = vweird.f32 %v2330
        %vm2337 = vmor %vm2335, %vm2336
        %v2338 = vsel %vm2337, %v2330, %v2334
        %v2339 = vand.u32 2147483647, %v1712
        %vm2340 = vcmp.eq.f32.partialorder %v2339, 8.507059e+37
        %v2341 = vand.u32 %v1712, 2147483648
        %v2342 = vor.u32 1.1754944e-38, %v2341
        %v2343 = vsel %vm2340, %v2342, %v2338
        %v2344 = vmul.f32 1.0, %v2343
        %v2345 = vrcp.pop %v1713
        %v2346 = vmul.f32 %v1713, %v2345
        %v2347 = vsub.f32 1.0, %v2346
        %v2348 = vmul.f32 %v2345, %v2347
        %v2349 = vadd.f32 %v2345, %v2348
        %vm2350 = vweird.f32 %v1713
        %vm2351 = vweird.f32 %v2345
        %vm2352 = vmor %vm2350, %vm2351
        %v2353 = vsel %vm2352, %v2345, %v2349
        %v2354 = vand.u32 2147483647, %v1713
        %vm2355 = vcmp.eq.f32.partialorder %v2354, 8.507059e+37
        %v2356 = vand.u32 %v1713, 2147483648
        %v2357 = vor.u32 1.1754944e-38, %v2356
        %v2358 = vsel %vm2355, %v2357, %v2353
        %v2359 = vmul.f32 1.0, %v2358
        %v2360 = vrcp.pop %v1714
        %v2361 = vmul.f32 %v1714, %v2360
        %v2362 = vsub.f32 1.0, %v2361
        %v2363 = vmul.f32 %v2360, %v2362
        %v2364 = vadd.f32 %v2360, %v2363
        %vm2365 = vweird.f32 %v1714
        %vm2366 = vweird.f32 %v2360
        %vm2367 = vmor %vm2365, %vm2366
        %v2368 = vsel %vm2367, %v2360, %v2364
        %v2369 = vand.u32 2147483647, %v1714
        %vm2370 = vcmp.eq.f32.partialorder %v2369, 8.507059e+37
        %v2371 = vand.u32 %v1714, 2147483648
        %v2372 = vor.u32 1.1754944e-38, %v2371
        %v2373 = vsel %vm2370, %v2372, %v2368
        %v2374 = vmul.f32 1.0, %v2373
        %v2375 = vrcp.pop %v1715
        %v2376 = vmul.f32 %v1715, %v2375
        %v2377 = vsub.f32 1.0, %v2376
        %v2378 = vmul.f32 %v2375, %v2377
        %v2379 = vadd.f32 %v2375, %v2378
        %vm2380 = vweird.f32 %v1715
        %vm2381 = vweird.f32 %v2375
        %vm2382 = vmor %vm2380, %vm2381
        %v2383 = vsel %vm2382, %v2375, %v2379
        %v2384 = vand.u32 2147483647, %v1715
        %vm2385 = vcmp.eq.f32.partialorder %v2384, 8.507059e+37
        %v2386 = vand.u32 %v1715, 2147483648
        %v2387 = vor.u32 1.1754944e-38, %v2386
        %v2388 = vsel %vm2385, %v2387, %v2383
        %v2389 = vmul.f32 1.0, %v2388
        %v2390 = vrcp.pop %v1716
        %v2391 = vmul.f32 %v1716, %v2390
        %v2392 = vsub.f32 1.0, %v2391
        %v2393 = vmul.f32 %v2390, %v2392
        %v2394 = vadd.f32 %v2390, %v2393
        %vm2395 = vweird.f32 %v1716
        %vm2396 = vweird.f32 %v2390
        %vm2397 = vmor %vm2395, %vm2396
        %v2398 = vsel %vm2397, %v2390, %v2394
        %v2399 = vand.u32 2147483647, %v1716
        %vm2400 = vcmp.eq.f32.partialorder %v2399, 8.507059e+37
        %v2401 = vand.u32 %v1716, 2147483648
        %v2402 = vor.u32 1.1754944e-38, %v2401
        %v2403 = vsel %vm2400, %v2402, %v2398
        %v2404 = vmul.f32 1.0, %v2403
        %v2405 = vrcp.pop %v1717
        %v2406 = vmul.f32 %v1717, %v2405
        %v2407 = vsub.f32 1.0, %v2406
        %v2408 = vmul.f32 %v2405, %v2407
        %v2409 = vadd.f32 %v2405, %v2408
        %vm2410 = vweird.f32 %v1717
        %vm2411 = vweird.f32 %v2405
        %vm2412 = vmor %vm2410, %vm2411
        %v2413 = vsel %vm2412, %v2405, %v2409
        %v2414 = vand.u32 2147483647, %v1717
        %vm2415 = vcmp.eq.f32.partialorder %v2414, 8.507059e+37
        %v2416 = vand.u32 %v1717, 2147483648
        %v2417 = vor.u32 1.1754944e-38, %v2416
        %v2418 = vsel %vm2415, %v2417, %v2413
        %v2419 = vmul.f32 1.0, %v2418
        %v2420 = vrcp.pop %v1718
        %v2421 = vmul.f32 %v1718, %v2420
        %v2422 = vsub.f32 1.0, %v2421
        %v2423 = vmul.f32 %v2420, %v2422
        %v2424 = vadd.f32 %v2420, %v2423
        %vm2425 = vweird.f32 %v1718
        %vm2426 = vweird.f32 %v2420
        %vm2427 = vmor %vm2425, %vm2426
        %v2428 = vsel %vm2427, %v2420, %v2424
        %v2429 = vand.u32 2147483647, %v1718
        %vm2430 = vcmp.eq.f32.partialorder %v2429, 8.507059e+37
        %v2431 = vand.u32 %v1718, 2147483648
        %v2432 = vor.u32 1.1754944e-38, %v2431
        %v2433 = vsel %vm2430, %v2432, %v2428
        %v2434 = vmul.f32 1.0, %v2433
        %v2435 = vrcp.pop %v1719
        %v2436 = vmul.f32 %v1719, %v2435
        %v2437 = vsub.f32 1.0, %v2436
        %v2438 = vmul.f32 %v2435, %v2437
        %v2439 = vadd.f32 %v2435, %v2438
        %vm2440 = vweird.f32 %v1719
        %vm2441 = vweird.f32 %v2435
        %vm2442 = vmor %vm2440, %vm2441
        %v2443 = vsel %vm2442, %v2435, %v2439
        %v2444 = vand.u32 2147483647, %v1719
        %vm2445 = vcmp.eq.f32.partialorder %v2444, 8.507059e+37
        %v2446 = vand.u32 %v1719, 2147483648
        %v2447 = vor.u32 1.1754944e-38, %v2446
        %v2448 = vsel %vm2445, %v2447, %v2443
        %v2449 = vmul.f32 1.0, %v2448
        %v2450 = vrcp.pop %v1720
        %v2451 = vmul.f32 %v1720, %v2450
        %v2452 = vsub.f32 1.0, %v2451
        %v2453 = vmul.f32 %v2450, %v2452
        %v2454 = vadd.f32 %v2450, %v2453
        %vm2455 = vweird.f32 %v1720
        %vm2456 = vweird.f32 %v2450
        %vm2457 = vmor %vm2455, %vm2456
        %v2458 = vsel %vm2457, %v2450, %v2454
        %v2459 = vand.u32 2147483647, %v1720
        %vm2460 = vcmp.eq.f32.partialorder %v2459, 8.507059e+37
        %v2461 = vand.u32 %v1720, 2147483648
        %v2462 = vor.u32 1.1754944e-38, %v2461
        %v2463 = vsel %vm2460, %v2462, %v2458
        %v2464 = vmul.f32 1.0, %v2463
        %v2465 = vrcp.pop %v1721
        %v2466 = vmul.f32 %v1721, %v2465
        %v2467 = vsub.f32 1.0, %v2466
        %v2468 = vmul.f32 %v2465, %v2467
        %v2469 = vadd.f32 %v2465, %v2468
        %vm2470 = vweird.f32 %v1721
        %vm2471 = vweird.f32 %v2465
        %vm2472 = vmor %vm2470, %vm2471
        %v2473 = vsel %vm2472, %v2465, %v2469
        %v2474 = vand.u32 2147483647, %v1721
        %vm2475 = vcmp.eq.f32.partialorder %v2474, 8.507059e+37
        %v2476 = vand.u32 %v1721, 2147483648
        %v2477 = vor.u32 1.1754944e-38, %v2476
        %v2478 = vsel %vm2475, %v2477, %v2473
        %v2479 = vmul.f32 1.0, %v2478
        %v2480 = vrcp.pop %v1722
        %v2481 = vmul.f32 %v1722, %v2480
        %v2482 = vsub.f32 1.0, %v2481
        %v2483 = vmul.f32 %v2480, %v2482
        %v2484 = vadd.f32 %v2480, %v2483
        %vm2485 = vweird.f32 %v1722
        %vm2486 = vweird.f32 %v2480
        %vm2487 = vmor %vm2485, %vm2486
        %v2488 = vsel %vm2487, %v2480, %v2484
        %v2489 = vand.u32 2147483647, %v1722
        %vm2490 = vcmp.eq.f32.partialorder %v2489, 8.507059e+37
        %v2491 = vand.u32 %v1722, 2147483648
        %v2492 = vor.u32 1.1754944e-38, %v2491
        %v2493 = vsel %vm2490, %v2492, %v2488
        %v2494 = vmul.f32 1.0, %v2493
        %v2495 = vrcp.pop %v1723
        %v2496 = vmul.f32 %v1723, %v2495
        %v2497 = vsub.f32 1.0, %v2496
        %v2498 = vmul.f32 %v2495, %v2497
        %v2499 = vadd.f32 %v2495, %v2498
        %vm2500 = vweird.f32 %v1723
        %vm2501 = vweird.f32 %v2495
        %vm2502 = vmor %vm2500, %vm2501
        %v2503 = vsel %vm2502, %v2495, %v2499
        %v2504 = vand.u32 2147483647, %v1723
        %vm2505 = vcmp.eq.f32.partialorder %v2504, 8.507059e+37
        %v2506 = vand.u32 %v1723, 2147483648
        %v2507 = vor.u32 1.1754944e-38, %v2506
        %v2508 = vsel %vm2505, %v2507, %v2503
        %v2509 = vmul.f32 1.0, %v2508
        %v2510 = vrcp.pop %v1724
        %v2511 = vmul.f32 %v1724, %v2510
        %v2512 = vsub.f32 1.0, %v2511
        %v2513 = vmul.f32 %v2510, %v2512
        %v2514 = vadd.f32 %v2510, %v2513
        %vm2515 = vweird.f32 %v1724
        %vm2516 = vweird.f32 %v2510
        %vm2517 = vmor %vm2515, %vm2516
        %v2518 = vsel %vm2517, %v2510, %v2514
        %v2519 = vand.u32 2147483647, %v1724
        %vm2520 = vcmp.eq.f32.partialorder %v2519, 8.507059e+37
        %v2521 = vand.u32 %v1724, 2147483648
        %v2522 = vor.u32 1.1754944e-38, %v2521
        %v2523 = vsel %vm2520, %v2522, %v2518
        %v2524 = vmul.f32 1.0, %v2523
        %v2525 = vrcp.pop %v1725
        %v2526 = vmul.f32 %v1725, %v2525
        %v2527 = vsub.f32 1.0, %v2526
        %v2528 = vmul.f32 %v2525, %v2527
        %v2529 = vadd.f32 %v2525, %v2528
        %vm2530 = vweird.f32 %v1725
        %vm2531 = vweird.f32 %v2525
        %vm2532 = vmor %vm2530, %vm2531
        %v2533 = vsel %vm2532, %v2525, %v2529
        %v2534 = vand.u32 2147483647, %v1725
        %vm2535 = vcmp.eq.f32.partialorder %v2534, 8.507059e+37
        %v2536 = vand.u32 %v1725, 2147483648
        %v2537 = vor.u32 1.1754944e-38, %v2536
        %v2538 = vsel %vm2535, %v2537, %v2533
        %v2539 = vmul.f32 1.0, %v2538
        %v2540 = vrcp.pop %v1726
        %v2541 = vmul.f32 %v1726, %v2540
        %v2542 = vsub.f32 1.0, %v2541
        %v2543 = vmul.f32 %v2540, %v2542
        %v2544 = vadd.f32 %v2540, %v2543
        %vm2545 = vweird.f32 %v1726
        %vm2546 = vweird.f32 %v2540
        %vm2547 = vmor %vm2545, %vm2546
        %v2548 = vsel %vm2547, %v2540, %v2544
        %v2549 = vand.u32 2147483647, %v1726
        %vm2550 = vcmp.eq.f32.partialorder %v2549, 8.507059e+37
        %v2551 = vand.u32 %v1726, 2147483648
        %v2552 = vor.u32 1.1754944e-38, %v2551
        %v2553 = vsel %vm2550, %v2552, %v2548
        %v2554 = vmul.f32 1.0, %v2553
        %v2555 = vrcp.pop %v1727
        %v2556 = vmul.f32 %v1727, %v2555
        %v2557 = vsub.f32 1.0, %v2556
        %v2558 = vmul.f32 %v2555, %v2557
        %v2559 = vadd.f32 %v2555, %v2558
        %vm2560 = vweird.f32 %v1727
        %vm2561 = vweird.f32 %v2555
        %vm2562 = vmor %vm2560, %vm2561
        %v2563 = vsel %vm2562, %v2555, %v2559
        %v2564 = vand.u32 2147483647, %v1727
        %vm2565 = vcmp.eq.f32.partialorder %v2564, 8.507059e+37
        %v2566 = vand.u32 %v1727, 2147483648
        %v2567 = vor.u32 1.1754944e-38, %v2566
        %v2568 = vsel %vm2565, %v2567, %v2563
        %v2569 = vmul.f32 1.0, %v2568
        %v2570 = vrcp.pop %v1728
        %v2571 = vmul.f32 %v1728, %v2570
        %v2572 = vsub.f32 1.0, %v2571
        %v2573 = vmul.f32 %v2570, %v2572
        %v2574 = vadd.f32 %v2570, %v2573
        %vm2575 = vweird.f32 %v1728
        %vm2576 = vweird.f32 %v2570
        %vm2577 = vmor %vm2575, %vm2576
        %v2578 = vsel %vm2577, %v2570, %v2574
        %v2579 = vand.u32 2147483647, %v1728
        %vm2580 = vcmp.eq.f32.partialorder %v2579, 8.507059e+37
        %v2581 = vand.u32 %v1728, 2147483648
        %v2582 = vor.u32 1.1754944e-38, %v2581
        %v2583 = vsel %vm2580, %v2582, %v2578
        %v2584 = vmul.f32 1.0, %v2583
        %v2585 = vrcp.pop %v1729
        %v2586 = vmul.f32 %v1729, %v2585
        %v2587 = vsub.f32 1.0, %v2586
        %v2588 = vmul.f32 %v2585, %v2587
        %v2589 = vadd.f32 %v2585, %v2588
        %vm2590 = vweird.f32 %v1729
        %vm2591 = vweird.f32 %v2585
        %vm2592 = vmor %vm2590, %vm2591
        %v2593 = vsel %vm2592, %v2585, %v2589
        %v2594 = vand.u32 2147483647, %v1729
        %vm2595 = vcmp.eq.f32.partialorder %v2594, 8.507059e+37
        %v2596 = vand.u32 %v1729, 2147483648
        %v2597 = vor.u32 1.1754944e-38, %v2596
        %v2598 = vsel %vm2595, %v2597, %v2593
        %v2599 = vmul.f32 1.0, %v2598
        %v2600 = vrcp.pop %v1730
        %v2601 = vmul.f32 %v1730, %v2600
        %v2602 = vsub.f32 1.0, %v2601
        %v2603 = vmul.f32 %v2600, %v2602
        %v2604 = vadd.f32 %v2600, %v2603
        %vm2605 = vweird.f32 %v1730
        %vm2606 = vweird.f32 %v2600
        %vm2607 = vmor %vm2605, %vm2606
        %v2608 = vsel %vm2607, %v2600, %v2604
        %v2609 = vand.u32 2147483647, %v1730
        %vm2610 = vcmp.eq.f32.partialorder %v2609, 8.507059e+37
        %v2611 = vand.u32 %v1730, 2147483648
        %v2612 = vor.u32 1.1754944e-38, %v2611
        %v2613 = vsel %vm2610, %v2612, %v2608
        %v2614 = vmul.f32 1.0, %v2613
        %v2615 = vrcp.pop %v1731
        %v2616 = vmul.f32 %v1731, %v2615
        %v2617 = vsub.f32 1.0, %v2616
        %v2618 = vmul.f32 %v2615, %v2617
        %v2619 = vadd.f32 %v2615, %v2618
        %vm2620 = vweird.f32 %v1731
        %vm2621 = vweird.f32 %v2615
        %vm2622 = vmor %vm2620, %vm2621
        %v2623 = vsel %vm2622, %v2615, %v2619
        %v2624 = vand.u32 2147483647, %v1731
        %vm2625 = vcmp.eq.f32.partialorder %v2624, 8.507059e+37
        %v2626 = vand.u32 %v1731, 2147483648
        %v2627 = vor.u32 1.1754944e-38, %v2626
        %v2628 = vsel %vm2625, %v2627, %v2623
        %v2629 = vmul.f32 1.0, %v2628
        %v2630 = vrcp.pop %v1732
        %v2631 = vmul.f32 %v1732, %v2630
        %v2632 = vsub.f32 1.0, %v2631
        %v2633 = vmul.f32 %v2630, %v2632
        %v2634 = vadd.f32 %v2630, %v2633
        %vm2635 = vweird.f32 %v1732
        %vm2636 = vweird.f32 %v2630
        %vm2637 = vmor %vm2635, %vm2636
        %v2638 = vsel %vm2637, %v2630, %v2634
        %v2639 = vand.u32 2147483647, %v1732
        %vm2640 = vcmp.eq.f32.partialorder %v2639, 8.507059e+37
        %v2641 = vand.u32 %v1732, 2147483648
        %v2642 = vor.u32 1.1754944e-38, %v2641
        %v2643 = vsel %vm2640, %v2642, %v2638
        %v2644 = vmul.f32 1.0, %v2643
        %v2645 = vrcp.pop %v1733
        %v2646 = vmul.f32 %v1733, %v2645
        %v2647 = vsub.f32 1.0, %v2646
        %v2648 = vmul.f32 %v2645, %v2647
        %v2649 = vadd.f32 %v2645, %v2648
        %vm2650 = vweird.f32 %v1733
        %vm2651 = vweird.f32 %v2645
        %vm2652 = vmor %vm2650, %vm2651
        %v2653 = vsel %vm2652, %v2645, %v2649
        %v2654 = vand.u32 2147483647, %v1733
        %vm2655 = vcmp.eq.f32.partialorder %v2654, 8.507059e+37
        %v2656 = vand.u32 %v1733, 2147483648
        %v2657 = vor.u32 1.1754944e-38, %v2656
        %v2658 = vsel %vm2655, %v2657, %v2653
        %v2659 = vmul.f32 1.0, %v2658
        %v2660 = vrcp.pop %v1734
        %v2661 = vmul.f32 %v1734, %v2660
        %v2662 = vsub.f32 1.0, %v2661
        %v2663 = vmul.f32 %v2660, %v2662
        %v2664 = vadd.f32 %v2660, %v2663
        %vm2665 = vweird.f32 %v1734
        %vm2666 = vweird.f32 %v2660
        %vm2667 = vmor %vm2665, %vm2666
        %v2668 = vsel %vm2667, %v2660, %v2664
        %v2669 = vand.u32 2147483647, %v1734
        %vm2670 = vcmp.eq.f32.partialorder %v2669, 8.507059e+37
        %v2671 = vand.u32 %v1734, 2147483648
        %v2672 = vor.u32 1.1754944e-38, %v2671
        %v2673 = vsel %vm2670, %v2672, %v2668
        %v2674 = vmul.f32 1.0, %v2673
        %v2675 = vrcp.pop %v1735
        %v2676 = vmul.f32 %v1735, %v2675
        %v2677 = vsub.f32 1.0, %v2676
        %v2678 = vmul.f32 %v2675, %v2677
        %v2679 = vadd.f32 %v2675, %v2678
        %vm2680 = vweird.f32 %v1735
        %vm2681 = vweird.f32 %v2675
        %vm2682 = vmor %vm2680, %vm2681
        %v2683 = vsel %vm2682, %v2675, %v2679
        %v2684 = vand.u32 2147483647, %v1735
        %vm2685 = vcmp.eq.f32.partialorder %v2684, 8.507059e+37
        %v2686 = vand.u32 %v1735, 2147483648
        %v2687 = vor.u32 1.1754944e-38, %v2686
        %v2688 = vsel %vm2685, %v2687, %v2683
        %v2689 = vmul.f32 1.0, %v2688
        %v2690 = vrcp.pop %v1736
        %v2691 = vmul.f32 %v1736, %v2690
        %v2692 = vsub.f32 1.0, %v2691
        %v2693 = vmul.f32 %v2690, %v2692
        %v2694 = vadd.f32 %v2690, %v2693
        %vm2695 = vweird.f32 %v1736
        %vm2696 = vweird.f32 %v2690
        %vm2697 = vmor %vm2695, %vm2696
        %v2698 = vsel %vm2697, %v2690, %v2694
        %v2699 = vand.u32 2147483647, %v1736
        %vm2700 = vcmp.eq.f32.partialorder %v2699, 8.507059e+37
        %v2701 = vand.u32 %v1736, 2147483648
        %v2702 = vor.u32 1.1754944e-38, %v2701
        %v2703 = vsel %vm2700, %v2702, %v2698
        %v2704 = vmul.f32 1.0, %v2703
        %v2705 = vrcp.pop %v1737
        %v2706 = vmul.f32 %v1737, %v2705
        %v2707 = vsub.f32 1.0, %v2706
        %v2708 = vmul.f32 %v2705, %v2707
        %v2709 = vadd.f32 %v2705, %v2708
        %vm2710 = vweird.f32 %v1737
        %vm2711 = vweird.f32 %v2705
        %vm2712 = vmor %vm2710, %vm2711
        %v2713 = vsel %vm2712, %v2705, %v2709
        %v2714 = vand.u32 2147483647, %v1737
        %vm2715 = vcmp.eq.f32.partialorder %v2714, 8.507059e+37
        %v2716 = vand.u32 %v1737, 2147483648
        %v2717 = vor.u32 1.1754944e-38, %v2716
        %v2718 = vsel %vm2715, %v2717, %v2713
        %v2719 = vmul.f32 1.0, %v2718
        %v2720 = vrcp.pop %v1738
        %v2721 = vmul.f32 %v1738, %v2720
        %v2722 = vsub.f32 1.0, %v2721
        %v2723 = vmul.f32 %v2720, %v2722
        %v2724 = vadd.f32 %v2720, %v2723
        %vm2725 = vweird.f32 %v1738
        %vm2726 = vweird.f32 %v2720
        %vm2727 = vmor %vm2725, %vm2726
        %v2728 = vsel %vm2727, %v2720, %v2724
        %v2729 = vand.u32 2147483647, %v1738
        %vm2730 = vcmp.eq.f32.partialorder %v2729, 8.507059e+37
        %v2731 = vand.u32 %v1738, 2147483648
        %v2732 = vor.u32 1.1754944e-38, %v2731
        %v2733 = vsel %vm2730, %v2732, %v2728
        %v2734 = vmul.f32 1.0, %v2733
        %v2735 = vrcp.pop %v1739
        %v2736 = vmul.f32 %v1739, %v2735
        %v2737 = vsub.f32 1.0, %v2736
        %v2738 = vmul.f32 %v2735, %v2737
        %v2739 = vadd.f32 %v2735, %v2738
        %vm2740 = vweird.f32 %v1739
        %vm2741 = vweird.f32 %v2735
        %vm2742 = vmor %vm2740, %vm2741
        %v2743 = vsel %vm2742, %v2735, %v2739
        %v2744 = vand.u32 2147483647, %v1739
        %vm2745 = vcmp.eq.f32.partialorder %v2744, 8.507059e+37
        %v2746 = vand.u32 %v1739, 2147483648
        %v2747 = vor.u32 1.1754944e-38, %v2746
        %v2748 = vsel %vm2745, %v2747, %v2743
        %v2749 = vmul.f32 1.0, %v2748
        %v2750 = vrcp.pop %v1740
        %v2751 = vmul.f32 %v1740, %v2750
        %v2752 = vsub.f32 1.0, %v2751
        %v2753 = vmul.f32 %v2750, %v2752
        %v2754 = vadd.f32 %v2750, %v2753
        %vm2755 = vweird.f32 %v1740
        %vm2756 = vweird.f32 %v2750
        %vm2757 = vmor %vm2755, %vm2756
        %v2758 = vsel %vm2757, %v2750, %v2754
        %v2759 = vand.u32 2147483647, %v1740
        %vm2760 = vcmp.eq.f32.partialorder %v2759, 8.507059e+37
        %v2761 = vand.u32 %v1740, 2147483648
        %v2762 = vor.u32 1.1754944e-38, %v2761
        %v2763 = vsel %vm2760, %v2762, %v2758
        %v2764 = vmul.f32 1.0, %v2763
        %v2765 = vrcp.pop %v1741
        %v2766 = vmul.f32 %v1741, %v2765
        %v2767 = vsub.f32 1.0, %v2766
        %v2768 = vmul.f32 %v2765, %v2767
        %v2769 = vadd.f32 %v2765, %v2768
        %vm2770 = vweird.f32 %v1741
        %vm2771 = vweird.f32 %v2765
        %vm2772 = vmor %vm2770, %vm2771
        %v2773 = vsel %vm2772, %v2765, %v2769
        %v2774 = vand.u32 2147483647, %v1741
        %vm2775 = vcmp.eq.f32.partialorder %v2774, 8.507059e+37
        %v2776 = vand.u32 %v1741, 2147483648
        %v2777 = vor.u32 1.1754944e-38, %v2776
        %v2778 = vsel %vm2775, %v2777, %v2773
        %v2779 = vmul.f32 1.0, %v2778
        %v2780 = vrcp.pop %v1742
        %v2781 = vmul.f32 %v1742, %v2780
        %v2782 = vsub.f32 1.0, %v2781
        %v2783 = vmul.f32 %v2780, %v2782
        %v2784 = vadd.f32 %v2780, %v2783
        %vm2785 = vweird.f32 %v1742
        %vm2786 = vweird.f32 %v2780
        %vm2787 = vmor %vm2785, %vm2786
        %v2788 = vsel %vm2787, %v2780, %v2784
        %v2789 = vand.u32 2147483647, %v1742
        %vm2790 = vcmp.eq.f32.partialorder %v2789, 8.507059e+37
        %v2791 = vand.u32 %v1742, 2147483648
        %v2792 = vor.u32 1.1754944e-38, %v2791
        %v2793 = vsel %vm2790, %v2792, %v2788
        %v2794 = vmul.f32 1.0, %v2793
        %v2795 = vrcp.pop %v1743
        %v2796 = vmul.f32 %v1743, %v2795
        %v2797 = vsub.f32 1.0, %v2796
        %v2798 = vmul.f32 %v2795, %v2797
        %v2799 = vadd.f32 %v2795, %v2798
        %vm2800 = vweird.f32 %v1743
        %vm2801 = vweird.f32 %v2795
        %vm2802 = vmor %vm2800, %vm2801
        %v2803 = vsel %vm2802, %v2795, %v2799
        %v2804 = vand.u32 2147483647, %v1743
        %vm2805 = vcmp.eq.f32.partialorder %v2804, 8.507059e+37
        %v2806 = vand.u32 %v1743, 2147483648
        %v2807 = vor.u32 1.1754944e-38, %v2806
        %v2808 = vsel %vm2805, %v2807, %v2803
        %v2809 = vmul.f32 1.0, %v2808
        %v2810 = vrcp.pop %v1744
        %v2811 = vmul.f32 %v1744, %v2810
        %v2812 = vsub.f32 1.0, %v2811
        %v2813 = vmul.f32 %v2810, %v2812
        %v2814 = vadd.f32 %v2810, %v2813
        %vm2815 = vweird.f32 %v1744
        %vm2816 = vweird.f32 %v2810
        %vm2817 = vmor %vm2815, %vm2816
        %v2818 = vsel %vm2817, %v2810, %v2814
        %v2819 = vand.u32 2147483647, %v1744
        %vm2820 = vcmp.eq.f32.partialorder %v2819, 8.507059e+37
        %v2821 = vand.u32 %v1744, 2147483648
        %v2822 = vor.u32 1.1754944e-38, %v2821
        %v2823 = vsel %vm2820, %v2822, %v2818
        %v2824 = vmul.f32 1.0, %v2823
        %v2825 = vrcp.pop %v1745
        %v2826 = vmul.f32 %v1745, %v2825
        %v2827 = vsub.f32 1.0, %v2826
        %v2828 = vmul.f32 %v2825, %v2827
        %v2829 = vadd.f32 %v2825, %v2828
        %vm2830 = vweird.f32 %v1745
        %vm2831 = vweird.f32 %v2825
        %vm2832 = vmor %vm2830, %vm2831
        %v2833 = vsel %vm2832, %v2825, %v2829
        %v2834 = vand.u32 2147483647, %v1745
        %vm2835 = vcmp.eq.f32.partialorder %v2834, 8.507059e+37
        %v2836 = vand.u32 %v1745, 2147483648
        %v2837 = vor.u32 1.1754944e-38, %v2836
        %v2838 = vsel %vm2835, %v2837, %v2833
        %v2839 = vmul.f32 1.0, %v2838
        %v2840 = vrcp.pop %v1746
        %v2841 = vmul.f32 %v1746, %v2840
        %v2842 = vsub.f32 1.0, %v2841
        %v2843 = vmul.f32 %v2840, %v2842
        %v2844 = vadd.f32 %v2840, %v2843
        %vm2845 = vweird.f32 %v1746
        %vm2846 = vweird.f32 %v2840
        %vm2847 = vmor %vm2845, %vm2846
        %v2848 = vsel %vm2847, %v2840, %v2844
        %v2849 = vand.u32 2147483647, %v1746
        %vm2850 = vcmp.eq.f32.partialorder %v2849, 8.507059e+37
        %v2851 = vand.u32 %v1746, 2147483648
        %v2852 = vor.u32 1.1754944e-38, %v2851
        %v2853 = vsel %vm2850, %v2852, %v2848
        %v2854 = vmul.f32 1.0, %v2853
        %v2855 = vrcp.pop %v1747
        %v2856 = vmul.f32 %v1747, %v2855
        %v2857 = vsub.f32 1.0, %v2856
        %v2858 = vmul.f32 %v2855, %v2857
        %v2859 = vadd.f32 %v2855, %v2858
        %vm2860 = vweird.f32 %v1747
        %vm2861 = vweird.f32 %v2855
        %vm2862 = vmor %vm2860, %vm2861
        %v2863 = vsel %vm2862, %v2855, %v2859
        %v2864 = vand.u32 2147483647, %v1747
        %vm2865 = vcmp.eq.f32.partialorder %v2864, 8.507059e+37
        %v2866 = vand.u32 %v1747, 2147483648
        %v2867 = vor.u32 1.1754944e-38, %v2866
        %v2868 = vsel %vm2865, %v2867, %v2863
        %v2869 = vmul.f32 1.0, %v2868
        %v2870 = vrcp.pop %v1748
        %v2871 = vmul.f32 %v1748, %v2870
        %v2872 = vsub.f32 1.0, %v2871
        %v2873 = vmul.f32 %v2870, %v2872
        %v2874 = vadd.f32 %v2870, %v2873
        %vm2875 = vweird.f32 %v1748
        %vm2876 = vweird.f32 %v2870
        %vm2877 = vmor %vm2875, %vm2876
        %v2878 = vsel %vm2877, %v2870, %v2874
        %v2879 = vand.u32 2147483647, %v1748
        %vm2880 = vcmp.eq.f32.partialorder %v2879, 8.507059e+37
        %v2881 = vand.u32 %v1748, 2147483648
        %v2882 = vor.u32 1.1754944e-38, %v2881
        %v2883 = vsel %vm2880, %v2882, %v2878
        %v2884 = vmul.f32 1.0, %v2883
        %v2885 = vrcp.pop %v1749
        %v2886 = vmul.f32 %v1749, %v2885
        %v2887 = vsub.f32 1.0, %v2886
        %v2888 = vmul.f32 %v2885, %v2887
        %v2889 = vadd.f32 %v2885, %v2888
        %vm2890 = vweird.f32 %v1749
        %vm2891 = vweird.f32 %v2885
        %vm2892 = vmor %vm2890, %vm2891
        %v2893 = vsel %vm2892, %v2885, %v2889
        %v2894 = vand.u32 2147483647, %v1749
        %vm2895 = vcmp.eq.f32.partialorder %v2894, 8.507059e+37
        %v2896 = vand.u32 %v1749, 2147483648
        %v2897 = vor.u32 1.1754944e-38, %v2896
        %v2898 = vsel %vm2895, %v2897, %v2893
        %v2899 = vmul.f32 1.0, %v2898
        %v2900 = vrcp.pop %v1750
        %v2901 = vmul.f32 %v1750, %v2900
        %v2902 = vsub.f32 1.0, %v2901
        %v2903 = vmul.f32 %v2900, %v2902
        %v2904 = vadd.f32 %v2900, %v2903
        %vm2905 = vweird.f32 %v1750
        %vm2906 = vweird.f32 %v2900
        %vm2907 = vmor %vm2905, %vm2906
        %v2908 = vsel %vm2907, %v2900, %v2904
        %v2909 = vand.u32 2147483647, %v1750
        %vm2910 = vcmp.eq.f32.partialorder %v2909, 8.507059e+37
        %v2911 = vand.u32 %v1750, 2147483648
        %v2912 = vor.u32 1.1754944e-38, %v2911
        %v2913 = vsel %vm2910, %v2912, %v2908
        %v2914 = vmul.f32 1.0, %v2913
        %v2915 = vrcp.pop %v1751
        %v2916 = vmul.f32 %v1751, %v2915
        %v2917 = vsub.f32 1.0, %v2916
        %v2918 = vmul.f32 %v2915, %v2917
        %v2919 = vadd.f32 %v2915, %v2918
        %vm2920 = vweird.f32 %v1751
        %vm2921 = vweird.f32 %v2915
        %vm2922 = vmor %vm2920, %vm2921
        %v2923 = vsel %vm2922, %v2915, %v2919
        %v2924 = vand.u32 2147483647, %v1751
        %vm2925 = vcmp.eq.f32.partialorder %v2924, 8.507059e+37
        %v2926 = vand.u32 %v1751, 2147483648
        %v2927 = vor.u32 1.1754944e-38, %v2926
        %v2928 = vsel %vm2925, %v2927, %v2923
        %v2929 = vmul.f32 1.0, %v2928
        %v2930 = vrcp.pop %v1752
        %v2931 = vmul.f32 %v1752, %v2930
        %v2932 = vsub.f32 1.0, %v2931
        %v2933 = vmul.f32 %v2930, %v2932
        %v2934 = vadd.f32 %v2930, %v2933
        %vm2935 = vweird.f32 %v1752
        %vm2936 = vweird.f32 %v2930
        %vm2937 = vmor %vm2935, %vm2936
        %v2938 = vsel %vm2937, %v2930, %v2934
        %v2939 = vand.u32 2147483647, %v1752
        %vm2940 = vcmp.eq.f32.partialorder %v2939, 8.507059e+37
        %v2941 = vand.u32 %v1752, 2147483648
        %v2942 = vor.u32 1.1754944e-38, %v2941
        %v2943 = vsel %vm2940, %v2942, %v2938
        %v2944 = vmul.f32 1.0, %v2943
        %v2945 = vrcp.pop %v1753
        %v2946 = vmul.f32 %v1753, %v2945
        %v2947 = vsub.f32 1.0, %v2946
        %v2948 = vmul.f32 %v2945, %v2947
        %v2949 = vadd.f32 %v2945, %v2948
        %vm2950 = vweird.f32 %v1753
        %vm2951 = vweird.f32 %v2945
        %vm2952 = vmor %vm2950, %vm2951
        %v2953 = vsel %vm2952, %v2945, %v2949
        %v2954 = vand.u32 2147483647, %v1753
        %vm2955 = vcmp.eq.f32.partialorder %v2954, 8.507059e+37
        %v2956 = vand.u32 %v1753, 2147483648
        %v2957 = vor.u32 1.1754944e-38, %v2956
        %v2958 = vsel %vm2955, %v2957, %v2953
        %v2959 = vmul.f32 1.0, %v2958
        %v2960 = vrcp.pop %v1754
        %v2961 = vmul.f32 %v1754, %v2960
        %v2962 = vsub.f32 1.0, %v2961
        %v2963 = vmul.f32 %v2960, %v2962
        %v2964 = vadd.f32 %v2960, %v2963
        %vm2965 = vweird.f32 %v1754
        %vm2966 = vweird.f32 %v2960
        %vm2967 = vmor %vm2965, %vm2966
        %v2968 = vsel %vm2967, %v2960, %v2964
        %v2969 = vand.u32 2147483647, %v1754
        %vm2970 = vcmp.eq.f32.partialorder %v2969, 8.507059e+37
        %v2971 = vand.u32 %v1754, 2147483648
        %v2972 = vor.u32 1.1754944e-38, %v2971
        %v2973 = vsel %vm2970, %v2972, %v2968
        %v2974 = vmul.f32 1.0, %v2973
        %v2975 = vrcp.pop %v1755
        %v2976 = vmul.f32 %v1755, %v2975
        %v2977 = vsub.f32 1.0, %v2976
        %v2978 = vmul.f32 %v2975, %v2977
        %v2979 = vadd.f32 %v2975, %v2978
        %vm2980 = vweird.f32 %v1755
        %vm2981 = vweird.f32 %v2975
        %vm2982 = vmor %vm2980, %vm2981
        %v2983 = vsel %vm2982, %v2975, %v2979
        %v2984 = vand.u32 2147483647, %v1755
        %vm2985 = vcmp.eq.f32.partialorder %v2984, 8.507059e+37
        %v2986 = vand.u32 %v1755, 2147483648
        %v2987 = vor.u32 1.1754944e-38, %v2986
        %v2988 = vsel %vm2985, %v2987, %v2983
        %v2989 = vmul.f32 1.0, %v2988
        %v2990 = vrcp.pop %v1756
        %v2991 = vmul.f32 %v1756, %v2990
        %v2992 = vsub.f32 1.0, %v2991
        %v2993 = vmul.f32 %v2990, %v2992
        %v2994 = vadd.f32 %v2990, %v2993
        %vm2995 = vweird.f32 %v1756
        %vm2996 = vweird.f32 %v2990
        %vm2997 = vmor %vm2995, %vm2996
        %v2998 = vsel %vm2997, %v2990, %v2994
        %v2999 = vand.u32 2147483647, %v1756
        %vm3000 = vcmp.eq.f32.partialorder %v2999, 8.507059e+37
        %v3001 = vand.u32 %v1756, 2147483648
        %v3002 = vor.u32 1.1754944e-38, %v3001
        %v3003 = vsel %vm3000, %v3002, %v2998
        %v3004 = vmul.f32 1.0, %v3003
        %v3005 = vrcp.pop %v1757
        %v3006 = vmul.f32 %v1757, %v3005
        %v3007 = vsub.f32 1.0, %v3006
        %v3008 = vmul.f32 %v3005, %v3007
        %v3009 = vadd.f32 %v3005, %v3008
        %vm3010 = vweird.f32 %v1757
        %vm3011 = vweird.f32 %v3005
        %vm3012 = vmor %vm3010, %vm3011
        %v3013 = vsel %vm3012, %v3005, %v3009
        %v3014 = vand.u32 2147483647, %v1757
        %vm3015 = vcmp.eq.f32.partialorder %v3014, 8.507059e+37
        %v3016 = vand.u32 %v1757, 2147483648
        %v3017 = vor.u32 1.1754944e-38, %v3016
        %v3018 = vsel %vm3015, %v3017, %v3013
        %v3019 = vmul.f32 1.0, %v3018
        %v3020 = vrcp.pop %v1758
        %v3021 = vmul.f32 %v1758, %v3020
        %v3022 = vsub.f32 1.0, %v3021
        %v3023 = vmul.f32 %v3020, %v3022
        %v3024 = vadd.f32 %v3020, %v3023
        %vm3025 = vweird.f32 %v1758
        %vm3026 = vweird.f32 %v3020
        %vm3027 = vmor %vm3025, %vm3026
        %v3028 = vsel %vm3027, %v3020, %v3024
        %v3029 = vand.u32 2147483647, %v1758
        %vm3030 = vcmp.eq.f32.partialorder %v3029, 8.507059e+37
        %v3031 = vand.u32 %v1758, 2147483648
        %v3032 = vor.u32 1.1754944e-38, %v3031
        %v3033 = vsel %vm3030, %v3032, %v3028
        %v3034 = vmul.f32 1.0, %v3033
        %v3035 = vrcp.pop %v1759
        %v3036 = vmul.f32 %v1759, %v3035
        %v3037 = vsub.f32 1.0, %v3036
        %v3038 = vmul.f32 %v3035, %v3037
        %v3039 = vadd.f32 %v3035, %v3038
        %vm3040 = vweird.f32 %v1759
        %vm3041 = vweird.f32 %v3035
        %vm3042 = vmor %vm3040, %vm3041
        %v3043 = vsel %vm3042, %v3035, %v3039
        %v3044 = vand.u32 2147483647, %v1759
        %vm3045 = vcmp.eq.f32.partialorder %v3044, 8.507059e+37
        %v3046 = vand.u32 %v1759, 2147483648
        %v3047 = vor.u32 1.1754944e-38, %v3046
        %v3048 = vsel %vm3045, %v3047, %v3043
        %v3049 = vmul.f32 1.0, %v3048
        %v3050 = vrcp.pop %v1760
        %v3051 = vmul.f32 %v1760, %v3050
        %v3052 = vsub.f32 1.0, %v3051
        %v3053 = vmul.f32 %v3050, %v3052
        %v3054 = vadd.f32 %v3050, %v3053
        %vm3055 = vweird.f32 %v1760
        %vm3056 = vweird.f32 %v3050
        %vm3057 = vmor %vm3055, %vm3056
        %v3058 = vsel %vm3057, %v3050, %v3054
        %v3059 = vand.u32 2147483647, %v1760
        %vm3060 = vcmp.eq.f32.partialorder %v3059, 8.507059e+37
        %v3061 = vand.u32 %v1760, 2147483648
        %v3062 = vor.u32 1.1754944e-38, %v3061
        %v3063 = vsel %vm3060, %v3062, %v3058
        %v3064 = vmul.f32 1.0, %v3063
        %v3065 = vrcp.pop %v1761
        %v3066 = vmul.f32 %v1761, %v3065
        %v3067 = vsub.f32 1.0, %v3066
        %v3068 = vmul.f32 %v3065, %v3067
        %v3069 = vadd.f32 %v3065, %v3068
        %vm3070 = vweird.f32 %v1761
        %vm3071 = vweird.f32 %v3065
        %vm3072 = vmor %vm3070, %vm3071
        %v3073 = vsel %vm3072, %v3065, %v3069
        %v3074 = vand.u32 2147483647, %v1761
        %vm3075 = vcmp.eq.f32.partialorder %v3074, 8.507059e+37
        %v3076 = vand.u32 %v1761, 2147483648
        %v3077 = vor.u32 1.1754944e-38, %v3076
        %v3078 = vsel %vm3075, %v3077, %v3073
        %v3079 = vmul.f32 1.0, %v3078
        %v3080 = vrcp.pop %v1762
        %v3081 = vmul.f32 %v1762, %v3080
        %v3082 = vsub.f32 1.0, %v3081
        %v3083 = vmul.f32 %v3080, %v3082
        %v3084 = vadd.f32 %v3080, %v3083
        %vm3085 = vweird.f32 %v1762
        %vm3086 = vweird.f32 %v3080
        %vm3087 = vmor %vm3085, %vm3086
        %v3088 = vsel %vm3087, %v3080, %v3084
        %v3089 = vand.u32 2147483647, %v1762
        %vm3090 = vcmp.eq.f32.partialorder %v3089, 8.507059e+37
        %v3091 = vand.u32 %v1762, 2147483648
        %v3092 = vor.u32 1.1754944e-38, %v3091
        %v3093 = vsel %vm3090, %v3092, %v3088
        %v3094 = vmul.f32 1.0, %v3093
        %v3095 = vrcp.pop %v1763
        %v3096 = vmul.f32 %v1763, %v3095
        %v3097 = vsub.f32 1.0, %v3096
        %v3098 = vmul.f32 %v3095, %v3097
        %v3099 = vadd.f32 %v3095, %v3098
        %vm3100 = vweird.f32 %v1763
        %vm3101 = vweird.f32 %v3095
        %vm3102 = vmor %vm3100, %vm3101
        %v3103 = vsel %vm3102, %v3095, %v3099
        %v3104 = vand.u32 2147483647, %v1763
        %vm3105 = vcmp.eq.f32.partialorder %v3104, 8.507059e+37
        %v3106 = vand.u32 %v1763, 2147483648
        %v3107 = vor.u32 1.1754944e-38, %v3106
        %v3108 = vsel %vm3105, %v3107, %v3103
        %v3109 = vmul.f32 1.0, %v3108
        %v3110 = vrcp.pop %v1764
        %v3111 = vmul.f32 %v1764, %v3110
        %v3112 = vsub.f32 1.0, %v3111
        %v3113 = vmul.f32 %v3110, %v3112
        %v3114 = vadd.f32 %v3110, %v3113
        %vm3115 = vweird.f32 %v1764
        %vm3116 = vweird.f32 %v3110
        %vm3117 = vmor %vm3115, %vm3116
        %v3118 = vsel %vm3117, %v3110, %v3114
        %v3119 = vand.u32 2147483647, %v1764
        %vm3120 = vcmp.eq.f32.partialorder %v3119, 8.507059e+37
        %v3121 = vand.u32 %v1764, 2147483648
        %v3122 = vor.u32 1.1754944e-38, %v3121
        %v3123 = vsel %vm3120, %v3122, %v3118
        %v3124 = vmul.f32 1.0, %v3123
        %v3125 = vrcp.pop %v1765
        %v3126 = vmul.f32 %v1765, %v3125
        %v3127 = vsub.f32 1.0, %v3126
        %v3128 = vmul.f32 %v3125, %v3127
        %v3129 = vadd.f32 %v3125, %v3128
        %vm3130 = vweird.f32 %v1765
        %vm3131 = vweird.f32 %v3125
        %vm3132 = vmor %vm3130, %vm3131
        %v3133 = vsel %vm3132, %v3125, %v3129
        %v3134 = vand.u32 2147483647, %v1765
        %vm3135 = vcmp.eq.f32.partialorder %v3134, 8.507059e+37
        %v3136 = vand.u32 %v1765, 2147483648
        %v3137 = vor.u32 1.1754944e-38, %v3136
        %v3138 = vsel %vm3135, %v3137, %v3133
        %v3139 = vmul.f32 1.0, %v3138
        %v3140 = vrcp.pop %v1766
        %v3141 = vmul.f32 %v1766, %v3140
        %v3142 = vsub.f32 1.0, %v3141
        %v3143 = vmul.f32 %v3140, %v3142
        %v3144 = vadd.f32 %v3140, %v3143
        %vm3145 = vweird.f32 %v1766
        %vm3146 = vweird.f32 %v3140
        %vm3147 = vmor %vm3145, %vm3146
        %v3148 = vsel %vm3147, %v3140, %v3144
        %v3149 = vand.u32 2147483647, %v1766
        %vm3150 = vcmp.eq.f32.partialorder %v3149, 8.507059e+37
        %v3151 = vand.u32 %v1766, 2147483648
        %v3152 = vor.u32 1.1754944e-38, %v3151
        %v3153 = vsel %vm3150, %v3152, %v3148
        %v3154 = vmul.f32 1.0, %v3153
        %v3155 = vrcp.pop %v1767
        %v3156 = vmul.f32 %v1767, %v3155
        %v3157 = vsub.f32 1.0, %v3156
        %v3158 = vmul.f32 %v3155, %v3157
        %v3159 = vadd.f32 %v3155, %v3158
        %vm3160 = vweird.f32 %v1767
        %vm3161 = vweird.f32 %v3155
        %vm3162 = vmor %vm3160, %vm3161
        %v3163 = vsel %vm3162, %v3155, %v3159
        %v3164 = vand.u32 2147483647, %v1767
        %vm3165 = vcmp.eq.f32.partialorder %v3164, 8.507059e+37
        %v3166 = vand.u32 %v1767, 2147483648
        %v3167 = vor.u32 1.1754944e-38, %v3166
        %v3168 = vsel %vm3165, %v3167, %v3163
        %v3169 = vmul.f32 1.0, %v3168
        %v3170 = vrcp.pop %v1768
        %v3171 = vmul.f32 %v1768, %v3170
        %v3172 = vsub.f32 1.0, %v3171
        %v3173 = vmul.f32 %v3170, %v3172
        %v3174 = vadd.f32 %v3170, %v3173
        %vm3175 = vweird.f32 %v1768
        %vm3176 = vweird.f32 %v3170
        %vm3177 = vmor %vm3175, %vm3176
        %v3178 = vsel %vm3177, %v3170, %v3174
        %v3179 = vand.u32 2147483647, %v1768
        %vm3180 = vcmp.eq.f32.partialorder %v3179, 8.507059e+37
        %v3181 = vand.u32 %v1768, 2147483648
        %v3182 = vor.u32 1.1754944e-38, %v3181
        %v3183 = vsel %vm3180, %v3182, %v3178
        %v3184 = vmul.f32 1.0, %v3183
        %v3185 = vrcp.pop %v1769
        %v3186 = vmul.f32 %v1769, %v3185
        %v3187 = vsub.f32 1.0, %v3186
        %v3188 = vmul.f32 %v3185, %v3187
        %v3189 = vadd.f32 %v3185, %v3188
        %vm3190 = vweird.f32 %v1769
        %vm3191 = vweird.f32 %v3185
        %vm3192 = vmor %vm3190, %vm3191
        %v3193 = vsel %vm3192, %v3185, %v3189
        %v3194 = vand.u32 2147483647, %v1769
        %vm3195 = vcmp.eq.f32.partialorder %v3194, 8.507059e+37
        %v3196 = vand.u32 %v1769, 2147483648
        %v3197 = vor.u32 1.1754944e-38, %v3196
        %v3198 = vsel %vm3195, %v3197, %v3193
        %v3199 = vmul.f32 1.0, %v3198
        %v3200 = vrcp.pop %v1770
        %v3201 = vmul.f32 %v1770, %v3200
        %v3202 = vsub.f32 1.0, %v3201
        %v3203 = vmul.f32 %v3200, %v3202
        %v3204 = vadd.f32 %v3200, %v3203
        %vm3205 = vweird.f32 %v1770
        %vm3206 = vweird.f32 %v3200
        %vm3207 = vmor %vm3205, %vm3206
        %v3208 = vsel %vm3207, %v3200, %v3204
        %v3209 = vand.u32 2147483647, %v1770
        %vm3210 = vcmp.eq.f32.partialorder %v3209, 8.507059e+37
        %v3211 = vand.u32 %v1770, 2147483648
        %v3212 = vor.u32 1.1754944e-38, %v3211
        %v3213 = vsel %vm3210, %v3212, %v3208
        %v3214 = vmul.f32 1.0, %v3213
        %v3215 = vrcp.pop %v1771
        %v3216 = vmul.f32 %v1771, %v3215
        %v3217 = vsub.f32 1.0, %v3216
        %v3218 = vmul.f32 %v3215, %v3217
        %v3219 = vadd.f32 %v3215, %v3218
        %vm3220 = vweird.f32 %v1771
        %vm3221 = vweird.f32 %v3215
        %vm3222 = vmor %vm3220, %vm3221
        %v3223 = vsel %vm3222, %v3215, %v3219
        %v3224 = vand.u32 2147483647, %v1771
        %vm3225 = vcmp.eq.f32.partialorder %v3224, 8.507059e+37
        %v3226 = vand.u32 %v1771, 2147483648
        %v3227 = vor.u32 1.1754944e-38, %v3226
        %v3228 = vsel %vm3225, %v3227, %v3223
        %v3229 = vmul.f32 1.0, %v3228
        %v3230 = vrcp.pop %v1772
        %v3231 = vmul.f32 %v1772, %v3230
        %v3232 = vsub.f32 1.0, %v3231
        %v3233 = vmul.f32 %v3230, %v3232
        %v3234 = vadd.f32 %v3230, %v3233
        %vm3235 = vweird.f32 %v1772
        %vm3236 = vweird.f32 %v3230
        %vm3237 = vmor %vm3235, %vm3236
        %v3238 = vsel %vm3237, %v3230, %v3234
        %v3239 = vand.u32 2147483647, %v1772
        %vm3240 = vcmp.eq.f32.partialorder %v3239, 8.507059e+37
        %v3241 = vand.u32 %v1772, 2147483648
        %v3242 = vor.u32 1.1754944e-38, %v3241
        %v3243 = vsel %vm3240, %v3242, %v3238
        %v3244 = vmul.f32 1.0, %v3243
        %v3245 = vrcp.pop %v1773
        %v3246 = vmul.f32 %v1773, %v3245
        %v3247 = vsub.f32 1.0, %v3246
        %v3248 = vmul.f32 %v3245, %v3247
        %v3249 = vadd.f32 %v3245, %v3248
        %vm3250 = vweird.f32 %v1773
        %vm3251 = vweird.f32 %v3245
        %vm3252 = vmor %vm3250, %vm3251
        %v3253 = vsel %vm3252, %v3245, %v3249
        %v3254 = vand.u32 2147483647, %v1773
        %vm3255 = vcmp.eq.f32.partialorder %v3254, 8.507059e+37
        %v3256 = vand.u32 %v1773, 2147483648
        %v3257 = vor.u32 1.1754944e-38, %v3256
        %v3258 = vsel %vm3255, %v3257, %v3253
        %v3259 = vmul.f32 1.0, %v3258
        %v3260 = vrcp.pop %v1774
        %v3261 = vmul.f32 %v1774, %v3260
        %v3262 = vsub.f32 1.0, %v3261
        %v3263 = vmul.f32 %v3260, %v3262
        %v3264 = vadd.f32 %v3260, %v3263
        %vm3265 = vweird.f32 %v1774
        %vm3266 = vweird.f32 %v3260
        %vm3267 = vmor %vm3265, %vm3266
        %v3268 = vsel %vm3267, %v3260, %v3264
        %v3269 = vand.u32 2147483647, %v1774
        %vm3270 = vcmp.eq.f32.partialorder %v3269, 8.507059e+37
        %v3271 = vand.u32 %v1774, 2147483648
        %v3272 = vor.u32 1.1754944e-38, %v3271
        %v3273 = vsel %vm3270, %v3272, %v3268
        %v3274 = vmul.f32 1.0, %v3273
        %v3275 = vrcp.pop %v1775
        %v3276 = vmul.f32 %v1775, %v3275
        %v3277 = vsub.f32 1.0, %v3276
        %v3278 = vmul.f32 %v3275, %v3277
        %v3279 = vadd.f32 %v3275, %v3278
        %vm3280 = vweird.f32 %v1775
        %vm3281 = vweird.f32 %v3275
        %vm3282 = vmor %vm3280, %vm3281
        %v3283 = vsel %vm3282, %v3275, %v3279
        %v3284 = vand.u32 2147483647, %v1775
        %vm3285 = vcmp.eq.f32.partialorder %v3284, 8.507059e+37
        %v3286 = vand.u32 %v1775, 2147483648
        %v3287 = vor.u32 1.1754944e-38, %v3286
        %v3288 = vsel %vm3285, %v3287, %v3283
        %v3289 = vmul.f32 1.0, %v3288
        %v3290 = vrcp.pop %v1776
        %v3291 = vmul.f32 %v1776, %v3290
        %v3292 = vsub.f32 1.0, %v3291
        %v3293 = vmul.f32 %v3290, %v3292
        %v3294 = vadd.f32 %v3290, %v3293
        %vm3295 = vweird.f32 %v1776
        %vm3296 = vweird.f32 %v3290
        %vm3297 = vmor %vm3295, %vm3296
        %v3298 = vsel %vm3297, %v3290, %v3294
        %v3299 = vand.u32 2147483647, %v1776
        %vm3300 = vcmp.eq.f32.partialorder %v3299, 8.507059e+37
        %v3301 = vand.u32 %v1776, 2147483648
        %v3302 = vor.u32 1.1754944e-38, %v3301
        %v3303 = vsel %vm3300, %v3302, %v3298
        %v3304 = vmul.f32 1.0, %v3303
        %v3305 = vrcp.pop %v1777
        %v3306 = vmul.f32 %v1777, %v3305
        %v3307 = vsub.f32 1.0, %v3306
        %v3308 = vmul.f32 %v3305, %v3307
        %v3309 = vadd.f32 %v3305, %v3308
        %vm3310 = vweird.f32 %v1777
        %vm3311 = vweird.f32 %v3305
        %vm3312 = vmor %vm3310, %vm3311
        %v3313 = vsel %vm3312, %v3305, %v3309
        %v3314 = vand.u32 2147483647, %v1777
        %vm3315 = vcmp.eq.f32.partialorder %v3314, 8.507059e+37
        %v3316 = vand.u32 %v1777, 2147483648
        %v3317 = vor.u32 1.1754944e-38, %v3316
        %v3318 = vsel %vm3315, %v3317, %v3313
        %v3319 = vmul.f32 1.0, %v3318
        %v3320 = vrcp.pop %v1778
        %v3321 = vmul.f32 %v1778, %v3320
        %v3322 = vsub.f32 1.0, %v3321
        %v3323 = vmul.f32 %v3320, %v3322
        %v3324 = vadd.f32 %v3320, %v3323
        %vm3325 = vweird.f32 %v1778
        %vm3326 = vweird.f32 %v3320
        %vm3327 = vmor %vm3325, %vm3326
        %v3328 = vsel %vm3327, %v3320, %v3324
        %v3329 = vand.u32 2147483647, %v1778
        %vm3330 = vcmp.eq.f32.partialorder %v3329, 8.507059e+37
        %v3331 = vand.u32 %v1778, 2147483648
        %v3332 = vor.u32 1.1754944e-38, %v3331
        %v3333 = vsel %vm3330, %v3332, %v3328
        %v3334 = vmul.f32 1.0, %v3333
        %v3335 = vrcp.pop %v1779
        %v3336 = vmul.f32 %v1779, %v3335
        %v3337 = vsub.f32 1.0, %v3336
        %v3338 = vmul.f32 %v3335, %v3337
        %v3339 = vadd.f32 %v3335, %v3338
        %vm3340 = vweird.f32 %v1779
        %vm3341 = vweird.f32 %v3335
        %vm3342 = vmor %vm3340, %vm3341
        %v3343 = vsel %vm3342, %v3335, %v3339
        %v3344 = vand.u32 2147483647, %v1779
        %vm3345 = vcmp.eq.f32.partialorder %v3344, 8.507059e+37
        %v3346 = vand.u32 %v1779, 2147483648
        %v3347 = vor.u32 1.1754944e-38, %v3346
        %v3348 = vsel %vm3345, %v3347, %v3343
        %v3349 = vmul.f32 1.0, %v3348
        %v3350 = vrcp.pop %v1780
        %v3351 = vmul.f32 %v1780, %v3350
        %v3352 = vsub.f32 1.0, %v3351
        %v3353 = vmul.f32 %v3350, %v3352
        %v3354 = vadd.f32 %v3350, %v3353
        %vm3355 = vweird.f32 %v1780
        %vm3356 = vweird.f32 %v3350
        %vm3357 = vmor %vm3355, %vm3356
        %v3358 = vsel %vm3357, %v3350, %v3354
        %v3359 = vand.u32 2147483647, %v1780
        %vm3360 = vcmp.eq.f32.partialorder %v3359, 8.507059e+37
        %v3361 = vand.u32 %v1780, 2147483648
        %v3362 = vor.u32 1.1754944e-38, %v3361
        %v3363 = vsel %vm3360, %v3362, %v3358
        %v3364 = vmul.f32 1.0, %v3363
        %v3365 = vrcp.pop %v1781
        %v3366 = vmul.f32 %v1781, %v3365
        %v3367 = vsub.f32 1.0, %v3366
        %v3368 = vmul.f32 %v3365, %v3367
        %v3369 = vadd.f32 %v3365, %v3368
        %vm3370 = vweird.f32 %v1781
        %vm3371 = vweird.f32 %v3365
        %vm3372 = vmor %vm3370, %vm3371
        %v3373 = vsel %vm3372, %v3365, %v3369
        %v3374 = vand.u32 2147483647, %v1781
        %vm3375 = vcmp.eq.f32.partialorder %v3374, 8.507059e+37
        %v3376 = vand.u32 %v1781, 2147483648
        %v3377 = vor.u32 1.1754944e-38, %v3376
        %v3378 = vsel %vm3375, %v3377, %v3373
        %v3379 = vmul.f32 1.0, %v3378
        %v3380 = vrcp.pop %v1782
        %v3381 = vmul.f32 %v1782, %v3380
        %v3382 = vsub.f32 1.0, %v3381
        %v3383 = vmul.f32 %v3380, %v3382
        %v3384 = vadd.f32 %v3380, %v3383
        %vm3385 = vweird.f32 %v1782
        %vm3386 = vweird.f32 %v3380
        %vm3387 = vmor %vm3385, %vm3386
        %v3388 = vsel %vm3387, %v3380, %v3384
        %v3389 = vand.u32 2147483647, %v1782
        %vm3390 = vcmp.eq.f32.partialorder %v3389, 8.507059e+37
        %v3391 = vand.u32 %v1782, 2147483648
        %v3392 = vor.u32 1.1754944e-38, %v3391
        %v3393 = vsel %vm3390, %v3392, %v3388
        %v3394 = vmul.f32 1.0, %v3393
        %v3395 = vrcp.pop %v1783
        %v3396 = vmul.f32 %v1783, %v3395
        %v3397 = vsub.f32 1.0, %v3396
        %v3398 = vmul.f32 %v3395, %v3397
        %v3399 = vadd.f32 %v3395, %v3398
        %vm3400 = vweird.f32 %v1783
        %vm3401 = vweird.f32 %v3395
        %vm3402 = vmor %vm3400, %vm3401
        %v3403 = vsel %vm3402, %v3395, %v3399
        %v3404 = vand.u32 2147483647, %v1783
        %vm3405 = vcmp.eq.f32.partialorder %v3404, 8.507059e+37
        %v3406 = vand.u32 %v1783, 2147483648
        %v3407 = vor.u32 1.1754944e-38, %v3406
        %v3408 = vsel %vm3405, %v3407, %v3403
        %v3409 = vmul.f32 1.0, %v3408
        %v3410 = vrcp.pop %v1784
        %v3411 = vmul.f32 %v1784, %v3410
        %v3412 = vsub.f32 1.0, %v3411
        %v3413 = vmul.f32 %v3410, %v3412
        %v3414 = vadd.f32 %v3410, %v3413
        %vm3415 = vweird.f32 %v1784
        %vm3416 = vweird.f32 %v3410
        %vm3417 = vmor %vm3415, %vm3416
        %v3418 = vsel %vm3417, %v3410, %v3414
        %v3419 = vand.u32 2147483647, %v1784
        %vm3420 = vcmp.eq.f32.partialorder %v3419, 8.507059e+37
        %v3421 = vand.u32 %v1784, 2147483648
        %v3422 = vor.u32 1.1754944e-38, %v3421
        %v3423 = vsel %vm3420, %v3422, %v3418
        %v3424 = vmul.f32 1.0, %v3423
        %v3425 = vrcp.pop %v1785
        %v3426 = vmul.f32 %v1785, %v3425
        %v3427 = vsub.f32 1.0, %v3426
        %v3428 = vmul.f32 %v3425, %v3427
        %v3429 = vadd.f32 %v3425, %v3428
        %vm3430 = vweird.f32 %v1785
        %vm3431 = vweird.f32 %v3425
        %vm3432 = vmor %vm3430, %vm3431
        %v3433 = vsel %vm3432, %v3425, %v3429
        %v3434 = vand.u32 2147483647, %v1785
        %vm3435 = vcmp.eq.f32.partialorder %v3434, 8.507059e+37
        %v3436 = vand.u32 %v1785, 2147483648
        %v3437 = vor.u32 1.1754944e-38, %v3436
        %v3438 = vsel %vm3435, %v3437, %v3433
        %v3439 = vmul.f32 1.0, %v3438
        %v3440 = vrcp.pop %v1786
        %v3441 = vmul.f32 %v1786, %v3440
        %v3442 = vsub.f32 1.0, %v3441
        %v3443 = vmul.f32 %v3440, %v3442
        %v3444 = vadd.f32 %v3440, %v3443
        %vm3445 = vweird.f32 %v1786
        %vm3446 = vweird.f32 %v3440
        %vm3447 = vmor %vm3445, %vm3446
        %v3448 = vsel %vm3447, %v3440, %v3444
        %v3449 = vand.u32 2147483647, %v1786
        %vm3450 = vcmp.eq.f32.partialorder %v3449, 8.507059e+37
        %v3451 = vand.u32 %v1786, 2147483648
        %v3452 = vor.u32 1.1754944e-38, %v3451
        %v3453 = vsel %vm3450, %v3452, %v3448
        %v3454 = vmul.f32 1.0, %v3453
        %v3455 = vrcp.pop %v1787
        %v3456 = vmul.f32 %v1787, %v3455
        %v3457 = vsub.f32 1.0, %v3456
        %v3458 = vmul.f32 %v3455, %v3457
        %v3459 = vadd.f32 %v3455, %v3458
        %vm3460 = vweird.f32 %v1787
        %vm3461 = vweird.f32 %v3455
        %vm3462 = vmor %vm3460, %vm3461
        %v3463 = vsel %vm3462, %v3455, %v3459
        %v3464 = vand.u32 2147483647, %v1787
        %vm3465 = vcmp.eq.f32.partialorder %v3464, 8.507059e+37
        %v3466 = vand.u32 %v1787, 2147483648
        %v3467 = vor.u32 1.1754944e-38, %v3466
        %v3468 = vsel %vm3465, %v3467, %v3463
        %v3469 = vmul.f32 1.0, %v3468
        %v3470 = vrcp.pop %v1788
        %v3471 = vmul.f32 %v1788, %v3470
        %v3472 = vsub.f32 1.0, %v3471
        %v3473 = vmul.f32 %v3470, %v3472
        %v3474 = vadd.f32 %v3470, %v3473
        %vm3475 = vweird.f32 %v1788
        %vm3476 = vweird.f32 %v3470
        %vm3477 = vmor %vm3475, %vm3476
        %v3478 = vsel %vm3477, %v3470, %v3474
        %v3479 = vand.u32 2147483647, %v1788
        %vm3480 = vcmp.eq.f32.partialorder %v3479, 8.507059e+37
        %v3481 = vand.u32 %v1788, 2147483648
        %v3482 = vor.u32 1.1754944e-38, %v3481
        %v3483 = vsel %vm3480, %v3482, %v3478
        %v3484 = vmul.f32 1.0, %v3483
        %v3485 = vrcp.pop %v1789
        %v3486 = vmul.f32 %v1789, %v3485
        %v3487 = vsub.f32 1.0, %v3486
        %v3488 = vmul.f32 %v3485, %v3487
        %v3489 = vadd.f32 %v3485, %v3488
        %vm3490 = vweird.f32 %v1789
        %vm3491 = vweird.f32 %v3485
        %vm3492 = vmor %vm3490, %vm3491
        %v3493 = vsel %vm3492, %v3485, %v3489
        %v3494 = vand.u32 2147483647, %v1789
        %vm3495 = vcmp.eq.f32.partialorder %v3494, 8.507059e+37
        %v3496 = vand.u32 %v1789, 2147483648
        %v3497 = vor.u32 1.1754944e-38, %v3496
        %v3498 = vsel %vm3495, %v3497, %v3493
        %v3499 = vmul.f32 1.0, %v3498
        %v3500 = vrcp.pop %v1790
        %v3501 = vmul.f32 %v1790, %v3500
        %v3502 = vsub.f32 1.0, %v3501
        %v3503 = vmul.f32 %v3500, %v3502
        %v3504 = vadd.f32 %v3500, %v3503
        %vm3505 = vweird.f32 %v1790
        %vm3506 = vweird.f32 %v3500
        %vm3507 = vmor %vm3505, %vm3506
        %v3508 = vsel %vm3507, %v3500, %v3504
        %v3509 = vand.u32 2147483647, %v1790
        %vm3510 = vcmp.eq.f32.partialorder %v3509, 8.507059e+37
        %v3511 = vand.u32 %v1790, 2147483648
        %v3512 = vor.u32 1.1754944e-38, %v3511
        %v3513 = vsel %vm3510, %v3512, %v3508
        %v3514 = vmul.f32 1.0, %v3513
        %v3515 = vrcp.pop %v1791
        %v3516 = vmul.f32 %v1791, %v3515
        %v3517 = vsub.f32 1.0, %v3516
        %v3518 = vmul.f32 %v3515, %v3517
        %v3519 = vadd.f32 %v3515, %v3518
        %vm3520 = vweird.f32 %v1791
        %vm3521 = vweird.f32 %v3515
        %vm3522 = vmor %vm3520, %vm3521
        %v3523 = vsel %vm3522, %v3515, %v3519
        %v3524 = vand.u32 2147483647, %v1791
        %vm3525 = vcmp.eq.f32.partialorder %v3524, 8.507059e+37
        %v3526 = vand.u32 %v1791, 2147483648
        %v3527 = vor.u32 1.1754944e-38, %v3526
        %v3528 = vsel %vm3525, %v3527, %v3523
        %v3529 = vmul.f32 1.0, %v3528
        %v3530 = vrcp.pop %v1792
        %v3531 = vmul.f32 %v1792, %v3530
        %v3532 = vsub.f32 1.0, %v3531
        %v3533 = vmul.f32 %v3530, %v3532
        %v3534 = vadd.f32 %v3530, %v3533
        %vm3535 = vweird.f32 %v1792
        %vm3536 = vweird.f32 %v3530
        %vm3537 = vmor %vm3535, %vm3536
        %v3538 = vsel %vm3537, %v3530, %v3534
        %v3539 = vand.u32 2147483647, %v1792
        %vm3540 = vcmp.eq.f32.partialorder %v3539, 8.507059e+37
        %v3541 = vand.u32 %v1792, 2147483648
        %v3542 = vor.u32 1.1754944e-38, %v3541
        %v3543 = vsel %vm3540, %v3542, %v3538
        %v3544 = vmul.f32 1.0, %v3543
        %v3545 = vrcp.pop %v1793
        %v3546 = vmul.f32 %v1793, %v3545
        %v3547 = vsub.f32 1.0, %v3546
        %v3548 = vmul.f32 %v3545, %v3547
        %v3549 = vadd.f32 %v3545, %v3548
        %vm3550 = vweird.f32 %v1793
        %vm3551 = vweird.f32 %v3545
        %vm3552 = vmor %vm3550, %vm3551
        %v3553 = vsel %vm3552, %v3545, %v3549
        %v3554 = vand.u32 2147483647, %v1793
        %vm3555 = vcmp.eq.f32.partialorder %v3554, 8.507059e+37
        %v3556 = vand.u32 %v1793, 2147483648
        %v3557 = vor.u32 1.1754944e-38, %v3556
        %v3558 = vsel %vm3555, %v3557, %v3553
        %v3559 = vmul.f32 1.0, %v3558
        %v3560 = vrcp.pop %v1794
        %v3561 = vmul.f32 %v1794, %v3560
        %v3562 = vsub.f32 1.0, %v3561
        %v3563 = vmul.f32 %v3560, %v3562
        %v3564 = vadd.f32 %v3560, %v3563
        %vm3565 = vweird.f32 %v1794
        %vm3566 = vweird.f32 %v3560
        %vm3567 = vmor %vm3565, %vm3566
        %v3568 = vsel %vm3567, %v3560, %v3564
        %v3569 = vand.u32 2147483647, %v1794
        %vm3570 = vcmp.eq.f32.partialorder %v3569, 8.507059e+37
        %v3571 = vand.u32 %v1794, 2147483648
        %v3572 = vor.u32 1.1754944e-38, %v3571
        %v3573 = vsel %vm3570, %v3572, %v3568
        %v3574 = vmul.f32 1.0, %v3573
        %v3575 = vrcp.pop %v1795
        %v3576 = vmul.f32 %v1795, %v3575
        %v3577 = vsub.f32 1.0, %v3576
        %v3578 = vmul.f32 %v3575, %v3577
        %v3579 = vadd.f32 %v3575, %v3578
        %vm3580 = vweird.f32 %v1795
        %vm3581 = vweird.f32 %v3575
        %vm3582 = vmor %vm3580, %vm3581
        %v3583 = vsel %vm3582, %v3575, %v3579
        %v3584 = vand.u32 2147483647, %v1795
        %vm3585 = vcmp.eq.f32.partialorder %v3584, 8.507059e+37
        %v3586 = vand.u32 %v1795, 2147483648
        %v3587 = vor.u32 1.1754944e-38, %v3586
        %v3588 = vsel %vm3585, %v3587, %v3583
        %v3589 = vmul.f32 1.0, %v3588
        %v3590 = vrcp.pop %v1796
        %v3591 = vmul.f32 %v1796, %v3590
        %v3592 = vsub.f32 1.0, %v3591
        %v3593 = vmul.f32 %v3590, %v3592
        %v3594 = vadd.f32 %v3590, %v3593
        %vm3595 = vweird.f32 %v1796
        %vm3596 = vweird.f32 %v3590
        %vm3597 = vmor %vm3595, %vm3596
        %v3598 = vsel %vm3597, %v3590, %v3594
        %v3599 = vand.u32 2147483647, %v1796
        %vm3600 = vcmp.eq.f32.partialorder %v3599, 8.507059e+37
        %v3601 = vand.u32 %v1796, 2147483648
        %v3602 = vor.u32 1.1754944e-38, %v3601
        %v3603 = vsel %vm3600, %v3602, %v3598
        %v3604 = vmul.f32 1.0, %v3603
        %v3605 = vrcp.pop %v1797
        %v3606 = vmul.f32 %v1797, %v3605
        %v3607 = vsub.f32 1.0, %v3606
        %v3608 = vmul.f32 %v3605, %v3607
        %v3609 = vadd.f32 %v3605, %v3608
        %vm3610 = vweird.f32 %v1797
        %vm3611 = vweird.f32 %v3605
        %vm3612 = vmor %vm3610, %vm3611
        %v3613 = vsel %vm3612, %v3605, %v3609
        %v3614 = vand.u32 2147483647, %v1797
        %vm3615 = vcmp.eq.f32.partialorder %v3614, 8.507059e+37
        %v3616 = vand.u32 %v1797, 2147483648
        %v3617 = vor.u32 1.1754944e-38, %v3616
        %v3618 = vsel %vm3615, %v3617, %v3613
        %v3619 = vmul.f32 1.0, %v3618
        %v3620 = vrcp.pop %v1798
        %v3621 = vmul.f32 %v1798, %v3620
        %v3622 = vsub.f32 1.0, %v3621
        %v3623 = vmul.f32 %v3620, %v3622
        %v3624 = vadd.f32 %v3620, %v3623
        %vm3625 = vweird.f32 %v1798
        %vm3626 = vweird.f32 %v3620
        %vm3627 = vmor %vm3625, %vm3626
        %v3628 = vsel %vm3627, %v3620, %v3624
        %v3629 = vand.u32 2147483647, %v1798
        %vm3630 = vcmp.eq.f32.partialorder %v3629, 8.507059e+37
        %v3631 = vand.u32 %v1798, 2147483648
        %v3632 = vor.u32 1.1754944e-38, %v3631
        %v3633 = vsel %vm3630, %v3632, %v3628
        %v3634 = vmul.f32 1.0, %v3633
        %v3635 = vrcp.pop %v1799
        %v3636 = vmul.f32 %v1799, %v3635
        %v3637 = vsub.f32 1.0, %v3636
        %v3638 = vmul.f32 %v3635, %v3637
        %v3639 = vadd.f32 %v3635, %v3638
        %vm3640 = vweird.f32 %v1799
        %vm3641 = vweird.f32 %v3635
        %vm3642 = vmor %vm3640, %vm3641
        %v3643 = vsel %vm3642, %v3635, %v3639
        %v3644 = vand.u32 2147483647, %v1799
        %vm3645 = vcmp.eq.f32.partialorder %v3644, 8.507059e+37
        %v3646 = vand.u32 %v1799, 2147483648
        %v3647 = vor.u32 1.1754944e-38, %v3646
        %v3648 = vsel %vm3645, %v3647, %v3643
        %v3649 = vmul.f32 1.0, %v3648
        %v3650 = vrcp.pop %v1800
        %v3651 = vmul.f32 %v1800, %v3650
        %v3652 = vsub.f32 1.0, %v3651
        %v3653 = vmul.f32 %v3650, %v3652
        %v3654 = vadd.f32 %v3650, %v3653
        %vm3655 = vweird.f32 %v1800
        %vm3656 = vweird.f32 %v3650
        %vm3657 = vmor %vm3655, %vm3656
        %v3658 = vsel %vm3657, %v3650, %v3654
        %v3659 = vand.u32 2147483647, %v1800
        %vm3660 = vcmp.eq.f32.partialorder %v3659, 8.507059e+37
        %v3661 = vand.u32 %v1800, 2147483648
        %v3662 = vor.u32 1.1754944e-38, %v3661
        %v3663 = vsel %vm3660, %v3662, %v3658
        %v3664 = vmul.f32 1.0, %v3663
        %v3665 = vrcp.pop %v1801
        %v3666 = vmul.f32 %v1801, %v3665
        %v3667 = vsub.f32 1.0, %v3666
        %v3668 = vmul.f32 %v3665, %v3667
        %v3669 = vadd.f32 %v3665, %v3668
        %vm3670 = vweird.f32 %v1801
        %vm3671 = vweird.f32 %v3665
        %vm3672 = vmor %vm3670, %vm3671
        %v3673 = vsel %vm3672, %v3665, %v3669
        %v3674 = vand.u32 2147483647, %v1801
        %vm3675 = vcmp.eq.f32.partialorder %v3674, 8.507059e+37
        %v3676 = vand.u32 %v1801, 2147483648
        %v3677 = vor.u32 1.1754944e-38, %v3676
        %v3678 = vsel %vm3675, %v3677, %v3673
        %v3679 = vmul.f32 1.0, %v3678
        %v3680 = vrcp.pop %v1802
        %v3681 = vmul.f32 %v1802, %v3680
        %v3682 = vsub.f32 1.0, %v3681
        %v3683 = vmul.f32 %v3680, %v3682
        %v3684 = vadd.f32 %v3680, %v3683
        %vm3685 = vweird.f32 %v1802
        %vm3686 = vweird.f32 %v3680
        %vm3687 = vmor %vm3685, %vm3686
        %v3688 = vsel %vm3687, %v3680, %v3684
        %v3689 = vand.u32 2147483647, %v1802
        %vm3690 = vcmp.eq.f32.partialorder %v3689, 8.507059e+37
        %v3691 = vand.u32 %v1802, 2147483648
        %v3692 = vor.u32 1.1754944e-38, %v3691
        %v3693 = vsel %vm3690, %v3692, %v3688
        %v3694 = vmul.f32 1.0, %v3693
        %v3695 = vrcp.pop %v1803
        %v3696 = vmul.f32 %v1803, %v3695
        %v3697 = vsub.f32 1.0, %v3696
        %v3698 = vmul.f32 %v3695, %v3697
        %v3699 = vadd.f32 %v3695, %v3698
        %vm3700 = vweird.f32 %v1803
        %vm3701 = vweird.f32 %v3695
        %vm3702 = vmor %vm3700, %vm3701
        %v3703 = vsel %vm3702, %v3695, %v3699
        %v3704 = vand.u32 2147483647, %v1803
        %vm3705 = vcmp.eq.f32.partialorder %v3704, 8.507059e+37
        %v3706 = vand.u32 %v1803, 2147483648
        %v3707 = vor.u32 1.1754944e-38, %v3706
        %v3708 = vsel %vm3705, %v3707, %v3703
        %v3709 = vmul.f32 1.0, %v3708
        %v3710 = vrcp.pop %v1804
        %v3711 = vmul.f32 %v1804, %v3710
        %v3712 = vsub.f32 1.0, %v3711
        %v3713 = vmul.f32 %v3710, %v3712
        %v3714 = vadd.f32 %v3710, %v3713
        %vm3715 = vweird.f32 %v1804
        %vm3716 = vweird.f32 %v3710
        %vm3717 = vmor %vm3715, %vm3716
        %v3718 = vsel %vm3717, %v3710, %v3714
        %v3719 = vand.u32 2147483647, %v1804
        %vm3720 = vcmp.eq.f32.partialorder %v3719, 8.507059e+37
        %v3721 = vand.u32 %v1804, 2147483648
        %v3722 = vor.u32 1.1754944e-38, %v3721
        %v3723 = vsel %vm3720, %v3722, %v3718
        %v3724 = vmul.f32 1.0, %v3723
        %v3725 = vmax.f32 %v1819, 1e-07
        %v3726 = vmax.f32 %v1834, 1e-07
        %v3727 = vmax.f32 %v1879, 1e-07
        %v3728 = vmax.f32 %v1894, 1e-07
        %v3729 = vmax.f32 %v1939, 1e-07
        %v3730 = vmax.f32 %v1954, 1e-07
        %v3731 = vmax.f32 %v1999, 1e-07
        %v3732 = vmax.f32 %v2014, 1e-07
        %v3733 = vmax.f32 %v2059, 1e-07
        %v3734 = vmax.f32 %v2074, 1e-07
        %v3735 = vmax.f32 %v2119, 1e-07
        %v3736 = vmax.f32 %v2134, 1e-07
        %v3737 = vmax.f32 %v2179, 1e-07
        %v3738 = vmax.f32 %v2194, 1e-07
        %v3739 = vmax.f32 %v2239, 1e-07
        %v3740 = vmax.f32 %v2254, 1e-07
        %v3741 = vmax.f32 %v2299, 1e-07
        %v3742 = vmax.f32 %v2314, 1e-07
        %v3743 = vmax.f32 %v2359, 1e-07
        %v3744 = vmax.f32 %v2374, 1e-07
        %v3745 = vmax.f32 %v2419, 1e-07
        %v3746 = vmax.f32 %v2434, 1e-07
        %v3747 = vmax.f32 %v2479, 1e-07
        %v3748 = vmax.f32 %v2494, 1e-07
        %v3749 = vmax.f32 %v2539, 1e-07
        %v3750 = vmax.f32 %v2554, 1e-07
        %v3751 = vmax.f32 %v2599, 1e-07
        %v3752 = vmax.f32 %v2614, 1e-07
        %v3753 = vmax.f32 %v2659, 1e-07
        %v3754 = vmax.f32 %v2674, 1e-07
        %v3755 = vmax.f32 %v2719, 1e-07
        %v3756 = vmax.f32 %v2734, 1e-07
        %v3757 = vmax.f32 %v2779, 1e-07
        %v3758 = vmax.f32 %v2794, 1e-07
        %v3759 = vmax.f32 %v2839, 1e-07
        %v3760 = vmax.f32 %v2854, 1e-07
        %v3761 = vmax.f32 %v2899, 1e-07
        %v3762 = vmax.f32 %v2914, 1e-07
        %v3763 = vmax.f32 %v2959, 1e-07
        %v3764 = vmax.f32 %v2974, 1e-07
        %v3765 = vmax.f32 %v3019, 1e-07
        %v3766 = vmax.f32 %v3034, 1e-07
        %v3767 = vmax.f32 %v3079, 1e-07
        %v3768 = vmax.f32 %v3094, 1e-07
        %v3769 = vmax.f32 %v3139, 1e-07
        %v3770 = vmax.f32 %v3154, 1e-07
        %v3771 = vmax.f32 %v3199, 1e-07
        %v3772 = vmax.f32 %v3214, 1e-07
        %v3773 = vmax.f32 %v3259, 1e-07
        %v3774 = vmax.f32 %v3274, 1e-07
        %v3775 = vmax.f32 %v3319, 1e-07
        %v3776 = vmax.f32 %v3334, 1e-07
        %v3777 = vmax.f32 %v3379, 1e-07
        %v3778 = vmax.f32 %v3394, 1e-07
        %v3779 = vmax.f32 %v3439, 1e-07
        %v3780 = vmax.f32 %v3454, 1e-07
        %v3781 = vmax.f32 %v3499, 1e-07
        %v3782 = vmax.f32 %v3514, 1e-07
        %v3783 = vmax.f32 %v3559, 1e-07
        %v3784 = vmax.f32 %v3574, 1e-07
        %v3785 = vmax.f32 %v3619, 1e-07
        %v3786 = vmax.f32 %v3634, 1e-07
        %v3787 = vmax.f32 %v3679, 1e-07
        %v3788 = vmax.f32 %v3694, 1e-07
        %v3789 = vmin.f32 %v3725, 0.9999999
        %v3790 = vmin.f32 %v3726, 0.9999999
        %v3791 = vmin.f32 %v3727, 0.9999999
        %v3792 = vmin.f32 %v3728, 0.9999999
        %v3793 = vmin.f32 %v3729, 0.9999999
        %v3794 = vmin.f32 %v3730, 0.9999999
        %v3795 = vmin.f32 %v3731, 0.9999999
        %v3796 = vmin.f32 %v3732, 0.9999999
        %v3797 = vmin.f32 %v3733, 0.9999999
        %v3798 = vmin.f32 %v3734, 0.9999999
        %v3799 = vmin.f32 %v3735, 0.9999999
        %v3800 = vmin.f32 %v3736, 0.9999999
        %v3801 = vmin.f32 %v3737, 0.9999999
        %v3802 = vmin.f32 %v3738, 0.9999999
        %v3803 = vmin.f32 %v3739, 0.9999999
        %v3804 = vmin.f32 %v3740, 0.9999999
        %v3805 = vmin.f32 %v3741, 0.9999999
        %v3806 = vmin.f32 %v3742, 0.9999999
        %v3807 = vmin.f32 %v3743, 0.9999999
        %v3808 = vmin.f32 %v3744, 0.9999999
        %v3809 = vmin.f32 %v3745, 0.9999999
        %v3810 = vmin.f32 %v3746, 0.9999999
        %v3811 = vmin.f32 %v3747, 0.9999999
        %v3812 = vmin.f32 %v3748, 0.9999999
        %v3813 = vmin.f32 %v3749, 0.9999999
        %v3814 = vmin.f32 %v3750, 0.9999999
        %v3815 = vmin.f32 %v3751, 0.9999999
        %v3816 = vmin.f32 %v3752, 0.9999999
        %v3817 = vmin.f32 %v3753, 0.9999999
        %v3818 = vmin.f32 %v3754, 0.9999999
        %v3819 = vmin.f32 %v3755, 0.9999999
        %v3820 = vmin.f32 %v3756, 0.9999999
        %v3821 = vmin.f32 %v3757, 0.9999999
        %v3822 = vmin.f32 %v3758, 0.9999999
        %v3823 = vmin.f32 %v3759, 0.9999999
        %v3824 = vmin.f32 %v3760, 0.9999999
        %v3825 = vmin.f32 %v3761, 0.9999999
        %v3826 = vmin.f32 %v3762, 0.9999999
        %v3827 = vmin.f32 %v3763, 0.9999999
        %v3828 = vmin.f32 %v3764, 0.9999999
        %v3829 = vmin.f32 %v3765, 0.9999999
        %v3830 = vmin.f32 %v3766, 0.9999999
        %v3831 = vmin.f32 %v3767, 0.9999999
        %v3832 = vmin.f32 %v3768, 0.9999999
        %v3833 = vmin.f32 %v3769, 0.9999999
        %v3834 = vmin.f32 %v3770, 0.9999999
        %v3835 = vmin.f32 %v3771, 0.9999999
        %v3836 = vmin.f32 %v3772, 0.9999999
        %v3837 = vmin.f32 %v3773, 0.9999999
        %v3838 = vmin.f32 %v3774, 0.9999999
        %v3839 = vmin.f32 %v3775, 0.9999999
        %v3840 = vmin.f32 %v3776, 0.9999999
        %v3841 = vmin.f32 %v3777, 0.9999999
        %v3842 = vmin.f32 %v3778, 0.9999999
        %v3843 = vmin.f32 %v3779, 0.9999999
        %v3844 = vmin.f32 %v3780, 0.9999999
        %v3845 = vmin.f32 %v3781, 0.9999999
        %v3846 = vmin.f32 %v3782, 0.9999999
        %v3847 = vmin.f32 %v3783, 0.9999999
        %v3848 = vmin.f32 %v3784, 0.9999999
        %v3849 = vmin.f32 %v3785, 0.9999999
        %v3850 = vmin.f32 %v3786, 0.9999999
        %v3851 = vmin.f32 %v3787, 0.9999999
        %v3852 = vmin.f32 %v3788, 0.9999999
        %v3853 = vmul.f32 %v3789, %v1849
        %v3854 = vmul.f32 %v3790, %v1864
        %v3855 = vmul.f32 %v3791, %v1909
        %v3856 = vmul.f32 %v3792, %v1924
        %v3857 = vmul.f32 %v3793, %v1969
        %v3858 = vmul.f32 %v3794, %v1984
        %v3859 = vmul.f32 %v3795, %v2029
        %v3860 = vmul.f32 %v3796, %v2044
        %v3861 = vmul.f32 %v3797, %v2089
        %v3862 = vmul.f32 %v3798, %v2104
        %v3863 = vmul.f32 %v3799, %v2149
        %v3864 = vmul.f32 %v3800, %v2164
        %v3865 = vmul.f32 %v3801, %v2209
        %v3866 = vmul.f32 %v3802, %v2224
        %v3867 = vmul.f32 %v3803, %v2269
        %v3868 = vmul.f32 %v3804, %v2284
        %v3869 = vmul.f32 %v3805, %v2329
        %v3870 = vmul.f32 %v3806, %v2344
        %v3871 = vmul.f32 %v3807, %v2389
        %v3872 = vmul.f32 %v3808, %v2404
        %v3873 = vmul.f32 %v3809, %v2449
        %v3874 = vmul.f32 %v3810, %v2464
        %v3875 = vmul.f32 %v3811, %v2509
        %v3876 = vmul.f32 %v3812, %v2524
        %v3877 = vmul.f32 %v3813, %v2569
        %v3878 = vmul.f32 %v3814, %v2584
        %v3879 = vmul.f32 %v3815, %v2629
        %v3880 = vmul.f32 %v3816, %v2644
        %v3881 = vmul.f32 %v3817, %v2689
        %v3882 = vmul.f32 %v3818, %v2704
        %v3883 = vmul.f32 %v3819, %v2749
        %v3884 = vmul.f32 %v3820, %v2764
        %v3885 = vmul.f32 %v3821, %v2809
        %v3886 = vmul.f32 %v3822, %v2824
        %v3887 = vmul.f32 %v3823, %v2869
        %v3888 = vmul.f32 %v3824, %v2884
        %v3889 = vmul.f32 %v3825, %v2929
        %v3890 = vmul.f32 %v3826, %v2944
        %v3891 = vmul.f32 %v3827, %v2989
        %v3892 = vmul.f32 %v3828, %v3004
        %v3893 = vmul.f32 %v3829, %v3049
        %v3894 = vmul.f32 %v3830, %v3064
        %v3895 = vmul.f32 %v3831, %v3109
        %v3896 = vmul.f32 %v3832, %v3124
        %v3897 = vmul.f32 %v3833, %v3169
        %v3898 = vmul.f32 %v3834, %v3184
        %v3899 = vmul.f32 %v3835, %v3229
        %v3900 = vmul.f32 %v3836, %v3244
        %v3901 = vmul.f32 %v3837, %v3289
        %v3902 = vmul.f32 %v3838, %v3304
        %v3903 = vmul.f32 %v3839, %v3349
        %v3904 = vmul.f32 %v3840, %v3364
        %v3905 = vmul.f32 %v3841, %v3409
        %v3906 = vmul.f32 %v3842, %v3424
        %v3907 = vmul.f32 %v3843, %v3469
        %v3908 = vmul.f32 %v3844, %v3484
        %v3909 = vmul.f32 %v3845, %v3529
        %v3910 = vmul.f32 %v3846, %v3544
        %v3911 = vmul.f32 %v3847, %v3589
        %v3912 = vmul.f32 %v3848, %v3604
        %v3913 = vmul.f32 %v3849, %v3649
        %v3914 = vmul.f32 %v3850, %v3664
        %v3915 = vmul.f32 %v3851, %v3709
        %v3916 = vmul.f32 %v3852, %v3724
        %vm3917 = vcmask 523264
        %v3918 = vsel %vm3917, %v3853, 0.0
        %3919 = vadd.xlane.f32.xlu0 %v3918
        %v3920 = vpop.xlane.xlu0 %3919
        %v3921 = vsel %vm3917, %v3854, 0.0
        %3922 = vadd.xlane.f32.xlu0 %v3921
        %v3923 = vpop.xlane.xlu0 %3922
        %v3924 = vsel %vm3917, %v3855, 0.0
        %3925 = vadd.xlane.f32.xlu0 %v3924
        %v3926 = vpop.xlane.xlu0 %3925
        %v3927 = vsel %vm3917, %v3856, 0.0
        %3928 = vadd.xlane.f32.xlu0 %v3927
        %v3929 = vpop.xlane.xlu0 %3928
        %v3930 = vsel %vm3917, %v3857, 0.0
        %3931 = vadd.xlane.f32.xlu0 %v3930
        %v3932 = vpop.xlane.xlu0 %3931
        %v3933 = vsel %vm3917, %v3858, 0.0
        %3934 = vadd.xlane.f32.xlu0 %v3933
        %v3935 = vpop.xlane.xlu0 %3934
        %v3936 = vsel %vm3917, %v3859, 0.0
        %3937 = vadd.xlane.f32.xlu0 %v3936
        %v3938 = vpop.xlane.xlu0 %3937
        %v3939 = vsel %vm3917, %v3860, 0.0
        %3940 = vadd.xlane.f32.xlu0 %v3939
        %v3941 = vpop.xlane.xlu0 %3940
        %v3942 = vsel %vm3917, %v3861, 0.0
        %3943 = vadd.xlane.f32.xlu0 %v3942
        %v3944 = vpop.xlane.xlu0 %3943
        %v3945 = vsel %vm3917, %v3862, 0.0
        %3946 = vadd.xlane.f32.xlu0 %v3945
        %v3947 = vpop.xlane.xlu0 %3946
        %v3948 = vsel %vm3917, %v3863, 0.0
        %3949 = vadd.xlane.f32.xlu0 %v3948
        %v3950 = vpop.xlane.xlu0 %3949
        %v3951 = vsel %vm3917, %v3864, 0.0
        %3952 = vadd.xlane.f32.xlu0 %v3951
        %v3953 = vpop.xlane.xlu0 %3952
        %v3954 = vsel %vm3917, %v3865, 0.0
        %3955 = vadd.xlane.f32.xlu0 %v3954
        %v3956 = vpop.xlane.xlu0 %3955
        %v3957 = vsel %vm3917, %v3866, 0.0
        %3958 = vadd.xlane.f32.xlu0 %v3957
        %v3959 = vpop.xlane.xlu0 %3958
        %v3960 = vsel %vm3917, %v3867, 0.0
        %3961 = vadd.xlane.f32.xlu0 %v3960
        %v3962 = vpop.xlane.xlu0 %3961
        %v3963 = vsel %vm3917, %v3868, 0.0
        %3964 = vadd.xlane.f32.xlu0 %v3963
        %v3965 = vpop.xlane.xlu0 %3964
        %v3966 = vsel %vm3917, %v3869, 0.0
        %3967 = vadd.xlane.f32.xlu0 %v3966
        %v3968 = vpop.xlane.xlu0 %3967
        %v3969 = vsel %vm3917, %v3870, 0.0
        %3970 = vadd.xlane.f32.xlu0 %v3969
        %v3971 = vpop.xlane.xlu0 %3970
        %v3972 = vsel %vm3917, %v3871, 0.0
        %3973 = vadd.xlane.f32.xlu0 %v3972
        %v3974 = vpop.xlane.xlu0 %3973
        %v3975 = vsel %vm3917, %v3872, 0.0
        %3976 = vadd.xlane.f32.xlu0 %v3975
        %v3977 = vpop.xlane.xlu0 %3976
        %v3978 = vsel %vm3917, %v3873, 0.0
        %3979 = vadd.xlane.f32.xlu0 %v3978
        %v3980 = vpop.xlane.xlu0 %3979
        %v3981 = vsel %vm3917, %v3874, 0.0
        %3982 = vadd.xlane.f32.xlu0 %v3981
        %v3983 = vpop.xlane.xlu0 %3982
        %v3984 = vsel %vm3917, %v3875, 0.0
        %3985 = vadd.xlane.f32.xlu0 %v3984
        %v3986 = vpop.xlane.xlu0 %3985
        %v3987 = vsel %vm3917, %v3876, 0.0
        %3988 = vadd.xlane.f32.xlu0 %v3987
        %v3989 = vpop.xlane.xlu0 %3988
        %v3990 = vsel %vm3917, %v3877, 0.0
        %3991 = vadd.xlane.f32.xlu0 %v3990
        %v3992 = vpop.xlane.xlu0 %3991
        %v3993 = vsel %vm3917, %v3878, 0.0
        %3994 = vadd.xlane.f32.xlu0 %v3993
        %v3995 = vpop.xlane.xlu0 %3994
        %v3996 = vsel %vm3917, %v3879, 0.0
        %3997 = vadd.xlane.f32.xlu0 %v3996
        %v3998 = vpop.xlane.xlu0 %3997
        %v3999 = vsel %vm3917, %v3880, 0.0
        %4000 = vadd.xlane.f32.xlu0 %v3999
        %v4001 = vpop.xlane.xlu0 %4000
        %v4002 = vsel %vm3917, %v3881, 0.0
        %4003 = vadd.xlane.f32.xlu0 %v4002
        %v4004 = vpop.xlane.xlu0 %4003
        %v4005 = vsel %vm3917, %v3882, 0.0
        %4006 = vadd.xlane.f32.xlu0 %v4005
        %v4007 = vpop.xlane.xlu0 %4006
        %v4008 = vsel %vm3917, %v3883, 0.0
        %4009 = vadd.xlane.f32.xlu0 %v4008
        %v4010 = vpop.xlane.xlu0 %4009
        %v4011 = vsel %vm3917, %v3884, 0.0
        %4012 = vadd.xlane.f32.xlu0 %v4011
        %v4013 = vpop.xlane.xlu0 %4012
        %v4014 = vsel %vm3917, %v3885, 0.0
        %4015 = vadd.xlane.f32.xlu0 %v4014
        %v4016 = vpop.xlane.xlu0 %4015
        %v4017 = vsel %vm3917, %v3886, 0.0
        %4018 = vadd.xlane.f32.xlu0 %v4017
        %v4019 = vpop.xlane.xlu0 %4018
        %v4020 = vsel %vm3917, %v3887, 0.0
        %4021 = vadd.xlane.f32.xlu0 %v4020
        %v4022 = vpop.xlane.xlu0 %4021
        %v4023 = vsel %vm3917, %v3888, 0.0
        %4024 = vadd.xlane.f32.xlu0 %v4023
        %v4025 = vpop.xlane.xlu0 %4024
        %v4026 = vsel %vm3917, %v3889, 0.0
        %4027 = vadd.xlane.f32.xlu0 %v4026
        %v4028 = vpop.xlane.xlu0 %4027
        %v4029 = vsel %vm3917, %v3890, 0.0
        %4030 = vadd.xlane.f32.xlu0 %v4029
        %v4031 = vpop.xlane.xlu0 %4030
        %v4032 = vsel %vm3917, %v3891, 0.0
        %4033 = vadd.xlane.f32.xlu0 %v4032
        %v4034 = vpop.xlane.xlu0 %4033
        %v4035 = vsel %vm3917, %v3892, 0.0
        %4036 = vadd.xlane.f32.xlu0 %v4035
        %v4037 = vpop.xlane.xlu0 %4036
        %v4038 = vsel %vm3917, %v3893, 0.0
        %4039 = vadd.xlane.f32.xlu0 %v4038
        %v4040 = vpop.xlane.xlu0 %4039
        %v4041 = vsel %vm3917, %v3894, 0.0
        %4042 = vadd.xlane.f32.xlu0 %v4041
        %v4043 = vpop.xlane.xlu0 %4042
        %v4044 = vsel %vm3917, %v3895, 0.0
        %4045 = vadd.xlane.f32.xlu0 %v4044
        %v4046 = vpop.xlane.xlu0 %4045
        %v4047 = vsel %vm3917, %v3896, 0.0
        %4048 = vadd.xlane.f32.xlu0 %v4047
        %v4049 = vpop.xlane.xlu0 %4048
        %v4050 = vsel %vm3917, %v3897, 0.0
        %4051 = vadd.xlane.f32.xlu0 %v4050
        %v4052 = vpop.xlane.xlu0 %4051
        %v4053 = vsel %vm3917, %v3898, 0.0
        %4054 = vadd.xlane.f32.xlu0 %v4053
        %v4055 = vpop.xlane.xlu0 %4054
        %v4056 = vsel %vm3917, %v3899, 0.0
        %4057 = vadd.xlane.f32.xlu0 %v4056
        %v4058 = vpop.xlane.xlu0 %4057
        %v4059 = vsel %vm3917, %v3900, 0.0
        %4060 = vadd.xlane.f32.xlu0 %v4059
        %v4061 = vpop.xlane.xlu0 %4060
        %v4062 = vsel %vm3917, %v3901, 0.0
        %4063 = vadd.xlane.f32.xlu0 %v4062
        %v4064 = vpop.xlane.xlu0 %4063
        %v4065 = vsel %vm3917, %v3902, 0.0
        %4066 = vadd.xlane.f32.xlu0 %v4065
        %v4067 = vpop.xlane.xlu0 %4066
        %v4068 = vsel %vm3917, %v3903, 0.0
        %4069 = vadd.xlane.f32.xlu0 %v4068
        %v4070 = vpop.xlane.xlu0 %4069
        %v4071 = vsel %vm3917, %v3904, 0.0
        %4072 = vadd.xlane.f32.xlu0 %v4071
        %v4073 = vpop.xlane.xlu0 %4072
        %v4074 = vsel %vm3917, %v3905, 0.0
        %4075 = vadd.xlane.f32.xlu0 %v4074
        %v4076 = vpop.xlane.xlu0 %4075
        %v4077 = vsel %vm3917, %v3906, 0.0
        %4078 = vadd.xlane.f32.xlu0 %v4077
        %v4079 = vpop.xlane.xlu0 %4078
        %v4080 = vsel %vm3917, %v3907, 0.0
        %4081 = vadd.xlane.f32.xlu0 %v4080
        %v4082 = vpop.xlane.xlu0 %4081
        %v4083 = vsel %vm3917, %v3908, 0.0
        %4084 = vadd.xlane.f32.xlu0 %v4083
        %v4085 = vpop.xlane.xlu0 %4084
        %v4086 = vsel %vm3917, %v3909, 0.0
        %4087 = vadd.xlane.f32.xlu0 %v4086
        %v4088 = vpop.xlane.xlu0 %4087
        %v4089 = vsel %vm3917, %v3910, 0.0
        %4090 = vadd.xlane.f32.xlu0 %v4089
        %v4091 = vpop.xlane.xlu0 %4090
        %v4092 = vsel %vm3917, %v3911, 0.0
        %4093 = vadd.xlane.f32.xlu0 %v4092
        %v4094 = vpop.xlane.xlu0 %4093
        %v4095 = vsel %vm3917, %v3912, 0.0
        %4096 = vadd.xlane.f32.xlu0 %v4095
        %v4097 = vpop.xlane.xlu0 %4096
        %v4098 = vsel %vm3917, %v3913, 0.0
        %4099 = vadd.xlane.f32.xlu0 %v4098
        %v4100 = vpop.xlane.xlu0 %4099
        %v4101 = vsel %vm3917, %v3914, 0.0
        %4102 = vadd.xlane.f32.xlu0 %v4101
        %v4103 = vpop.xlane.xlu0 %4102
        %v4104 = vsel %vm3917, %v3915, 0.0
        %4105 = vadd.xlane.f32.xlu0 %v4104
        %v4106 = vpop.xlane.xlu0 %4105
        %v4107 = vsel %vm3917, %v3916, 0.0
        %4108 = vadd.xlane.f32.xlu0 %v4107
        %v4109 = vpop.xlane.xlu0 %4108
        %v4110 = vsel %vm3917, %v3789, 0.0
        %4111 = vadd.xlane.f32.xlu0 %v4110
        %v4112 = vpop.xlane.xlu0 %4111
        %v4113 = vsel %vm3917, %v3790, 0.0
        %4114 = vadd.xlane.f32.xlu0 %v4113
        %v4115 = vpop.xlane.xlu0 %4114
        %v4116 = vsel %vm3917, %v3791, 0.0
        %4117 = vadd.xlane.f32.xlu0 %v4116
        %v4118 = vpop.xlane.xlu0 %4117
        %v4119 = vsel %vm3917, %v3792, 0.0
        %4120 = vadd.xlane.f32.xlu0 %v4119
        %v4121 = vpop.xlane.xlu0 %4120
        %v4122 = vsel %vm3917, %v3793, 0.0
        %4123 = vadd.xlane.f32.xlu0 %v4122
        %v4124 = vpop.xlane.xlu0 %4123
        %v4125 = vsel %vm3917, %v3794, 0.0
        %4126 = vadd.xlane.f32.xlu0 %v4125
        %v4127 = vpop.xlane.xlu0 %4126
        %v4128 = vsel %vm3917, %v3795, 0.0
        %4129 = vadd.xlane.f32.xlu0 %v4128
        %v4130 = vpop.xlane.xlu0 %4129
        %v4131 = vsel %vm3917, %v3796, 0.0
        %4132 = vadd.xlane.f32.xlu0 %v4131
        %v4133 = vpop.xlane.xlu0 %4132
        %v4134 = vsel %vm3917, %v3797, 0.0
        %4135 = vadd.xlane.f32.xlu0 %v4134
        %v4136 = vpop.xlane.xlu0 %4135
        %v4137 = vsel %vm3917, %v3798, 0.0
        %4138 = vadd.xlane.f32.xlu0 %v4137
        %v4139 = vpop.xlane.xlu0 %4138
        %v4140 = vsel %vm3917, %v3799, 0.0
        %4141 = vadd.xlane.f32.xlu0 %v4140
        %v4142 = vpop.xlane.xlu0 %4141
        %v4143 = vsel %vm3917, %v3800, 0.0
        %4144 = vadd.xlane.f32.xlu0 %v4143
        %v4145 = vpop.xlane.xlu0 %4144
        %v4146 = vsel %vm3917, %v3801, 0.0
        %4147 = vadd.xlane.f32.xlu0 %v4146
        %v4148 = vpop.xlane.xlu0 %4147
        %v4149 = vsel %vm3917, %v3802, 0.0
        %4150 = vadd.xlane.f32.xlu0 %v4149
        %v4151 = vpop.xlane.xlu0 %4150
        %v4152 = vsel %vm3917, %v3803, 0.0
        %4153 = vadd.xlane.f32.xlu0 %v4152
        %v4154 = vpop.xlane.xlu0 %4153
        %v4155 = vsel %vm3917, %v3804, 0.0
        %4156 = vadd.xlane.f32.xlu0 %v4155
        %v4157 = vpop.xlane.xlu0 %4156
        %v4158 = vsel %vm3917, %v3805, 0.0
        %4159 = vadd.xlane.f32.xlu0 %v4158
        %v4160 = vpop.xlane.xlu0 %4159
        %v4161 = vsel %vm3917, %v3806, 0.0
        %4162 = vadd.xlane.f32.xlu0 %v4161
        %v4163 = vpop.xlane.xlu0 %4162
        %v4164 = vsel %vm3917, %v3807, 0.0
        %4165 = vadd.xlane.f32.xlu0 %v4164
        %v4166 = vpop.xlane.xlu0 %4165
        %v4167 = vsel %vm3917, %v3808, 0.0
        %4168 = vadd.xlane.f32.xlu0 %v4167
        %v4169 = vpop.xlane.xlu0 %4168
        %v4170 = vsel %vm3917, %v3809, 0.0
        %4171 = vadd.xlane.f32.xlu0 %v4170
        %v4172 = vpop.xlane.xlu0 %4171
        %v4173 = vsel %vm3917, %v3810, 0.0
        %4174 = vadd.xlane.f32.xlu0 %v4173
        %v4175 = vpop.xlane.xlu0 %4174
        %v4176 = vsel %vm3917, %v3811, 0.0
        %4177 = vadd.xlane.f32.xlu0 %v4176
        %v4178 = vpop.xlane.xlu0 %4177
        %v4179 = vsel %vm3917, %v3812, 0.0
        %4180 = vadd.xlane.f32.xlu0 %v4179
        %v4181 = vpop.xlane.xlu0 %4180
        %v4182 = vsel %vm3917, %v3813, 0.0
        %4183 = vadd.xlane.f32.xlu0 %v4182
        %v4184 = vpop.xlane.xlu0 %4183
        %v4185 = vsel %vm3917, %v3814, 0.0
        %4186 = vadd.xlane.f32.xlu0 %v4185
        %v4187 = vpop.xlane.xlu0 %4186
        %v4188 = vsel %vm3917, %v3815, 0.0
        %4189 = vadd.xlane.f32.xlu0 %v4188
        %v4190 = vpop.xlane.xlu0 %4189
        %v4191 = vsel %vm3917, %v3816, 0.0
        %4192 = vadd.xlane.f32.xlu0 %v4191
        %v4193 = vpop.xlane.xlu0 %4192
        %v4194 = vsel %vm3917, %v3817, 0.0
        %4195 = vadd.xlane.f32.xlu0 %v4194
        %v4196 = vpop.xlane.xlu0 %4195
        %v4197 = vsel %vm3917, %v3818, 0.0
        %4198 = vadd.xlane.f32.xlu0 %v4197
        %v4199 = vpop.xlane.xlu0 %4198
        %v4200 = vsel %vm3917, %v3819, 0.0
        %4201 = vadd.xlane.f32.xlu0 %v4200
        %v4202 = vpop.xlane.xlu0 %4201
        %v4203 = vsel %vm3917, %v3820, 0.0
        %4204 = vadd.xlane.f32.xlu0 %v4203
        %v4205 = vpop.xlane.xlu0 %4204
        %v4206 = vsel %vm3917, %v3821, 0.0
        %4207 = vadd.xlane.f32.xlu0 %v4206
        %v4208 = vpop.xlane.xlu0 %4207
        %v4209 = vsel %vm3917, %v3822, 0.0
        %4210 = vadd.xlane.f32.xlu0 %v4209
        %v4211 = vpop.xlane.xlu0 %4210
        %v4212 = vsel %vm3917, %v3823, 0.0
        %4213 = vadd.xlane.f32.xlu0 %v4212
        %v4214 = vpop.xlane.xlu0 %4213
        %v4215 = vsel %vm3917, %v3824, 0.0
        %4216 = vadd.xlane.f32.xlu0 %v4215
        %v4217 = vpop.xlane.xlu0 %4216
        %v4218 = vsel %vm3917, %v3825, 0.0
        %4219 = vadd.xlane.f32.xlu0 %v4218
        %v4220 = vpop.xlane.xlu0 %4219
        %v4221 = vsel %vm3917, %v3826, 0.0
        %4222 = vadd.xlane.f32.xlu0 %v4221
        %v4223 = vpop.xlane.xlu0 %4222
        %v4224 = vsel %vm3917, %v3827, 0.0
        %4225 = vadd.xlane.f32.xlu0 %v4224
        %v4226 = vpop.xlane.xlu0 %4225
        %v4227 = vsel %vm3917, %v3828, 0.0
        %4228 = vadd.xlane.f32.xlu0 %v4227
        %v4229 = vpop.xlane.xlu0 %4228
        %v4230 = vsel %vm3917, %v3829, 0.0
        %4231 = vadd.xlane.f32.xlu0 %v4230
        %v4232 = vpop.xlane.xlu0 %4231
        %v4233 = vsel %vm3917, %v3830, 0.0
        %4234 = vadd.xlane.f32.xlu0 %v4233
        %v4235 = vpop.xlane.xlu0 %4234
        %v4236 = vsel %vm3917, %v3831, 0.0
        %4237 = vadd.xlane.f32.xlu0 %v4236
        %v4238 = vpop.xlane.xlu0 %4237
        %v4239 = vsel %vm3917, %v3832, 0.0
        %4240 = vadd.xlane.f32.xlu0 %v4239
        %v4241 = vpop.xlane.xlu0 %4240
        %v4242 = vsel %vm3917, %v3833, 0.0
        %4243 = vadd.xlane.f32.xlu0 %v4242
        %v4244 = vpop.xlane.xlu0 %4243
        %v4245 = vsel %vm3917, %v3834, 0.0
        %4246 = vadd.xlane.f32.xlu0 %v4245
        %v4247 = vpop.xlane.xlu0 %4246
        %v4248 = vsel %vm3917, %v3835, 0.0
        %4249 = vadd.xlane.f32.xlu0 %v4248
        %v4250 = vpop.xlane.xlu0 %4249
        %v4251 = vsel %vm3917, %v3836, 0.0
        %4252 = vadd.xlane.f32.xlu0 %v4251
        %v4253 = vpop.xlane.xlu0 %4252
        %v4254 = vsel %vm3917, %v3837, 0.0
        %4255 = vadd.xlane.f32.xlu0 %v4254
        %v4256 = vpop.xlane.xlu0 %4255
        %v4257 = vsel %vm3917, %v3838, 0.0
        %4258 = vadd.xlane.f32.xlu0 %v4257
        %v4259 = vpop.xlane.xlu0 %4258
        %v4260 = vsel %vm3917, %v3839, 0.0
        %4261 = vadd.xlane.f32.xlu0 %v4260
        %v4262 = vpop.xlane.xlu0 %4261
        %v4263 = vsel %vm3917, %v3840, 0.0
        %4264 = vadd.xlane.f32.xlu0 %v4263
        %v4265 = vpop.xlane.xlu0 %4264
        %v4266 = vsel %vm3917, %v3841, 0.0
        %4267 = vadd.xlane.f32.xlu0 %v4266
        %v4268 = vpop.xlane.xlu0 %4267
        %v4269 = vsel %vm3917, %v3842, 0.0
        %4270 = vadd.xlane.f32.xlu0 %v4269
        %v4271 = vpop.xlane.xlu0 %4270
        %v4272 = vsel %vm3917, %v3843, 0.0
        %4273 = vadd.xlane.f32.xlu0 %v4272
        %v4274 = vpop.xlane.xlu0 %4273
        %v4275 = vsel %vm3917, %v3844, 0.0
        %4276 = vadd.xlane.f32.xlu0 %v4275
        %v4277 = vpop.xlane.xlu0 %4276
        %v4278 = vsel %vm3917, %v3845, 0.0
        %4279 = vadd.xlane.f32.xlu0 %v4278
        %v4280 = vpop.xlane.xlu0 %4279
        %v4281 = vsel %vm3917, %v3846, 0.0
        %4282 = vadd.xlane.f32.xlu0 %v4281
        %v4283 = vpop.xlane.xlu0 %4282
        %v4284 = vsel %vm3917, %v3847, 0.0
        %4285 = vadd.xlane.f32.xlu0 %v4284
        %v4286 = vpop.xlane.xlu0 %4285
        %v4287 = vsel %vm3917, %v3848, 0.0
        %4288 = vadd.xlane.f32.xlu0 %v4287
        %v4289 = vpop.xlane.xlu0 %4288
        %v4290 = vsel %vm3917, %v3849, 0.0
        %4291 = vadd.xlane.f32.xlu0 %v4290
        %v4292 = vpop.xlane.xlu0 %4291
        %v4293 = vsel %vm3917, %v3850, 0.0
        %4294 = vadd.xlane.f32.xlu0 %v4293
        %v4295 = vpop.xlane.xlu0 %4294
        %v4296 = vsel %vm3917, %v3851, 0.0
        %4297 = vadd.xlane.f32.xlu0 %v4296
        %v4298 = vpop.xlane.xlu0 %4297
        %v4299 = vsel %vm3917, %v3852, 0.0
        %4300 = vadd.xlane.f32.xlu0 %v4299
        %v4301 = vpop.xlane.xlu0 %4300
        %v4302 = vrcp.pop %v4112
        %v4303 = vmul.f32 %v4112, %v4302
        %v4304 = vsub.f32 1.0, %v4303
        %v4305 = vmul.f32 %v4302, %v4304
        %v4306 = vadd.f32 %v4302, %v4305
        %vm4307 = vweird.f32 %v4112
        %vm4308 = vweird.f32 %v4302
        %vm4309 = vmor %vm4307, %vm4308
        %v4310 = vsel %vm4309, %v4302, %v4306
        %v4311 = vand.u32 2147483647, %v4112
        %vm4312 = vcmp.eq.f32.partialorder %v4311, 8.507059e+37
        %v4313 = vand.u32 %v4112, 2147483648
        %v4314 = vor.u32 1.1754944e-38, %v4313
        %v4315 = vsel %vm4312, %v4314, %v4310
        %v4316 = vrcp.pop %v4115
        %v4317 = vmul.f32 %v4115, %v4316
        %v4318 = vsub.f32 1.0, %v4317
        %v4319 = vmul.f32 %v4316, %v4318
        %v4320 = vadd.f32 %v4316, %v4319
        %vm4321 = vweird.f32 %v4115
        %vm4322 = vweird.f32 %v4316
        %vm4323 = vmor %vm4321, %vm4322
        %v4324 = vsel %vm4323, %v4316, %v4320
        %v4325 = vand.u32 2147483647, %v4115
        %vm4326 = vcmp.eq.f32.partialorder %v4325, 8.507059e+37
        %v4327 = vand.u32 %v4115, 2147483648
        %v4328 = vor.u32 1.1754944e-38, %v4327
        %v4329 = vsel %vm4326, %v4328, %v4324
        %v4330 = vrcp.pop %v4118
        %v4331 = vmul.f32 %v4118, %v4330
        %v4332 = vsub.f32 1.0, %v4331
        %v4333 = vmul.f32 %v4330, %v4332
        %v4334 = vadd.f32 %v4330, %v4333
        %vm4335 = vweird.f32 %v4118
        %vm4336 = vweird.f32 %v4330
        %vm4337 = vmor %vm4335, %vm4336
        %v4338 = vsel %vm4337, %v4330, %v4334
        %v4339 = vand.u32 2147483647, %v4118
        %vm4340 = vcmp.eq.f32.partialorder %v4339, 8.507059e+37
        %v4341 = vand.u32 %v4118, 2147483648
        %v4342 = vor.u32 1.1754944e-38, %v4341
        %v4343 = vsel %vm4340, %v4342, %v4338
        %v4344 = vrcp.pop %v4121
        %v4345 = vmul.f32 %v4121, %v4344
        %v4346 = vsub.f32 1.0, %v4345
        %v4347 = vmul.f32 %v4344, %v4346
        %v4348 = vadd.f32 %v4344, %v4347
        %vm4349 = vweird.f32 %v4121
        %vm4350 = vweird.f32 %v4344
        %vm4351 = vmor %vm4349, %vm4350
        %v4352 = vsel %vm4351, %v4344, %v4348
        %v4353 = vand.u32 2147483647, %v4121
        %vm4354 = vcmp.eq.f32.partialorder %v4353, 8.507059e+37
        %v4355 = vand.u32 %v4121, 2147483648
        %v4356 = vor.u32 1.1754944e-38, %v4355
        %v4357 = vsel %vm4354, %v4356, %v4352
        %v4358 = vrcp.pop %v4124
        %v4359 = vmul.f32 %v4124, %v4358
        %v4360 = vsub.f32 1.0, %v4359
        %v4361 = vmul.f32 %v4358, %v4360
        %v4362 = vadd.f32 %v4358, %v4361
        %vm4363 = vweird.f32 %v4124
        %vm4364 = vweird.f32 %v4358
        %vm4365 = vmor %vm4363, %vm4364
        %v4366 = vsel %vm4365, %v4358, %v4362
        %v4367 = vand.u32 2147483647, %v4124
        %vm4368 = vcmp.eq.f32.partialorder %v4367, 8.507059e+37
        %v4369 = vand.u32 %v4124, 2147483648
        %v4370 = vor.u32 1.1754944e-38, %v4369
        %v4371 = vsel %vm4368, %v4370, %v4366
        %v4372 = vrcp.pop %v4127
        %v4373 = vmul.f32 %v4127, %v4372
        %v4374 = vsub.f32 1.0, %v4373
        %v4375 = vmul.f32 %v4372, %v4374
        %v4376 = vadd.f32 %v4372, %v4375
        %vm4377 = vweird.f32 %v4127
        %vm4378 = vweird.f32 %v4372
        %vm4379 = vmor %vm4377, %vm4378
        %v4380 = vsel %vm4379, %v4372, %v4376
        %v4381 = vand.u32 2147483647, %v4127
        %vm4382 = vcmp.eq.f32.partialorder %v4381, 8.507059e+37
        %v4383 = vand.u32 %v4127, 2147483648
        %v4384 = vor.u32 1.1754944e-38, %v4383
        %v4385 = vsel %vm4382, %v4384, %v4380
        %v4386 = vrcp.pop %v4130
        %v4387 = vmul.f32 %v4130, %v4386
        %v4388 = vsub.f32 1.0, %v4387
        %v4389 = vmul.f32 %v4386, %v4388
        %v4390 = vadd.f32 %v4386, %v4389
        %vm4391 = vweird.f32 %v4130
        %vm4392 = vweird.f32 %v4386
        %vm4393 = vmor %vm4391, %vm4392
        %v4394 = vsel %vm4393, %v4386, %v4390
        %v4395 = vand.u32 2147483647, %v4130
        %vm4396 = vcmp.eq.f32.partialorder %v4395, 8.507059e+37
        %v4397 = vand.u32 %v4130, 2147483648
        %v4398 = vor.u32 1.1754944e-38, %v4397
        %v4399 = vsel %vm4396, %v4398, %v4394
        %v4400 = vrcp.pop %v4133
        %v4401 = vmul.f32 %v4133, %v4400
        %v4402 = vsub.f32 1.0, %v4401
        %v4403 = vmul.f32 %v4400, %v4402
        %v4404 = vadd.f32 %v4400, %v4403
        %vm4405 = vweird.f32 %v4133
        %vm4406 = vweird.f32 %v4400
        %vm4407 = vmor %vm4405, %vm4406
        %v4408 = vsel %vm4407, %v4400, %v4404
        %v4409 = vand.u32 2147483647, %v4133
        %vm4410 = vcmp.eq.f32.partialorder %v4409, 8.507059e+37
        %v4411 = vand.u32 %v4133, 2147483648
        %v4412 = vor.u32 1.1754944e-38, %v4411
        %v4413 = vsel %vm4410, %v4412, %v4408
        %v4414 = vrcp.pop %v4136
        %v4415 = vmul.f32 %v4136, %v4414
        %v4416 = vsub.f32 1.0, %v4415
        %v4417 = vmul.f32 %v4414, %v4416
        %v4418 = vadd.f32 %v4414, %v4417
        %vm4419 = vweird.f32 %v4136
        %vm4420 = vweird.f32 %v4414
        %vm4421 = vmor %vm4419, %vm4420
        %v4422 = vsel %vm4421, %v4414, %v4418
        %v4423 = vand.u32 2147483647, %v4136
        %vm4424 = vcmp.eq.f32.partialorder %v4423, 8.507059e+37
        %v4425 = vand.u32 %v4136, 2147483648
        %v4426 = vor.u32 1.1754944e-38, %v4425
        %v4427 = vsel %vm4424, %v4426, %v4422
        %v4428 = vrcp.pop %v4139
        %v4429 = vmul.f32 %v4139, %v4428
        %v4430 = vsub.f32 1.0, %v4429
        %v4431 = vmul.f32 %v4428, %v4430
        %v4432 = vadd.f32 %v4428, %v4431
        %vm4433 = vweird.f32 %v4139
        %vm4434 = vweird.f32 %v4428
        %vm4435 = vmor %vm4433, %vm4434
        %v4436 = vsel %vm4435, %v4428, %v4432
        %v4437 = vand.u32 2147483647, %v4139
        %vm4438 = vcmp.eq.f32.partialorder %v4437, 8.507059e+37
        %v4439 = vand.u32 %v4139, 2147483648
        %v4440 = vor.u32 1.1754944e-38, %v4439
        %v4441 = vsel %vm4438, %v4440, %v4436
        %v4442 = vrcp.pop %v4142
        %v4443 = vmul.f32 %v4142, %v4442
        %v4444 = vsub.f32 1.0, %v4443
        %v4445 = vmul.f32 %v4442, %v4444
        %v4446 = vadd.f32 %v4442, %v4445
        %vm4447 = vweird.f32 %v4142
        %vm4448 = vweird.f32 %v4442
        %vm4449 = vmor %vm4447, %vm4448
        %v4450 = vsel %vm4449, %v4442, %v4446
        %v4451 = vand.u32 2147483647, %v4142
        %vm4452 = vcmp.eq.f32.partialorder %v4451, 8.507059e+37
        %v4453 = vand.u32 %v4142, 2147483648
        %v4454 = vor.u32 1.1754944e-38, %v4453
        %v4455 = vsel %vm4452, %v4454, %v4450
        %v4456 = vrcp.pop %v4145
        %v4457 = vmul.f32 %v4145, %v4456
        %v4458 = vsub.f32 1.0, %v4457
        %v4459 = vmul.f32 %v4456, %v4458
        %v4460 = vadd.f32 %v4456, %v4459
        %vm4461 = vweird.f32 %v4145
        %vm4462 = vweird.f32 %v4456
        %vm4463 = vmor %vm4461, %vm4462
        %v4464 = vsel %vm4463, %v4456, %v4460
        %v4465 = vand.u32 2147483647, %v4145
        %vm4466 = vcmp.eq.f32.partialorder %v4465, 8.507059e+37
        %v4467 = vand.u32 %v4145, 2147483648
        %v4468 = vor.u32 1.1754944e-38, %v4467
        %v4469 = vsel %vm4466, %v4468, %v4464
        %v4470 = vrcp.pop %v4148
        %v4471 = vmul.f32 %v4148, %v4470
        %v4472 = vsub.f32 1.0, %v4471
        %v4473 = vmul.f32 %v4470, %v4472
        %v4474 = vadd.f32 %v4470, %v4473
        %vm4475 = vweird.f32 %v4148
        %vm4476 = vweird.f32 %v4470
        %vm4477 = vmor %vm4475, %vm4476
        %v4478 = vsel %vm4477, %v4470, %v4474
        %v4479 = vand.u32 2147483647, %v4148
        %vm4480 = vcmp.eq.f32.partialorder %v4479, 8.507059e+37
        %v4481 = vand.u32 %v4148, 2147483648
        %v4482 = vor.u32 1.1754944e-38, %v4481
        %v4483 = vsel %vm4480, %v4482, %v4478
        %v4484 = vrcp.pop %v4151
        %v4485 = vmul.f32 %v4151, %v4484
        %v4486 = vsub.f32 1.0, %v4485
        %v4487 = vmul.f32 %v4484, %v4486
        %v4488 = vadd.f32 %v4484, %v4487
        %vm4489 = vweird.f32 %v4151
        %vm4490 = vweird.f32 %v4484
        %vm4491 = vmor %vm4489, %vm4490
        %v4492 = vsel %vm4491, %v4484, %v4488
        %v4493 = vand.u32 2147483647, %v4151
        %vm4494 = vcmp.eq.f32.partialorder %v4493, 8.507059e+37
        %v4495 = vand.u32 %v4151, 2147483648
        %v4496 = vor.u32 1.1754944e-38, %v4495
        %v4497 = vsel %vm4494, %v4496, %v4492
        %v4498 = vrcp.pop %v4154
        %v4499 = vmul.f32 %v4154, %v4498
        %v4500 = vsub.f32 1.0, %v4499
        %v4501 = vmul.f32 %v4498, %v4500
        %v4502 = vadd.f32 %v4498, %v4501
        %vm4503 = vweird.f32 %v4154
        %vm4504 = vweird.f32 %v4498
        %vm4505 = vmor %vm4503, %vm4504
        %v4506 = vsel %vm4505, %v4498, %v4502
        %v4507 = vand.u32 2147483647, %v4154
        %vm4508 = vcmp.eq.f32.partialorder %v4507, 8.507059e+37
        %v4509 = vand.u32 %v4154, 2147483648
        %v4510 = vor.u32 1.1754944e-38, %v4509
        %v4511 = vsel %vm4508, %v4510, %v4506
        %v4512 = vrcp.pop %v4157
        %v4513 = vmul.f32 %v4157, %v4512
        %v4514 = vsub.f32 1.0, %v4513
        %v4515 = vmul.f32 %v4512, %v4514
        %v4516 = vadd.f32 %v4512, %v4515
        %vm4517 = vweird.f32 %v4157
        %vm4518 = vweird.f32 %v4512
        %vm4519 = vmor %vm4517, %vm4518
        %v4520 = vsel %vm4519, %v4512, %v4516
        %v4521 = vand.u32 2147483647, %v4157
        %vm4522 = vcmp.eq.f32.partialorder %v4521, 8.507059e+37
        %v4523 = vand.u32 %v4157, 2147483648
        %v4524 = vor.u32 1.1754944e-38, %v4523
        %v4525 = vsel %vm4522, %v4524, %v4520
        %v4526 = vrcp.pop %v4160
        %v4527 = vmul.f32 %v4160, %v4526
        %v4528 = vsub.f32 1.0, %v4527
        %v4529 = vmul.f32 %v4526, %v4528
        %v4530 = vadd.f32 %v4526, %v4529
        %vm4531 = vweird.f32 %v4160
        %vm4532 = vweird.f32 %v4526
        %vm4533 = vmor %vm4531, %vm4532
        %v4534 = vsel %vm4533, %v4526, %v4530
        %v4535 = vand.u32 2147483647, %v4160
        %vm4536 = vcmp.eq.f32.partialorder %v4535, 8.507059e+37
        %v4537 = vand.u32 %v4160, 2147483648
        %v4538 = vor.u32 1.1754944e-38, %v4537
        %v4539 = vsel %vm4536, %v4538, %v4534
        %v4540 = vrcp.pop %v4163
        %v4541 = vmul.f32 %v4163, %v4540
        %v4542 = vsub.f32 1.0, %v4541
        %v4543 = vmul.f32 %v4540, %v4542
        %v4544 = vadd.f32 %v4540, %v4543
        %vm4545 = vweird.f32 %v4163
        %vm4546 = vweird.f32 %v4540
        %vm4547 = vmor %vm4545, %vm4546
        %v4548 = vsel %vm4547, %v4540, %v4544
        %v4549 = vand.u32 2147483647, %v4163
        %vm4550 = vcmp.eq.f32.partialorder %v4549, 8.507059e+37
        %v4551 = vand.u32 %v4163, 2147483648
        %v4552 = vor.u32 1.1754944e-38, %v4551
        %v4553 = vsel %vm4550, %v4552, %v4548
        %v4554 = vrcp.pop %v4166
        %v4555 = vmul.f32 %v4166, %v4554
        %v4556 = vsub.f32 1.0, %v4555
        %v4557 = vmul.f32 %v4554, %v4556
        %v4558 = vadd.f32 %v4554, %v4557
        %vm4559 = vweird.f32 %v4166
        %vm4560 = vweird.f32 %v4554
        %vm4561 = vmor %vm4559, %vm4560
        %v4562 = vsel %vm4561, %v4554, %v4558
        %v4563 = vand.u32 2147483647, %v4166
        %vm4564 = vcmp.eq.f32.partialorder %v4563, 8.507059e+37
        %v4565 = vand.u32 %v4166, 2147483648
        %v4566 = vor.u32 1.1754944e-38, %v4565
        %v4567 = vsel %vm4564, %v4566, %v4562
        %v4568 = vrcp.pop %v4169
        %v4569 = vmul.f32 %v4169, %v4568
        %v4570 = vsub.f32 1.0, %v4569
        %v4571 = vmul.f32 %v4568, %v4570
        %v4572 = vadd.f32 %v4568, %v4571
        %vm4573 = vweird.f32 %v4169
        %vm4574 = vweird.f32 %v4568
        %vm4575 = vmor %vm4573, %vm4574
        %v4576 = vsel %vm4575, %v4568, %v4572
        %v4577 = vand.u32 2147483647, %v4169
        %vm4578 = vcmp.eq.f32.partialorder %v4577, 8.507059e+37
        %v4579 = vand.u32 %v4169, 2147483648
        %v4580 = vor.u32 1.1754944e-38, %v4579
        %v4581 = vsel %vm4578, %v4580, %v4576
        %v4582 = vrcp.pop %v4172
        %v4583 = vmul.f32 %v4172, %v4582
        %v4584 = vsub.f32 1.0, %v4583
        %v4585 = vmul.f32 %v4582, %v4584
        %v4586 = vadd.f32 %v4582, %v4585
        %vm4587 = vweird.f32 %v4172
        %vm4588 = vweird.f32 %v4582
        %vm4589 = vmor %vm4587, %vm4588
        %v4590 = vsel %vm4589, %v4582, %v4586
        %v4591 = vand.u32 2147483647, %v4172
        %vm4592 = vcmp.eq.f32.partialorder %v4591, 8.507059e+37
        %v4593 = vand.u32 %v4172, 2147483648
        %v4594 = vor.u32 1.1754944e-38, %v4593
        %v4595 = vsel %vm4592, %v4594, %v4590
        %v4596 = vrcp.pop %v4175
        %v4597 = vmul.f32 %v4175, %v4596
        %v4598 = vsub.f32 1.0, %v4597
        %v4599 = vmul.f32 %v4596, %v4598
        %v4600 = vadd.f32 %v4596, %v4599
        %vm4601 = vweird.f32 %v4175
        %vm4602 = vweird.f32 %v4596
        %vm4603 = vmor %vm4601, %vm4602
        %v4604 = vsel %vm4603, %v4596, %v4600
        %v4605 = vand.u32 2147483647, %v4175
        %vm4606 = vcmp.eq.f32.partialorder %v4605, 8.507059e+37
        %v4607 = vand.u32 %v4175, 2147483648
        %v4608 = vor.u32 1.1754944e-38, %v4607
        %v4609 = vsel %vm4606, %v4608, %v4604
        %v4610 = vrcp.pop %v4178
        %v4611 = vmul.f32 %v4178, %v4610
        %v4612 = vsub.f32 1.0, %v4611
        %v4613 = vmul.f32 %v4610, %v4612
        %v4614 = vadd.f32 %v4610, %v4613
        %vm4615 = vweird.f32 %v4178
        %vm4616 = vweird.f32 %v4610
        %vm4617 = vmor %vm4615, %vm4616
        %v4618 = vsel %vm4617, %v4610, %v4614
        %v4619 = vand.u32 2147483647, %v4178
        %vm4620 = vcmp.eq.f32.partialorder %v4619, 8.507059e+37
        %v4621 = vand.u32 %v4178, 2147483648
        %v4622 = vor.u32 1.1754944e-38, %v4621
        %v4623 = vsel %vm4620, %v4622, %v4618
        %v4624 = vrcp.pop %v4181
        %v4625 = vmul.f32 %v4181, %v4624
        %v4626 = vsub.f32 1.0, %v4625
        %v4627 = vmul.f32 %v4624, %v4626
        %v4628 = vadd.f32 %v4624, %v4627
        %vm4629 = vweird.f32 %v4181
        %vm4630 = vweird.f32 %v4624
        %vm4631 = vmor %vm4629, %vm4630
        %v4632 = vsel %vm4631, %v4624, %v4628
        %v4633 = vand.u32 2147483647, %v4181
        %vm4634 = vcmp.eq.f32.partialorder %v4633, 8.507059e+37
        %v4635 = vand.u32 %v4181, 2147483648
        %v4636 = vor.u32 1.1754944e-38, %v4635
        %v4637 = vsel %vm4634, %v4636, %v4632
        %v4638 = vrcp.pop %v4184
        %v4639 = vmul.f32 %v4184, %v4638
        %v4640 = vsub.f32 1.0, %v4639
        %v4641 = vmul.f32 %v4638, %v4640
        %v4642 = vadd.f32 %v4638, %v4641
        %vm4643 = vweird.f32 %v4184
        %vm4644 = vweird.f32 %v4638
        %vm4645 = vmor %vm4643, %vm4644
        %v4646 = vsel %vm4645, %v4638, %v4642
        %v4647 = vand.u32 2147483647, %v4184
        %vm4648 = vcmp.eq.f32.partialorder %v4647, 8.507059e+37
        %v4649 = vand.u32 %v4184, 2147483648
        %v4650 = vor.u32 1.1754944e-38, %v4649
        %v4651 = vsel %vm4648, %v4650, %v4646
        %v4652 = vrcp.pop %v4187
        %v4653 = vmul.f32 %v4187, %v4652
        %v4654 = vsub.f32 1.0, %v4653
        %v4655 = vmul.f32 %v4652, %v4654
        %v4656 = vadd.f32 %v4652, %v4655
        %vm4657 = vweird.f32 %v4187
        %vm4658 = vweird.f32 %v4652
        %vm4659 = vmor %vm4657, %vm4658
        %v4660 = vsel %vm4659, %v4652, %v4656
        %v4661 = vand.u32 2147483647, %v4187
        %vm4662 = vcmp.eq.f32.partialorder %v4661, 8.507059e+37
        %v4663 = vand.u32 %v4187, 2147483648
        %v4664 = vor.u32 1.1754944e-38, %v4663
        %v4665 = vsel %vm4662, %v4664, %v4660
        %v4666 = vrcp.pop %v4190
        %v4667 = vmul.f32 %v4190, %v4666
        %v4668 = vsub.f32 1.0, %v4667
        %v4669 = vmul.f32 %v4666, %v4668
        %v4670 = vadd.f32 %v4666, %v4669
        %vm4671 = vweird.f32 %v4190
        %vm4672 = vweird.f32 %v4666
        %vm4673 = vmor %vm4671, %vm4672
        %v4674 = vsel %vm4673, %v4666, %v4670
        %v4675 = vand.u32 2147483647, %v4190
        %vm4676 = vcmp.eq.f32.partialorder %v4675, 8.507059e+37
        %v4677 = vand.u32 %v4190, 2147483648
        %v4678 = vor.u32 1.1754944e-38, %v4677
        %v4679 = vsel %vm4676, %v4678, %v4674
        %v4680 = vrcp.pop %v4193
        %v4681 = vmul.f32 %v4193, %v4680
        %v4682 = vsub.f32 1.0, %v4681
        %v4683 = vmul.f32 %v4680, %v4682
        %v4684 = vadd.f32 %v4680, %v4683
        %vm4685 = vweird.f32 %v4193
        %vm4686 = vweird.f32 %v4680
        %vm4687 = vmor %vm4685, %vm4686
        %v4688 = vsel %vm4687, %v4680, %v4684
        %v4689 = vand.u32 2147483647, %v4193
        %vm4690 = vcmp.eq.f32.partialorder %v4689, 8.507059e+37
        %v4691 = vand.u32 %v4193, 2147483648
        %v4692 = vor.u32 1.1754944e-38, %v4691
        %v4693 = vsel %vm4690, %v4692, %v4688
        %v4694 = vrcp.pop %v4196
        %v4695 = vmul.f32 %v4196, %v4694
        %v4696 = vsub.f32 1.0, %v4695
        %v4697 = vmul.f32 %v4694, %v4696
        %v4698 = vadd.f32 %v4694, %v4697
        %vm4699 = vweird.f32 %v4196
        %vm4700 = vweird.f32 %v4694
        %vm4701 = vmor %vm4699, %vm4700
        %v4702 = vsel %vm4701, %v4694, %v4698
        %v4703 = vand.u32 2147483647, %v4196
        %vm4704 = vcmp.eq.f32.partialorder %v4703, 8.507059e+37
        %v4705 = vand.u32 %v4196, 2147483648
        %v4706 = vor.u32 1.1754944e-38, %v4705
        %v4707 = vsel %vm4704, %v4706, %v4702
        %v4708 = vrcp.pop %v4199
        %v4709 = vmul.f32 %v4199, %v4708
        %v4710 = vsub.f32 1.0, %v4709
        %v4711 = vmul.f32 %v4708, %v4710
        %v4712 = vadd.f32 %v4708, %v4711
        %vm4713 = vweird.f32 %v4199
        %vm4714 = vweird.f32 %v4708
        %vm4715 = vmor %vm4713, %vm4714
        %v4716 = vsel %vm4715, %v4708, %v4712
        %v4717 = vand.u32 2147483647, %v4199
        %vm4718 = vcmp.eq.f32.partialorder %v4717, 8.507059e+37
        %v4719 = vand.u32 %v4199, 2147483648
        %v4720 = vor.u32 1.1754944e-38, %v4719
        %v4721 = vsel %vm4718, %v4720, %v4716
        %v4722 = vrcp.pop %v4202
        %v4723 = vmul.f32 %v4202, %v4722
        %v4724 = vsub.f32 1.0, %v4723
        %v4725 = vmul.f32 %v4722, %v4724
        %v4726 = vadd.f32 %v4722, %v4725
        %vm4727 = vweird.f32 %v4202
        %vm4728 = vweird.f32 %v4722
        %vm4729 = vmor %vm4727, %vm4728
        %v4730 = vsel %vm4729, %v4722, %v4726
        %v4731 = vand.u32 2147483647, %v4202
        %vm4732 = vcmp.eq.f32.partialorder %v4731, 8.507059e+37
        %v4733 = vand.u32 %v4202, 2147483648
        %v4734 = vor.u32 1.1754944e-38, %v4733
        %v4735 = vsel %vm4732, %v4734, %v4730
        %v4736 = vrcp.pop %v4205
        %v4737 = vmul.f32 %v4205, %v4736
        %v4738 = vsub.f32 1.0, %v4737
        %v4739 = vmul.f32 %v4736, %v4738
        %v4740 = vadd.f32 %v4736, %v4739
        %vm4741 = vweird.f32 %v4205
        %vm4742 = vweird.f32 %v4736
        %vm4743 = vmor %vm4741, %vm4742
        %v4744 = vsel %vm4743, %v4736, %v4740
        %v4745 = vand.u32 2147483647, %v4205
        %vm4746 = vcmp.eq.f32.partialorder %v4745, 8.507059e+37
        %v4747 = vand.u32 %v4205, 2147483648
        %v4748 = vor.u32 1.1754944e-38, %v4747
        %v4749 = vsel %vm4746, %v4748, %v4744
        %v4750 = vrcp.pop %v4208
        %v4751 = vmul.f32 %v4208, %v4750
        %v4752 = vsub.f32 1.0, %v4751
        %v4753 = vmul.f32 %v4750, %v4752
        %v4754 = vadd.f32 %v4750, %v4753
        %vm4755 = vweird.f32 %v4208
        %vm4756 = vweird.f32 %v4750
        %vm4757 = vmor %vm4755, %vm4756
        %v4758 = vsel %vm4757, %v4750, %v4754
        %v4759 = vand.u32 2147483647, %v4208
        %vm4760 = vcmp.eq.f32.partialorder %v4759, 8.507059e+37
        %v4761 = vand.u32 %v4208, 2147483648
        %v4762 = vor.u32 1.1754944e-38, %v4761
        %v4763 = vsel %vm4760, %v4762, %v4758
        %v4764 = vrcp.pop %v4211
        %v4765 = vmul.f32 %v4211, %v4764
        %v4766 = vsub.f32 1.0, %v4765
        %v4767 = vmul.f32 %v4764, %v4766
        %v4768 = vadd.f32 %v4764, %v4767
        %vm4769 = vweird.f32 %v4211
        %vm4770 = vweird.f32 %v4764
        %vm4771 = vmor %vm4769, %vm4770
        %v4772 = vsel %vm4771, %v4764, %v4768
        %v4773 = vand.u32 2147483647, %v4211
        %vm4774 = vcmp.eq.f32.partialorder %v4773, 8.507059e+37
        %v4775 = vand.u32 %v4211, 2147483648
        %v4776 = vor.u32 1.1754944e-38, %v4775
        %v4777 = vsel %vm4774, %v4776, %v4772
        %v4778 = vrcp.pop %v4214
        %v4779 = vmul.f32 %v4214, %v4778
        %v4780 = vsub.f32 1.0, %v4779
        %v4781 = vmul.f32 %v4778, %v4780
        %v4782 = vadd.f32 %v4778, %v4781
        %vm4783 = vweird.f32 %v4214
        %vm4784 = vweird.f32 %v4778
        %vm4785 = vmor %vm4783, %vm4784
        %v4786 = vsel %vm4785, %v4778, %v4782
        %v4787 = vand.u32 2147483647, %v4214
        %vm4788 = vcmp.eq.f32.partialorder %v4787, 8.507059e+37
        %v4789 = vand.u32 %v4214, 2147483648
        %v4790 = vor.u32 1.1754944e-38, %v4789
        %v4791 = vsel %vm4788, %v4790, %v4786
        %v4792 = vrcp.pop %v4217
        %v4793 = vmul.f32 %v4217, %v4792
        %v4794 = vsub.f32 1.0, %v4793
        %v4795 = vmul.f32 %v4792, %v4794
        %v4796 = vadd.f32 %v4792, %v4795
        %vm4797 = vweird.f32 %v4217
        %vm4798 = vweird.f32 %v4792
        %vm4799 = vmor %vm4797, %vm4798
        %v4800 = vsel %vm4799, %v4792, %v4796
        %v4801 = vand.u32 2147483647, %v4217
        %vm4802 = vcmp.eq.f32.partialorder %v4801, 8.507059e+37
        %v4803 = vand.u32 %v4217, 2147483648
        %v4804 = vor.u32 1.1754944e-38, %v4803
        %v4805 = vsel %vm4802, %v4804, %v4800
        %v4806 = vrcp.pop %v4220
        %v4807 = vmul.f32 %v4220, %v4806
        %v4808 = vsub.f32 1.0, %v4807
        %v4809 = vmul.f32 %v4806, %v4808
        %v4810 = vadd.f32 %v4806, %v4809
        %vm4811 = vweird.f32 %v4220
        %vm4812 = vweird.f32 %v4806
        %vm4813 = vmor %vm4811, %vm4812
        %v4814 = vsel %vm4813, %v4806, %v4810
        %v4815 = vand.u32 2147483647, %v4220
        %vm4816 = vcmp.eq.f32.partialorder %v4815, 8.507059e+37
        %v4817 = vand.u32 %v4220, 2147483648
        %v4818 = vor.u32 1.1754944e-38, %v4817
        %v4819 = vsel %vm4816, %v4818, %v4814
        %v4820 = vrcp.pop %v4223
        %v4821 = vmul.f32 %v4223, %v4820
        %v4822 = vsub.f32 1.0, %v4821
        %v4823 = vmul.f32 %v4820, %v4822
        %v4824 = vadd.f32 %v4820, %v4823
        %vm4825 = vweird.f32 %v4223
        %vm4826 = vweird.f32 %v4820
        %vm4827 = vmor %vm4825, %vm4826
        %v4828 = vsel %vm4827, %v4820, %v4824
        %v4829 = vand.u32 2147483647, %v4223
        %vm4830 = vcmp.eq.f32.partialorder %v4829, 8.507059e+37
        %v4831 = vand.u32 %v4223, 2147483648
        %v4832 = vor.u32 1.1754944e-38, %v4831
        %v4833 = vsel %vm4830, %v4832, %v4828
        %v4834 = vrcp.pop %v4226
        %v4835 = vmul.f32 %v4226, %v4834
        %v4836 = vsub.f32 1.0, %v4835
        %v4837 = vmul.f32 %v4834, %v4836
        %v4838 = vadd.f32 %v4834, %v4837
        %vm4839 = vweird.f32 %v4226
        %vm4840 = vweird.f32 %v4834
        %vm4841 = vmor %vm4839, %vm4840
        %v4842 = vsel %vm4841, %v4834, %v4838
        %v4843 = vand.u32 2147483647, %v4226
        %vm4844 = vcmp.eq.f32.partialorder %v4843, 8.507059e+37
        %v4845 = vand.u32 %v4226, 2147483648
        %v4846 = vor.u32 1.1754944e-38, %v4845
        %v4847 = vsel %vm4844, %v4846, %v4842
        %v4848 = vrcp.pop %v4229
        %v4849 = vmul.f32 %v4229, %v4848
        %v4850 = vsub.f32 1.0, %v4849
        %v4851 = vmul.f32 %v4848, %v4850
        %v4852 = vadd.f32 %v4848, %v4851
        %vm4853 = vweird.f32 %v4229
        %vm4854 = vweird.f32 %v4848
        %vm4855 = vmor %vm4853, %vm4854
        %v4856 = vsel %vm4855, %v4848, %v4852
        %v4857 = vand.u32 2147483647, %v4229
        %vm4858 = vcmp.eq.f32.partialorder %v4857, 8.507059e+37
        %v4859 = vand.u32 %v4229, 2147483648
        %v4860 = vor.u32 1.1754944e-38, %v4859
        %v4861 = vsel %vm4858, %v4860, %v4856
        %v4862 = vrcp.pop %v4232
        %v4863 = vmul.f32 %v4232, %v4862
        %v4864 = vsub.f32 1.0, %v4863
        %v4865 = vmul.f32 %v4862, %v4864
        %v4866 = vadd.f32 %v4862, %v4865
        %vm4867 = vweird.f32 %v4232
        %vm4868 = vweird.f32 %v4862
        %vm4869 = vmor %vm4867, %vm4868
        %v4870 = vsel %vm4869, %v4862, %v4866
        %v4871 = vand.u32 2147483647, %v4232
        %vm4872 = vcmp.eq.f32.partialorder %v4871, 8.507059e+37
        %v4873 = vand.u32 %v4232, 2147483648
        %v4874 = vor.u32 1.1754944e-38, %v4873
        %v4875 = vsel %vm4872, %v4874, %v4870
        %v4876 = vrcp.pop %v4235
        %v4877 = vmul.f32 %v4235, %v4876
        %v4878 = vsub.f32 1.0, %v4877
        %v4879 = vmul.f32 %v4876, %v4878
        %v4880 = vadd.f32 %v4876, %v4879
        %vm4881 = vweird.f32 %v4235
        %vm4882 = vweird.f32 %v4876
        %vm4883 = vmor %vm4881, %vm4882
        %v4884 = vsel %vm4883, %v4876, %v4880
        %v4885 = vand.u32 2147483647, %v4235
        %vm4886 = vcmp.eq.f32.partialorder %v4885, 8.507059e+37
        %v4887 = vand.u32 %v4235, 2147483648
        %v4888 = vor.u32 1.1754944e-38, %v4887
        %v4889 = vsel %vm4886, %v4888, %v4884
        %v4890 = vrcp.pop %v4238
        %v4891 = vmul.f32 %v4238, %v4890
        %v4892 = vsub.f32 1.0, %v4891
        %v4893 = vmul.f32 %v4890, %v4892
        %v4894 = vadd.f32 %v4890, %v4893
        %vm4895 = vweird.f32 %v4238
        %vm4896 = vweird.f32 %v4890
        %vm4897 = vmor %vm4895, %vm4896
        %v4898 = vsel %vm4897, %v4890, %v4894
        %v4899 = vand.u32 2147483647, %v4238
        %vm4900 = vcmp.eq.f32.partialorder %v4899, 8.507059e+37
        %v4901 = vand.u32 %v4238, 2147483648
        %v4902 = vor.u32 1.1754944e-38, %v4901
        %v4903 = vsel %vm4900, %v4902, %v4898
        %v4904 = vrcp.pop %v4241
        %v4905 = vmul.f32 %v4241, %v4904
        %v4906 = vsub.f32 1.0, %v4905
        %v4907 = vmul.f32 %v4904, %v4906
        %v4908 = vadd.f32 %v4904, %v4907
        %vm4909 = vweird.f32 %v4241
        %vm4910 = vweird.f32 %v4904
        %vm4911 = vmor %vm4909, %vm4910
        %v4912 = vsel %vm4911, %v4904, %v4908
        %v4913 = vand.u32 2147483647, %v4241
        %vm4914 = vcmp.eq.f32.partialorder %v4913, 8.507059e+37
        %v4915 = vand.u32 %v4241, 2147483648
        %v4916 = vor.u32 1.1754944e-38, %v4915
        %v4917 = vsel %vm4914, %v4916, %v4912
        %v4918 = vrcp.pop %v4244
        %v4919 = vmul.f32 %v4244, %v4918
        %v4920 = vsub.f32 1.0, %v4919
        %v4921 = vmul.f32 %v4918, %v4920
        %v4922 = vadd.f32 %v4918, %v4921
        %vm4923 = vweird.f32 %v4244
        %vm4924 = vweird.f32 %v4918
        %vm4925 = vmor %vm4923, %vm4924
        %v4926 = vsel %vm4925, %v4918, %v4922
        %v4927 = vand.u32 2147483647, %v4244
        %vm4928 = vcmp.eq.f32.partialorder %v4927, 8.507059e+37
        %v4929 = vand.u32 %v4244, 2147483648
        %v4930 = vor.u32 1.1754944e-38, %v4929
        %v4931 = vsel %vm4928, %v4930, %v4926
        %v4932 = vrcp.pop %v4247
        %v4933 = vmul.f32 %v4247, %v4932
        %v4934 = vsub.f32 1.0, %v4933
        %v4935 = vmul.f32 %v4932, %v4934
        %v4936 = vadd.f32 %v4932, %v4935
        %vm4937 = vweird.f32 %v4247
        %vm4938 = vweird.f32 %v4932
        %vm4939 = vmor %vm4937, %vm4938
        %v4940 = vsel %vm4939, %v4932, %v4936
        %v4941 = vand.u32 2147483647, %v4247
        %vm4942 = vcmp.eq.f32.partialorder %v4941, 8.507059e+37
        %v4943 = vand.u32 %v4247, 2147483648
        %v4944 = vor.u32 1.1754944e-38, %v4943
        %v4945 = vsel %vm4942, %v4944, %v4940
        %v4946 = vrcp.pop %v4250
        %v4947 = vmul.f32 %v4250, %v4946
        %v4948 = vsub.f32 1.0, %v4947
        %v4949 = vmul.f32 %v4946, %v4948
        %v4950 = vadd.f32 %v4946, %v4949
        %vm4951 = vweird.f32 %v4250
        %vm4952 = vweird.f32 %v4946
        %vm4953 = vmor %vm4951, %vm4952
        %v4954 = vsel %vm4953, %v4946, %v4950
        %v4955 = vand.u32 2147483647, %v4250
        %vm4956 = vcmp.eq.f32.partialorder %v4955, 8.507059e+37
        %v4957 = vand.u32 %v4250, 2147483648
        %v4958 = vor.u32 1.1754944e-38, %v4957
        %v4959 = vsel %vm4956, %v4958, %v4954
        %v4960 = vrcp.pop %v4253
        %v4961 = vmul.f32 %v4253, %v4960
        %v4962 = vsub.f32 1.0, %v4961
        %v4963 = vmul.f32 %v4960, %v4962
        %v4964 = vadd.f32 %v4960, %v4963
        %vm4965 = vweird.f32 %v4253
        %vm4966 = vweird.f32 %v4960
        %vm4967 = vmor %vm4965, %vm4966
        %v4968 = vsel %vm4967, %v4960, %v4964
        %v4969 = vand.u32 2147483647, %v4253
        %vm4970 = vcmp.eq.f32.partialorder %v4969, 8.507059e+37
        %v4971 = vand.u32 %v4253, 2147483648
        %v4972 = vor.u32 1.1754944e-38, %v4971
        %v4973 = vsel %vm4970, %v4972, %v4968
        %v4974 = vrcp.pop %v4256
        %v4975 = vmul.f32 %v4256, %v4974
        %v4976 = vsub.f32 1.0, %v4975
        %v4977 = vmul.f32 %v4974, %v4976
        %v4978 = vadd.f32 %v4974, %v4977
        %vm4979 = vweird.f32 %v4256
        %vm4980 = vweird.f32 %v4974
        %vm4981 = vmor %vm4979, %vm4980
        %v4982 = vsel %vm4981, %v4974, %v4978
        %v4983 = vand.u32 2147483647, %v4256
        %vm4984 = vcmp.eq.f32.partialorder %v4983, 8.507059e+37
        %v4985 = vand.u32 %v4256, 2147483648
        %v4986 = vor.u32 1.1754944e-38, %v4985
        %v4987 = vsel %vm4984, %v4986, %v4982
        %v4988 = vrcp.pop %v4259
        %v4989 = vmul.f32 %v4259, %v4988
        %v4990 = vsub.f32 1.0, %v4989
        %v4991 = vmul.f32 %v4988, %v4990
        %v4992 = vadd.f32 %v4988, %v4991
        %vm4993 = vweird.f32 %v4259
        %vm4994 = vweird.f32 %v4988
        %vm4995 = vmor %vm4993, %vm4994
        %v4996 = vsel %vm4995, %v4988, %v4992
        %v4997 = vand.u32 2147483647, %v4259
        %vm4998 = vcmp.eq.f32.partialorder %v4997, 8.507059e+37
        %v4999 = vand.u32 %v4259, 2147483648
        %v5000 = vor.u32 1.1754944e-38, %v4999
        %v5001 = vsel %vm4998, %v5000, %v4996
        %v5002 = vrcp.pop %v4262
        %v5003 = vmul.f32 %v4262, %v5002
        %v5004 = vsub.f32 1.0, %v5003
        %v5005 = vmul.f32 %v5002, %v5004
        %v5006 = vadd.f32 %v5002, %v5005
        %vm5007 = vweird.f32 %v4262
        %vm5008 = vweird.f32 %v5002
        %vm5009 = vmor %vm5007, %vm5008
        %v5010 = vsel %vm5009, %v5002, %v5006
        %v5011 = vand.u32 2147483647, %v4262
        %vm5012 = vcmp.eq.f32.partialorder %v5011, 8.507059e+37
        %v5013 = vand.u32 %v4262, 2147483648
        %v5014 = vor.u32 1.1754944e-38, %v5013
        %v5015 = vsel %vm5012, %v5014, %v5010
        %v5016 = vrcp.pop %v4265
        %v5017 = vmul.f32 %v4265, %v5016
        %v5018 = vsub.f32 1.0, %v5017
        %v5019 = vmul.f32 %v5016, %v5018
        %v5020 = vadd.f32 %v5016, %v5019
        %vm5021 = vweird.f32 %v4265
        %vm5022 = vweird.f32 %v5016
        %vm5023 = vmor %vm5021, %vm5022
        %v5024 = vsel %vm5023, %v5016, %v5020
        %v5025 = vand.u32 2147483647, %v4265
        %vm5026 = vcmp.eq.f32.partialorder %v5025, 8.507059e+37
        %v5027 = vand.u32 %v4265, 2147483648
        %v5028 = vor.u32 1.1754944e-38, %v5027
        %v5029 = vsel %vm5026, %v5028, %v5024
        %v5030 = vrcp.pop %v4268
        %v5031 = vmul.f32 %v4268, %v5030
        %v5032 = vsub.f32 1.0, %v5031
        %v5033 = vmul.f32 %v5030, %v5032
        %v5034 = vadd.f32 %v5030, %v5033
        %vm5035 = vweird.f32 %v4268
        %vm5036 = vweird.f32 %v5030
        %vm5037 = vmor %vm5035, %vm5036
        %v5038 = vsel %vm5037, %v5030, %v5034
        %v5039 = vand.u32 2147483647, %v4268
        %vm5040 = vcmp.eq.f32.partialorder %v5039, 8.507059e+37
        %v5041 = vand.u32 %v4268, 2147483648
        %v5042 = vor.u32 1.1754944e-38, %v5041
        %v5043 = vsel %vm5040, %v5042, %v5038
        %v5044 = vrcp.pop %v4271
        %v5045 = vmul.f32 %v4271, %v5044
        %v5046 = vsub.f32 1.0, %v5045
        %v5047 = vmul.f32 %v5044, %v5046
        %v5048 = vadd.f32 %v5044, %v5047
        %vm5049 = vweird.f32 %v4271
        %vm5050 = vweird.f32 %v5044
        %vm5051 = vmor %vm5049, %vm5050
        %v5052 = vsel %vm5051, %v5044, %v5048
        %v5053 = vand.u32 2147483647, %v4271
        %vm5054 = vcmp.eq.f32.partialorder %v5053, 8.507059e+37
        %v5055 = vand.u32 %v4271, 2147483648
        %v5056 = vor.u32 1.1754944e-38, %v5055
        %v5057 = vsel %vm5054, %v5056, %v5052
        %v5058 = vrcp.pop %v4274
        %v5059 = vmul.f32 %v4274, %v5058
        %v5060 = vsub.f32 1.0, %v5059
        %v5061 = vmul.f32 %v5058, %v5060
        %v5062 = vadd.f32 %v5058, %v5061
        %vm5063 = vweird.f32 %v4274
        %vm5064 = vweird.f32 %v5058
        %vm5065 = vmor %vm5063, %vm5064
        %v5066 = vsel %vm5065, %v5058, %v5062
        %v5067 = vand.u32 2147483647, %v4274
        %vm5068 = vcmp.eq.f32.partialorder %v5067, 8.507059e+37
        %v5069 = vand.u32 %v4274, 2147483648
        %v5070 = vor.u32 1.1754944e-38, %v5069
        %v5071 = vsel %vm5068, %v5070, %v5066
        %v5072 = vrcp.pop %v4277
        %v5073 = vmul.f32 %v4277, %v5072
        %v5074 = vsub.f32 1.0, %v5073
        %v5075 = vmul.f32 %v5072, %v5074
        %v5076 = vadd.f32 %v5072, %v5075
        %vm5077 = vweird.f32 %v4277
        %vm5078 = vweird.f32 %v5072
        %vm5079 = vmor %vm5077, %vm5078
        %v5080 = vsel %vm5079, %v5072, %v5076
        %v5081 = vand.u32 2147483647, %v4277
        %vm5082 = vcmp.eq.f32.partialorder %v5081, 8.507059e+37
        %v5083 = vand.u32 %v4277, 2147483648
        %v5084 = vor.u32 1.1754944e-38, %v5083
        %v5085 = vsel %vm5082, %v5084, %v5080
        %v5086 = vrcp.pop %v4280
        %v5087 = vmul.f32 %v4280, %v5086
        %v5088 = vsub.f32 1.0, %v5087
        %v5089 = vmul.f32 %v5086, %v5088
        %v5090 = vadd.f32 %v5086, %v5089
        %vm5091 = vweird.f32 %v4280
        %vm5092 = vweird.f32 %v5086
        %vm5093 = vmor %vm5091, %vm5092
        %v5094 = vsel %vm5093, %v5086, %v5090
        %v5095 = vand.u32 2147483647, %v4280
        %vm5096 = vcmp.eq.f32.partialorder %v5095, 8.507059e+37
        %v5097 = vand.u32 %v4280, 2147483648
        %v5098 = vor.u32 1.1754944e-38, %v5097
        %v5099 = vsel %vm5096, %v5098, %v5094
        %v5100 = vrcp.pop %v4283
        %v5101 = vmul.f32 %v4283, %v5100
        %v5102 = vsub.f32 1.0, %v5101
        %v5103 = vmul.f32 %v5100, %v5102
        %v5104 = vadd.f32 %v5100, %v5103
        %vm5105 = vweird.f32 %v4283
        %vm5106 = vweird.f32 %v5100
        %vm5107 = vmor %vm5105, %vm5106
        %v5108 = vsel %vm5107, %v5100, %v5104
        %v5109 = vand.u32 2147483647, %v4283
        %vm5110 = vcmp.eq.f32.partialorder %v5109, 8.507059e+37
        %v5111 = vand.u32 %v4283, 2147483648
        %v5112 = vor.u32 1.1754944e-38, %v5111
        %v5113 = vsel %vm5110, %v5112, %v5108
        %v5114 = vrcp.pop %v4286
        %v5115 = vmul.f32 %v4286, %v5114
        %v5116 = vsub.f32 1.0, %v5115
        %v5117 = vmul.f32 %v5114, %v5116
        %v5118 = vadd.f32 %v5114, %v5117
        %vm5119 = vweird.f32 %v4286
        %vm5120 = vweird.f32 %v5114
        %vm5121 = vmor %vm5119, %vm5120
        %v5122 = vsel %vm5121, %v5114, %v5118
        %v5123 = vand.u32 2147483647, %v4286
        %vm5124 = vcmp.eq.f32.partialorder %v5123, 8.507059e+37
        %v5125 = vand.u32 %v4286, 2147483648
        %v5126 = vor.u32 1.1754944e-38, %v5125
        %v5127 = vsel %vm5124, %v5126, %v5122
        %v5128 = vrcp.pop %v4289
        %v5129 = vmul.f32 %v4289, %v5128
        %v5130 = vsub.f32 1.0, %v5129
        %v5131 = vmul.f32 %v5128, %v5130
        %v5132 = vadd.f32 %v5128, %v5131
        %vm5133 = vweird.f32 %v4289
        %vm5134 = vweird.f32 %v5128
        %vm5135 = vmor %vm5133, %vm5134
        %v5136 = vsel %vm5135, %v5128, %v5132
        %v5137 = vand.u32 2147483647, %v4289
        %vm5138 = vcmp.eq.f32.partialorder %v5137, 8.507059e+37
        %v5139 = vand.u32 %v4289, 2147483648
        %v5140 = vor.u32 1.1754944e-38, %v5139
        %v5141 = vsel %vm5138, %v5140, %v5136
        %v5142 = vrcp.pop %v4292
        %v5143 = vmul.f32 %v4292, %v5142
        %v5144 = vsub.f32 1.0, %v5143
        %v5145 = vmul.f32 %v5142, %v5144
        %v5146 = vadd.f32 %v5142, %v5145
        %vm5147 = vweird.f32 %v4292
        %vm5148 = vweird.f32 %v5142
        %vm5149 = vmor %vm5147, %vm5148
        %v5150 = vsel %vm5149, %v5142, %v5146
        %v5151 = vand.u32 2147483647, %v4292
        %vm5152 = vcmp.eq.f32.partialorder %v5151, 8.507059e+37
        %v5153 = vand.u32 %v4292, 2147483648
        %v5154 = vor.u32 1.1754944e-38, %v5153
        %v5155 = vsel %vm5152, %v5154, %v5150
        %v5156 = vrcp.pop %v4295
        %v5157 = vmul.f32 %v4295, %v5156
        %v5158 = vsub.f32 1.0, %v5157
        %v5159 = vmul.f32 %v5156, %v5158
        %v5160 = vadd.f32 %v5156, %v5159
        %vm5161 = vweird.f32 %v4295
        %vm5162 = vweird.f32 %v5156
        %vm5163 = vmor %vm5161, %vm5162
        %v5164 = vsel %vm5163, %v5156, %v5160
        %v5165 = vand.u32 2147483647, %v4295
        %vm5166 = vcmp.eq.f32.partialorder %v5165, 8.507059e+37
        %v5167 = vand.u32 %v4295, 2147483648
        %v5168 = vor.u32 1.1754944e-38, %v5167
        %v5169 = vsel %vm5166, %v5168, %v5164
        %v5170 = vrcp.pop %v4298
        %v5171 = vmul.f32 %v4298, %v5170
        %v5172 = vsub.f32 1.0, %v5171
        %v5173 = vmul.f32 %v5170, %v5172
        %v5174 = vadd.f32 %v5170, %v5173
        %vm5175 = vweird.f32 %v4298
        %vm5176 = vweird.f32 %v5170
        %vm5177 = vmor %vm5175, %vm5176
        %v5178 = vsel %vm5177, %v5170, %v5174
        %v5179 = vand.u32 2147483647, %v4298
        %vm5180 = vcmp.eq.f32.partialorder %v5179, 8.507059e+37
        %v5181 = vand.u32 %v4298, 2147483648
        %v5182 = vor.u32 1.1754944e-38, %v5181
        %v5183 = vsel %vm5180, %v5182, %v5178
        %v5184 = vrcp.pop %v4301
        %v5185 = vmul.f32 %v4301, %v5184
        %v5186 = vsub.f32 1.0, %v5185
        %v5187 = vmul.f32 %v5184, %v5186
        %v5188 = vadd.f32 %v5184, %v5187
        %vm5189 = vweird.f32 %v4301
        %vm5190 = vweird.f32 %v5184
        %vm5191 = vmor %vm5189, %vm5190
        %v5192 = vsel %vm5191, %v5184, %v5188
        %v5193 = vand.u32 2147483647, %v4301
        %vm5194 = vcmp.eq.f32.partialorder %v5193, 8.507059e+37
        %v5195 = vand.u32 %v4301, 2147483648
        %v5196 = vor.u32 1.1754944e-38, %v5195
        %v5197 = vsel %vm5194, %v5196, %v5192
        %v5198 = vmul.f32 %v3920, %v4315
        %v5199 = vmul.f32 %v3923, %v4329
        %v5200 = vmul.f32 %v3926, %v4343
        %v5201 = vmul.f32 %v3929, %v4357
        %v5202 = vmul.f32 %v3932, %v4371
        %v5203 = vmul.f32 %v3935, %v4385
        %v5204 = vmul.f32 %v3938, %v4399
        %v5205 = vmul.f32 %v3941, %v4413
        %v5206 = vmul.f32 %v3944, %v4427
        %v5207 = vmul.f32 %v3947, %v4441
        %v5208 = vmul.f32 %v3950, %v4455
        %v5209 = vmul.f32 %v3953, %v4469
        %v5210 = vmul.f32 %v3956, %v4483
        %v5211 = vmul.f32 %v3959, %v4497
        %v5212 = vmul.f32 %v3962, %v4511
        %v5213 = vmul.f32 %v3965, %v4525
        %v5214 = vmul.f32 %v3968, %v4539
        %v5215 = vmul.f32 %v3971, %v4553
        %v5216 = vmul.f32 %v3974, %v4567
        %v5217 = vmul.f32 %v3977, %v4581
        %v5218 = vmul.f32 %v3980, %v4595
        %v5219 = vmul.f32 %v3983, %v4609
        %v5220 = vmul.f32 %v3986, %v4623
        %v5221 = vmul.f32 %v3989, %v4637
        %v5222 = vmul.f32 %v3992, %v4651
        %v5223 = vmul.f32 %v3995, %v4665
        %v5224 = vmul.f32 %v3998, %v4679
        %v5225 = vmul.f32 %v4001, %v4693
        %v5226 = vmul.f32 %v4004, %v4707
        %v5227 = vmul.f32 %v4007, %v4721
        %v5228 = vmul.f32 %v4010, %v4735
        %v5229 = vmul.f32 %v4013, %v4749
        %v5230 = vmul.f32 %v4016, %v4763
        %v5231 = vmul.f32 %v4019, %v4777
        %v5232 = vmul.f32 %v4022, %v4791
        %v5233 = vmul.f32 %v4025, %v4805
        %v5234 = vmul.f32 %v4028, %v4819
        %v5235 = vmul.f32 %v4031, %v4833
        %v5236 = vmul.f32 %v4034, %v4847
        %v5237 = vmul.f32 %v4037, %v4861
        %v5238 = vmul.f32 %v4040, %v4875
        %v5239 = vmul.f32 %v4043, %v4889
        %v5240 = vmul.f32 %v4046, %v4903
        %v5241 = vmul.f32 %v4049, %v4917
        %v5242 = vmul.f32 %v4052, %v4931
        %v5243 = vmul.f32 %v4055, %v4945
        %v5244 = vmul.f32 %v4058, %v4959
        %v5245 = vmul.f32 %v4061, %v4973
        %v5246 = vmul.f32 %v4064, %v4987
        %v5247 = vmul.f32 %v4067, %v5001
        %v5248 = vmul.f32 %v4070, %v5015
        %v5249 = vmul.f32 %v4073, %v5029
        %v5250 = vmul.f32 %v4076, %v5043
        %v5251 = vmul.f32 %v4079, %v5057
        %v5252 = vmul.f32 %v4082, %v5071
        %v5253 = vmul.f32 %v4085, %v5085
        %v5254 = vmul.f32 %v4088, %v5099
        %v5255 = vmul.f32 %v4091, %v5113
        %v5256 = vmul.f32 %v4094, %v5127
        %v5257 = vmul.f32 %v4097, %v5141
        %v5258 = vmul.f32 %v4100, %v5155
        %v5259 = vmul.f32 %v4103, %v5169
        %v5260 = vmul.f32 %v4106, %v5183
        %v5261 = vmul.f32 %v4109, %v5197
        %v5262 = vmax.f32 %v5198, 0.0
        %v5263 = vmax.f32 %v5199, 0.0
        %v5264 = vmax.f32 %v5200, 0.0
        %v5265 = vmax.f32 %v5201, 0.0
        %v5266 = vmax.f32 %v5202, 0.0
        %v5267 = vmax.f32 %v5203, 0.0
        %v5268 = vmax.f32 %v5204, 0.0
        %v5269 = vmax.f32 %v5205, 0.0
        %v5270 = vmax.f32 %v5206, 0.0
        %v5271 = vmax.f32 %v5207, 0.0
        %v5272 = vmax.f32 %v5208, 0.0
        %v5273 = vmax.f32 %v5209, 0.0
        %v5274 = vmax.f32 %v5210, 0.0
        %v5275 = vmax.f32 %v5211, 0.0
        %v5276 = vmax.f32 %v5212, 0.0
        %v5277 = vmax.f32 %v5213, 0.0
        %v5278 = vmax.f32 %v5214, 0.0
        %v5279 = vmax.f32 %v5215, 0.0
        %v5280 = vmax.f32 %v5216, 0.0
        %v5281 = vmax.f32 %v5217, 0.0
        %v5282 = vmax.f32 %v5218, 0.0
        %v5283 = vmax.f32 %v5219, 0.0
        %v5284 = vmax.f32 %v5220, 0.0
        %v5285 = vmax.f32 %v5221, 0.0
        %v5286 = vmax.f32 %v5222, 0.0
        %v5287 = vmax.f32 %v5223, 0.0
        %v5288 = vmax.f32 %v5224, 0.0
        %v5289 = vmax.f32 %v5225, 0.0
        %v5290 = vmax.f32 %v5226, 0.0
        %v5291 = vmax.f32 %v5227, 0.0
        %v5292 = vmax.f32 %v5228, 0.0
        %v5293 = vmax.f32 %v5229, 0.0
        %v5294 = vmax.f32 %v5230, 0.0
        %v5295 = vmax.f32 %v5231, 0.0
        %v5296 = vmax.f32 %v5232, 0.0
        %v5297 = vmax.f32 %v5233, 0.0
        %v5298 = vmax.f32 %v5234, 0.0
        %v5299 = vmax.f32 %v5235, 0.0
        %v5300 = vmax.f32 %v5236, 0.0
        %v5301 = vmax.f32 %v5237, 0.0
        %v5302 = vmax.f32 %v5238, 0.0
        %v5303 = vmax.f32 %v5239, 0.0
        %v5304 = vmax.f32 %v5240, 0.0
        %v5305 = vmax.f32 %v5241, 0.0
        %v5306 = vmax.f32 %v5242, 0.0
        %v5307 = vmax.f32 %v5243, 0.0
        %v5308 = vmax.f32 %v5244, 0.0
        %v5309 = vmax.f32 %v5245, 0.0
        %v5310 = vmax.f32 %v5246, 0.0
        %v5311 = vmax.f32 %v5247, 0.0
        %v5312 = vmax.f32 %v5248, 0.0
        %v5313 = vmax.f32 %v5249, 0.0
        %v5314 = vmax.f32 %v5250, 0.0
        %v5315 = vmax.f32 %v5251, 0.0
        %v5316 = vmax.f32 %v5252, 0.0
        %v5317 = vmax.f32 %v5253, 0.0
        %v5318 = vmax.f32 %v5254, 0.0
        %v5319 = vmax.f32 %v5255, 0.0
        %v5320 = vmax.f32 %v5256, 0.0
        %v5321 = vmax.f32 %v5257, 0.0
        %v5322 = vmax.f32 %v5258, 0.0
        %v5323 = vmax.f32 %v5259, 0.0
        %v5324 = vmax.f32 %v5260, 0.0
        %v5325 = vmax.f32 %v5261, 0.0
        %v5326 = vmin.f32 %v5262, 1.0
        %v5327 = vmin.f32 %v5263, 1.0
        %v5328 = vmin.f32 %v5264, 1.0
        %v5329 = vmin.f32 %v5265, 1.0
        %v5330 = vmin.f32 %v5266, 1.0
        %v5331 = vmin.f32 %v5267, 1.0
        %v5332 = vmin.f32 %v5268, 1.0
        %v5333 = vmin.f32 %v5269, 1.0
        %v5334 = vmin.f32 %v5270, 1.0
        %v5335 = vmin.f32 %v5271, 1.0
        %v5336 = vmin.f32 %v5272, 1.0
        %v5337 = vmin.f32 %v5273, 1.0
        %v5338 = vmin.f32 %v5274, 1.0
        %v5339 = vmin.f32 %v5275, 1.0
        %v5340 = vmin.f32 %v5276, 1.0
        %v5341 = vmin.f32 %v5277, 1.0
        %v5342 = vmin.f32 %v5278, 1.0
        %v5343 = vmin.f32 %v5279, 1.0
        %v5344 = vmin.f32 %v5280, 1.0
        %v5345 = vmin.f32 %v5281, 1.0
        %v5346 = vmin.f32 %v5282, 1.0
        %v5347 = vmin.f32 %v5283, 1.0
        %v5348 = vmin.f32 %v5284, 1.0
        %v5349 = vmin.f32 %v5285, 1.0
        %v5350 = vmin.f32 %v5286, 1.0
        %v5351 = vmin.f32 %v5287, 1.0
        %v5352 = vmin.f32 %v5288, 1.0
        %v5353 = vmin.f32 %v5289, 1.0
        %v5354 = vmin.f32 %v5290, 1.0
        %v5355 = vmin.f32 %v5291, 1.0
        %v5356 = vmin.f32 %v5292, 1.0
        %v5357 = vmin.f32 %v5293, 1.0
        %v5358 = vmin.f32 %v5294, 1.0
        %v5359 = vmin.f32 %v5295, 1.0
        %v5360 = vmin.f32 %v5296, 1.0
        %v5361 = vmin.f32 %v5297, 1.0
        %v5362 = vmin.f32 %v5298, 1.0
        %v5363 = vmin.f32 %v5299, 1.0
        %v5364 = vmin.f32 %v5300, 1.0
        %v5365 = vmin.f32 %v5301, 1.0
        %v5366 = vmin.f32 %v5302, 1.0
        %v5367 = vmin.f32 %v5303, 1.0
        %v5368 = vmin.f32 %v5304, 1.0
        %v5369 = vmin.f32 %v5305, 1.0
        %v5370 = vmin.f32 %v5306, 1.0
        %v5371 = vmin.f32 %v5307, 1.0
        %v5372 = vmin.f32 %v5308, 1.0
        %v5373 = vmin.f32 %v5309, 1.0
        %v5374 = vmin.f32 %v5310, 1.0
        %v5375 = vmin.f32 %v5311, 1.0
        %v5376 = vmin.f32 %v5312, 1.0
        %v5377 = vmin.f32 %v5313, 1.0
        %v5378 = vmin.f32 %v5314, 1.0
        %v5379 = vmin.f32 %v5315, 1.0
        %v5380 = vmin.f32 %v5316, 1.0
        %v5381 = vmin.f32 %v5317, 1.0
        %v5382 = vmin.f32 %v5318, 1.0
        %v5383 = vmin.f32 %v5319, 1.0
        %v5384 = vmin.f32 %v5320, 1.0
        %v5385 = vmin.f32 %v5321, 1.0
        %v5386 = vmin.f32 %v5322, 1.0
        %v5387 = vmin.f32 %v5323, 1.0
        %v5388 = vmin.f32 %v5324, 1.0
        %v5389 = vmin.f32 %v5325, 1.0
        %v5454 = vlaneseq
        %v5455 = vand.u32 %v5454, 127
        %v5456 = vperm.slane %v5326, %v5455
        %v5457 = vadd.s32 %v5455, 4294967288
        %v5458 = vperm.slane %v5327, %v5457
        %vm5459 = vcmask 130112
        %v5460 = vsel %vm5459, %v5458, %v5456
        %v5461 = vperm.slane %v5328, %v5455
        %v5462 = vperm.slane %v5329, %v5457
        %v5463 = vsel %vm5459, %v5462, %v5461
        %v5464 = vperm.slane %v5330, %v5455
        %v5465 = vperm.slane %v5331, %v5457
        %v5466 = vsel %vm5459, %v5465, %v5464
        %v5467 = vperm.slane %v5332, %v5455
        %v5468 = vperm.slane %v5333, %v5457
        %v5469 = vsel %vm5459, %v5468, %v5467
        %v5470 = vperm.slane %v5334, %v5455
        %v5471 = vperm.slane %v5335, %v5457
        %v5472 = vsel %vm5459, %v5471, %v5470
        %v5473 = vperm.slane %v5336, %v5455
        %v5474 = vperm.slane %v5337, %v5457
        %v5475 = vsel %vm5459, %v5474, %v5473
        %v5476 = vperm.slane %v5338, %v5455
        %v5477 = vperm.slane %v5339, %v5457
        %v5478 = vsel %vm5459, %v5477, %v5476
        %v5479 = vperm.slane %v5340, %v5455
        %v5480 = vperm.slane %v5341, %v5457
        %v5481 = vsel %vm5459, %v5480, %v5479
        %v5482 = vperm.slane %v5342, %v5455
        %v5483 = vperm.slane %v5343, %v5457
        %v5484 = vsel %vm5459, %v5483, %v5482
        %v5485 = vperm.slane %v5344, %v5455
        %v5486 = vperm.slane %v5345, %v5457
        %v5487 = vsel %vm5459, %v5486, %v5485
        %v5488 = vperm.slane %v5346, %v5455
        %v5489 = vperm.slane %v5347, %v5457
        %v5490 = vsel %vm5459, %v5489, %v5488
        %v5491 = vperm.slane %v5348, %v5455
        %v5492 = vperm.slane %v5349, %v5457
        %v5493 = vsel %vm5459, %v5492, %v5491
        %v5494 = vperm.slane %v5350, %v5455
        %v5495 = vperm.slane %v5351, %v5457
        %v5496 = vsel %vm5459, %v5495, %v5494
        %v5497 = vperm.slane %v5352, %v5455
        %v5498 = vperm.slane %v5353, %v5457
        %v5499 = vsel %vm5459, %v5498, %v5497
        %v5500 = vperm.slane %v5354, %v5455
        %v5501 = vperm.slane %v5355, %v5457
        %v5502 = vsel %vm5459, %v5501, %v5500
        %v5503 = vperm.slane %v5356, %v5455
        %v5504 = vperm.slane %v5357, %v5457
        %v5505 = vsel %vm5459, %v5504, %v5503
        %v5506 = vperm.slane %v5358, %v5455
        %v5507 = vperm.slane %v5359, %v5457
        %v5508 = vsel %vm5459, %v5507, %v5506
        %v5509 = vperm.slane %v5360, %v5455
        %v5510 = vperm.slane %v5361, %v5457
        %v5511 = vsel %vm5459, %v5510, %v5509
        %v5512 = vperm.slane %v5362, %v5455
        %v5513 = vperm.slane %v5363, %v5457
        %v5514 = vsel %vm5459, %v5513, %v5512
        %v5515 = vperm.slane %v5364, %v5455
        %v5516 = vperm.slane %v5365, %v5457
        %v5517 = vsel %vm5459, %v5516, %v5515
        %v5518 = vperm.slane %v5366, %v5455
        %v5519 = vperm.slane %v5367, %v5457
        %v5520 = vsel %vm5459, %v5519, %v5518
        %v5521 = vperm.slane %v5368, %v5455
        %v5522 = vperm.slane %v5369, %v5457
        %v5523 = vsel %vm5459, %v5522, %v5521
        %v5524 = vperm.slane %v5370, %v5455
        %v5525 = vperm.slane %v5371, %v5457
        %v5526 = vsel %vm5459, %v5525, %v5524
        %v5527 = vperm.slane %v5372, %v5455
        %v5528 = vperm.slane %v5373, %v5457
        %v5529 = vsel %vm5459, %v5528, %v5527
        %v5530 = vperm.slane %v5374, %v5455
        %v5531 = vperm.slane %v5375, %v5457
        %v5532 = vsel %vm5459, %v5531, %v5530
        %v5533 = vperm.slane %v5376, %v5455
        %v5534 = vperm.slane %v5377, %v5457
        %v5535 = vsel %vm5459, %v5534, %v5533
        %v5536 = vperm.slane %v5378, %v5455
        %v5537 = vperm.slane %v5379, %v5457
        %v5538 = vsel %vm5459, %v5537, %v5536
        %v5539 = vperm.slane %v5380, %v5455
        %v5540 = vperm.slane %v5381, %v5457
        %v5541 = vsel %vm5459, %v5540, %v5539
        %v5542 = vperm.slane %v5382, %v5455
        %v5543 = vperm.slane %v5383, %v5457
        %v5544 = vsel %vm5459, %v5543, %v5542
        %v5545 = vperm.slane %v5384, %v5455
        %v5546 = vperm.slane %v5385, %v5457
        %v5547 = vsel %vm5459, %v5546, %v5545
        %v5548 = vperm.slane %v5386, %v5455
        %v5549 = vperm.slane %v5387, %v5457
        %v5550 = vsel %vm5459, %v5549, %v5548
        %v5551 = vperm.slane %v5388, %v5455
        %v5552 = vperm.slane %v5389, %v5457
        %v5553 = vsel %vm5459, %v5552, %v5551
        %vm5554 = vcmask 1041409
        %v5555 = vsel %vm5554, %v5463, %v5460
        %vm5556 = vcmask 1042434
        %v5557 = vsel %vm5556, %v5466, %v5555
        %vm5558 = vcmask 1043459
        %v5559 = vsel %vm5558, %v5469, %v5557
        %vm5560 = vcmask 1044484
        %v5561 = vsel %vm5560, %v5472, %v5559
        %vm5562 = vcmask 1045509
        %v5563 = vsel %vm5562, %v5475, %v5561
        %vm5564 = vcmask 1046534
        %v5565 = vsel %vm5564, %v5478, %v5563
        %vm5566 = vcmask 1047559
        %v5567 = vsel %vm5566, %v5481, %v5565
        %v5568 = vsel %vm5554, %v5487, %v5484
        %v5569 = vsel %vm5556, %v5490, %v5568
        %v5570 = vsel %vm5558, %v5493, %v5569
        %v5571 = vsel %vm5560, %v5496, %v5570
        %v5572 = vsel %vm5562, %v5499, %v5571
        %v5573 = vsel %vm5564, %v5502, %v5572
        %v5574 = vsel %vm5566, %v5505, %v5573
        %v5575 = vsel %vm5554, %v5511, %v5508
        %v5576 = vsel %vm5556, %v5514, %v5575
        %v5577 = vsel %vm5558, %v5517, %v5576
        %v5578 = vsel %vm5560, %v5520, %v5577
        %v5579 = vsel %vm5562, %v5523, %v5578
        %v5580 = vsel %vm5564, %v5526, %v5579
        %v5581 = vsel %vm5566, %v5529, %v5580
        %v5582 = vsel %vm5554, %v5535, %v5532
        %v5583 = vsel %vm5556, %v5538, %v5582
        %v5584 = vsel %vm5558, %v5541, %v5583
        %v5585 = vsel %vm5560, %v5544, %v5584
        %v5586 = vsel %vm5562, %v5547, %v5585
        %v5587 = vsel %vm5564, %v5550, %v5586
        %v5588 = vsel %vm5566, %v5553, %v5587
        %vm5593 = vcmask 130048
        %5594 = vst.msk [vmem:[%s194] sm:$0xff] %vm5593, %v5567
        %5595 = vst.msk [vmem:[%s194 + $0x8] sm:$0xff] %vm5593, %v5574
        %5596 = vst.msk [vmem:[%s194 + $0x10] sm:$0xff] %vm5593, %v5581
        %5597 = vst.msk [vmem:[%s194 + $0x18] sm:$0xff] %vm5593, %v5588
        %s5598 = smul.u32 4, %s17
        %p5599 = scmp.lt.s32.totalorder %s5598, 7
        %s5600 = scalar_select %p5599, %s5598, 7
        %s5601 = smul.addr %s5600, 8
        %s5602 = scalar_lea.vmem %s3, %s5601
        // Predicated region
        $region37: #{attention_forward.1} parent=31 // pred_check
          %p5603 = pneg %p103
        $region38: #{attention_forward.1} parent=31 // pred_check_branch
          %5605 = sbr.rel (%p5603) target = $region40
        $region39: #{attention_forward.1} parent=31 // pred_region
          %s5606 = smul.u32 4, %s17
        $region40: #{attention_forward.1} parent=31 // pred_fallthru
          _
      $region32: #{attention_forward.1} parent=5 // pred_fallthru
        _
      %p5607 = scmp.le.s32.totalorder 2, %s12
      // Predicated region
      $region41: #{attention_forward.1} parent=5 // pred_check
        %p5608 = pneg %p5607
      $region42: #{attention_forward.1} parent=5 // pred_check_branch
        %5610 = sbr.rel (%p5608) target = $region44
      $region43: #{attention_forward.1} parent=5 // pred_region
        %s5611 = ssub.s32 %s12, 2
        // Predicated region
        $region45: #{attention_forward.1} parent=43 // pred_check
          %p5612 = pneg %p109
        $region46: #{attention_forward.1} parent=43 // pred_check_branch
          %5614 = sbr.rel (%p5612) target = $region48
        $region47: #{attention_forward.1} parent=43 // pred_region
          %s5615 = smul.u32 4, %s18
          %p5616 = scmp.lt.s32.totalorder %s5615, 7
          %s5617 = scalar_select %p5616, %s5615, 7
          %s5618 = smul.addr %s5617, 8
          %s5619 = scalar_lea.vmem %s3, %s5618
        $region48: #{attention_forward.1} parent=43 // pred_fallthru
          _
      $region44: #{attention_forward.1} parent=5 // pred_fallthru
        _
    $region6: #{attention_forward.1} parent=1 // loop_footer
      %s16 = sadd.s32 1, %s12
    $region7: #{attention_forward.1} parent=1 // loop_footer_branch
      %11 = sbr.rel target = $region3
    $region8: #{attention_forward.1} parent=1 // loop_exit
      _
    %5620 = vsyncpa [#allocation3], 1
    %s5621 = scalar_lea.sflag [#allocation3], 1
    %5622 = vsyncpa %s5621, 1

</llo_original>
